<compile_context>
chip_gen: v6e
topology: v6e:2x2x1
jax: 0.10.0
libtpu: 0.0.40
codegen_flags: <defaults>
</compile_context>

<pallas_src>
import jax
import jax.numpy as jnp
from jax.experimental import pallas as pl
from jax.experimental.pallas import tpu as pltpu

EPS = 1e-5
LANE = 128


def _round_up(n, m):
    return -(-n // m) * m


def _pad_axis(a, axis, target):
    pad = target - a.shape[axis]
    if pad <= 0:
        return a
    widths = [(0, 0)] * a.ndim
    widths[axis] = (0, pad)
    return jnp.pad(a, widths)


def _mlp_kernel(x_ref,
                w1_ref, b1_ref,
                w2_ref, b2_ref,
                w3_ref, b3_ref,
                w4_ref, b4_ref,
                o_ref):
    """Fused 3x (Linear -> folded-BN bias -> ReLU) -> Linear(+bias).

    Weights arrive pre-transposed (in, out) with BatchNorm already folded in
    on the host; inputs/weights are bf16, all matmuls accumulate in f32 on the
    MXU, bias-add/ReLU run in f32 on the VPU.  Dropout is identity (eval).
    """
    h = jnp.dot(x_ref[...], w1_ref[...], preferred_element_type=jnp.float32)
    h = jnp.maximum(h + b1_ref[...], 0.0).astype(jnp.bfloat16)
    h = jnp.dot(h, w2_ref[...], preferred_element_type=jnp.float32)
    h = jnp.maximum(h + b2_ref[...], 0.0).astype(jnp.bfloat16)
    h = jnp.dot(h, w3_ref[...], preferred_element_type=jnp.float32)
    h = jnp.maximum(h + b3_ref[...], 0.0).astype(jnp.bfloat16)
    out = jnp.dot(h, w4_ref[...], preferred_element_type=jnp.float32) + b4_ref[...]
    o_ref[...] = out.astype(o_ref.dtype)


def prepare_kernel_params(params):
    """Fold eval-mode BatchNorm into the Linear weights, zero-pad to
    lane-friendly shapes, and cast weights to bf16 (kernel accumulates f32)."""
    kp = {}
    in_f = params["w1"].shape[0]
    out_f = params["w4"].shape[1]
    in_pad = _round_up(in_f, LANE)     # 784 -> 896
    out_pad = _round_up(out_f, LANE)   # 10  -> 128

    for li in range(1, 4):
        w = params[f"w{li}"]                                        # (in, out)
        scale = params[f"g{li}"] * jax.lax.rsqrt(params[f"v{li}"] + EPS)  # (1, out)
        w_eff = w * scale                                           # fold BN scale
        b_eff = params[f"b{li}"] - params[f"m{li}"] * scale         # fold BN shift
        if li == 1:
            w_eff = _pad_axis(w_eff, 0, in_pad)   # zero rows match zero x columns
        kp[f"w{li}"] = w_eff.astype(jnp.bfloat16)
        kp[f"b{li}"] = b_eff.astype(jnp.float32)

    kp["w4"] = _pad_axis(params["w4"], 1, out_pad).astype(jnp.bfloat16)
    kp["b4"] = _pad_axis(params["bias4"], 1, out_pad).astype(jnp.float32)
    kp["in_f"], kp["in_pad"] = in_f, in_pad
    kp["out_f"], kp["out_pad"] = out_f, out_pad
    return kp


def _mlp_pallas(x, kp, *, bm):
    B = x.shape[0]
    bm = min(bm, B)
    assert B % bm == 0, "batch must be a multiple of the batch tile"
    in_pad, out_pad = kp["in_pad"], kp["out_pad"]
    h1 = kp["w1"].shape[1]
    h2 = kp["w2"].shape[1]
    h3 = kp["w3"].shape[1]

    x_pad = _pad_axis(x, 1, in_pad).astype(jnp.bfloat16)

    def const2d(shape):
        # whole-array block, grid-invariant (fetched once, stays VMEM-resident)
        return pl.BlockSpec(shape, lambda i: (0, 0))

    in_specs = [
        pl.BlockSpec((bm, in_pad), lambda i: (i, 0)),   # x tile
        const2d((in_pad, h1)), const2d((1, h1)),
        const2d((h1, h2)), const2d((1, h2)),
        const2d((h2, h3)), const2d((1, h3)),
        const2d((h3, out_pad)), const2d((1, out_pad)),
    ]
    out_spec = pl.BlockSpec((bm, out_pad), lambda i: (i, 0))

    fn = pl.pallas_call(
        _mlp_kernel,
        out_shape=jax.ShapeDtypeStruct((B, out_pad), jnp.float32),
        grid_spec=pltpu.PrefetchScalarGridSpec(
            num_scalar_prefetch=0,
            grid=(B // bm,),
            in_specs=in_specs,
            out_specs=out_spec,
        ),
        compiler_params=pltpu.CompilerParams(
            # batch tiles are fully independent -> megacore sharding on v7x
            dimension_semantics=("parallel",)),
    )
    out = fn(x_pad,
             kp["w1"], kp["b1"],
             kp["w2"], kp["b2"],
             kp["w3"], kp["b3"],
             kp["w4"], kp["b4"])
    return out[:, :kp["out_f"]]


def mlp_forward(x, params, *, bm=128):
    """x: (B, in_features) f32.  params: raw (PyTorch-layout) params from init."""
    kp = prepare_kernel_params(params)
    return _mlp_pallas(x, kp, bm=bm)


def init_params(key, in_features=28 * 28, hidden=(512, 256, 128), out_features=10):
    """Deterministic synthetic parameters matching nn.Linear / nn.BatchNorm1d.

    Linear weights are stored transposed: (in, out)."""
    dims = [in_features] + list(hidden)
    params = {}
    keys = jax.random.split(key, 16)
    ki = 0
    for li in range(3):
        fin, fout = dims[li], dims[li + 1]
        scale = 1.0 / jnp.sqrt(jnp.float32(fin))
        params[f"w{li+1}"] = jax.random.uniform(
            keys[ki], (fin, fout), jnp.float32, -scale, scale); ki += 1
        # BatchNorm1d(fout): gamma, beta, running_mean, running_var -> (1, fout)
        params[f"g{li+1}"] = 1.0 + 0.1 * jax.random.normal(keys[ki], (1, fout)); ki += 1
        params[f"b{li+1}"] = 0.1 * jax.random.normal(keys[ki], (1, fout)); ki += 1
        params[f"m{li+1}"] = 0.05 * jax.random.normal(keys[ki], (1, fout)); ki += 1
        params[f"v{li+1}"] = 1.0 + 0.1 * jax.random.uniform(keys[ki], (1, fout)); ki += 1
    fin = dims[-1]
    scale = 1.0 / jnp.sqrt(jnp.float32(fin))
    params["w4"] = jax.random.uniform(keys[15], (fin, out_features),
                                      jnp.float32, -scale, scale)
    params["bias4"] = jax.random.uniform(jax.random.PRNGKey(1234),
                                         (1, out_features), jnp.float32,
                                         -scale, scale)
    return {k: v.astype(jnp.float32) for k, v in params.items()}


def mlp_reference(x, p):
    """Plain-JAX f32 reference with explicit BN (same eval-mode semantics)."""
    h = x
    for li in range(3):
        y = h @ p[f"w{li+1}"]
        y = (y - p[f"m{li+1}"]) * jax.lax.rsqrt(p[f"v{li+1}"] + EPS) \
            * p[f"g{li+1}"] + p[f"b{li+1}"]
        h = jnp.maximum(y, 0.0)
    return h @ p["w4"] + p["bias4"]


def mlp_reference_kernel_numerics(x, kp):
    """Plain-JAX replica of the kernel's numerics (folded BN, bf16, f32 acc)."""
    h = _pad_axis(x, 1, kp["in_pad"]).astype(jnp.bfloat16)
    for li in range(1, 4):
        y = jnp.dot(h, kp[f"w{li}"], preferred_element_type=jnp.float32)
        h = jnp.maximum(y + kp[f"b{li}"], 0.0).astype(jnp.bfloat16)
    out = jnp.dot(h, kp["w4"], preferred_element_type=jnp.float32) + kp["b4"]
    return out[:, :kp["out_f"]]


if __name__ == "__main__":
    key = jax.random.PRNGKey(0)
    kx, kparam = jax.random.split(key)

    B, IN_F, HIDDEN, OUT_F = 256, 28 * 28, (512, 256, 128), 10
    x = jax.random.normal(kx, (B, IN_F), jnp.float32)
    params = init_params(kparam, IN_F, HIDDEN, OUT_F)

    out = mlp_forward(x, params, bm=128)
    out = jax.block_until_ready(out)
    assert out.shape == (B, OUT_F)

    kp = prepare_kernel_params(params)
    ref_same = mlp_reference_kernel_numerics(x, kp)     # identical numerics
    ref_f32 = mlp_reference(x, params)                  # full-precision eval-mode

    err_same = jnp.max(jnp.abs(out - ref_same))
    err_f32 = jnp.max(jnp.abs(out - ref_f32))
    assert jnp.allclose(out, ref_same, atol=5e-3, rtol=5e-3), \
        f"max abs err vs kernel-numerics ref {err_same}"
    assert jnp.allclose(out, ref_f32, atol=5e-2, rtol=5e-2), \
        f"max abs err vs f32 ref {err_f32}"
    print("KERNEL_OK")
</pallas_src>

<mosaic_0001>
module attributes {stable_mosaic.version = 11 : i64} {
  func.func @_mlp_kernel(%arg0: i32, %arg1: memref<128x896xbf16, #tpu.memory_space<vmem>>, %arg2: memref<896x512xbf16, #tpu.memory_space<vmem>>, %arg3: memref<1x512xf32, #tpu.memory_space<vmem>>, %arg4: memref<512x256xbf16, #tpu.memory_space<vmem>>, %arg5: memref<1x256xf32, #tpu.memory_space<vmem>>, %arg6: memref<256x128xbf16, #tpu.memory_space<vmem>>, %arg7: memref<1x128xf32, #tpu.memory_space<vmem>>, %arg8: memref<128x128xbf16, #tpu.memory_space<vmem>>, %arg9: memref<1x128xf32, #tpu.memory_space<vmem>>, %arg10: memref<128x128xf32, #tpu.memory_space<vmem>>) attributes {dimension_semantics = [#tpu.dimension_semantics<parallel>], iteration_bounds = array<i64: 2>, scalar_prefetch = 0 : i64, scratch_operands = 0 : i64, tpu.core_type = #tpu.core_type<tc>, window_params = [{transform_indices = @transform_0, window_bounds = array<i64: 128, 896>}, {pipeline_mode = #tpu.pipeline_mode<synchronous>, transform_indices = @transform_1, window_bounds = array<i64: 896, 512>}, {pipeline_mode = #tpu.pipeline_mode<synchronous>, transform_indices = @transform_2, window_bounds = array<i64: 1, 512>}, {pipeline_mode = #tpu.pipeline_mode<synchronous>, transform_indices = @transform_3, window_bounds = array<i64: 512, 256>}, {pipeline_mode = #tpu.pipeline_mode<synchronous>, transform_indices = @transform_4, window_bounds = array<i64: 1, 256>}, {pipeline_mode = #tpu.pipeline_mode<synchronous>, transform_indices = @transform_5, window_bounds = array<i64: 256, 128>}, {pipeline_mode = #tpu.pipeline_mode<synchronous>, transform_indices = @transform_6, window_bounds = array<i64: 1, 128>}, {pipeline_mode = #tpu.pipeline_mode<synchronous>, transform_indices = @transform_7, window_bounds = array<i64: 128, 128>}, {pipeline_mode = #tpu.pipeline_mode<synchronous>, transform_indices = @transform_8, window_bounds = array<i64: 1, 128>}, {transform_indices = @transform_9, window_bounds = array<i64: 128, 128>}]} {
    %c0 = arith.constant 0 : index
    %c0_0 = arith.constant 0 : index
    %0 = vector.load %arg1[%c0, %c0_0] : memref<128x896xbf16, #tpu.memory_space<vmem>>, vector<128x896xbf16>
    %c0_1 = arith.constant 0 : index
    %c0_2 = arith.constant 0 : index
    %1 = vector.load %arg2[%c0_1, %c0_2] : memref<896x512xbf16, #tpu.memory_space<vmem>>, vector<896x512xbf16>
    %cst = arith.constant dense<0.000000e+00> : vector<128x512xf32>
    %2 = tpu.matmul %0, %1, %cst {dimension_numbers = #tpu.dot_dimension_numbers<[1], [0], [0], [1], [0, 0, 1, 1], [], []>} : vector<128x896xbf16>, vector<896x512xbf16>, vector<128x512xf32> -> vector<128x512xf32>
    %c0_3 = arith.constant 0 : index
    %c0_4 = arith.constant 0 : index
    %3 = vector.load %arg3[%c0_3, %c0_4] : memref<1x512xf32, #tpu.memory_space<vmem>>, vector<1x512xf32>
    %4 = vector.broadcast %3 : vector<1x512xf32> to vector<128x512xf32>
    %5 = arith.addf %2, %4 : vector<128x512xf32>
    %cst_5 = arith.constant 0.000000e+00 : f32
    %6 = vector.broadcast %cst_5 : f32 to vector<128x512xf32>
    %7 = arith.maximumf %5, %6 : vector<128x512xf32>
    %8 = arith.truncf %7 : vector<128x512xf32> to vector<128x512xbf16>
    %c0_6 = arith.constant 0 : index
    %c0_7 = arith.constant 0 : index
    %9 = vector.load %arg4[%c0_6, %c0_7] : memref<512x256xbf16, #tpu.memory_space<vmem>>, vector<512x256xbf16>
    %cst_8 = arith.constant dense<0.000000e+00> : vector<128x256xf32>
    %10 = tpu.matmul %8, %9, %cst_8 {dimension_numbers = #tpu.dot_dimension_numbers<[1], [0], [0], [1], [0, 0, 1, 1], [], []>} : vector<128x512xbf16>, vector<512x256xbf16>, vector<128x256xf32> -> vector<128x256xf32>
    %c0_9 = arith.constant 0 : index
    %c0_10 = arith.constant 0 : index
    %11 = vector.load %arg5[%c0_9, %c0_10] : memref<1x256xf32, #tpu.memory_space<vmem>>, vector<1x256xf32>
    %12 = vector.broadcast %11 : vector<1x256xf32> to vector<128x256xf32>
    %13 = arith.addf %10, %12 : vector<128x256xf32>
    %cst_11 = arith.constant 0.000000e+00 : f32
    %14 = vector.broadcast %cst_11 : f32 to vector<128x256xf32>
    %15 = arith.maximumf %13, %14 : vector<128x256xf32>
    %16 = arith.truncf %15 : vector<128x256xf32> to vector<128x256xbf16>
    %c0_12 = arith.constant 0 : index
    %c0_13 = arith.constant 0 : index
    %17 = vector.load %arg6[%c0_12, %c0_13] : memref<256x128xbf16, #tpu.memory_space<vmem>>, vector<256x128xbf16>
    %cst_14 = arith.constant dense<0.000000e+00> : vector<128x128xf32>
    %18 = tpu.matmul %16, %17, %cst_14 {dimension_numbers = #tpu.dot_dimension_numbers<[1], [0], [0], [1], [0, 0, 1, 1], [], []>} : vector<128x256xbf16>, vector<256x128xbf16>, vector<128x128xf32> -> vector<128x128xf32>
    %c0_15 = arith.constant 0 : index
    %c0_16 = arith.constant 0 : index
    %19 = vector.load %arg7[%c0_15, %c0_16] : memref<1x128xf32, #tpu.memory_space<vmem>>, vector<1x128xf32>
    %20 = vector.broadcast %19 : vector<1x128xf32> to vector<128x128xf32>
    %21 = arith.addf %18, %20 : vector<128x128xf32>
    %cst_17 = arith.constant 0.000000e+00 : f32
    %22 = vector.broadcast %cst_17 : f32 to vector<128x128xf32>
    %23 = arith.maximumf %21, %22 : vector<128x128xf32>
    %24 = arith.truncf %23 : vector<128x128xf32> to vector<128x128xbf16>
    %c0_18 = arith.constant 0 : index
    %c0_19 = arith.constant 0 : index
    %25 = vector.load %arg8[%c0_18, %c0_19] : memref<128x128xbf16, #tpu.memory_space<vmem>>, vector<128x128xbf16>
    %cst_20 = arith.constant dense<0.000000e+00> : vector<128x128xf32>
    %26 = tpu.matmul %24, %25, %cst_20 {dimension_numbers = #tpu.dot_dimension_numbers<[1], [0], [0], [1], [0, 0, 1, 1], [], []>} : vector<128x128xbf16>, vector<128x128xbf16>, vector<128x128xf32> -> vector<128x128xf32>
    %c0_21 = arith.constant 0 : index
    %c0_22 = arith.constant 0 : index
    %27 = vector.load %arg9[%c0_21, %c0_22] : memref<1x128xf32, #tpu.memory_space<vmem>>, vector<1x128xf32>
    %28 = vector.broadcast %27 : vector<1x128xf32> to vector<128x128xf32>
    %29 = arith.addf %26, %28 : vector<128x128xf32>
    %c0_23 = arith.constant 0 : index
    %c0_24 = arith.constant 0 : index
    %30 = vector.load %arg10[%c0_23, %c0_24] : memref<128x128xf32, #tpu.memory_space<vmem>>, vector<128x128xf32>
    tpu.vector_store %arg10[%c0_23, %c0_24], %29 {strides = array<i32>} : memref<128x128xf32, #tpu.memory_space<vmem>>, vector<128x128xf32>,
    return
  }
  func.func @transform_0(%arg0: i32) -> (i32, i32) {
    %c0_i32 = arith.constant 0 : i32
    %c0_i32_0 = arith.constant 0 : i32
    return %arg0, %c0_i32 : i32, i32
  }
  func.func @transform_1(%arg0: i32) -> (i32, i32) {
    %c0_i32 = arith.constant 0 : i32
    %c0_i32_0 = arith.constant 0 : i32
    %c0_i32_1 = arith.constant 0 : i32
    return %c0_i32, %c0_i32_0 : i32, i32
  }
  func.func @transform_2(%arg0: i32) -> (i32, i32) {
    %c0_i32 = arith.constant 0 : i32
    %c0_i32_0 = arith.constant 0 : i32
    %c0_i32_1 = arith.constant 0 : i32
    return %c0_i32, %c0_i32_0 : i32, i32
  }
  func.func @transform_3(%arg0: i32) -> (i32, i32) {
    %c0_i32 = arith.constant 0 : i32
    %c0_i32_0 = arith.constant 0 : i32
    %c0_i32_1 = arith.constant 0 : i32
    return %c0_i32, %c0_i32_0 : i32, i32
  }
  func.func @transform_4(%arg0: i32) -> (i32, i32) {
    %c0_i32 = arith.constant 0 : i32
    %c0_i32_0 = arith.constant 0 : i32
    %c0_i32_1 = arith.constant 0 : i32
    return %c0_i32, %c0_i32_0 : i32, i32
  }
  func.func @transform_5(%arg0: i32) -> (i32, i32) {
    %c0_i32 = arith.constant 0 : i32
    %c0_i32_0 = arith.constant 0 : i32
    %c0_i32_1 = arith.constant 0 : i32
    return %c0_i32, %c0_i32_0 : i32, i32
  }
  func.func @transform_6(%arg0: i32) -> (i32, i32) {
    %c0_i32 = arith.constant 0 : i32
    %c0_i32_0 = arith.constant 0 : i32
    %c0_i32_1 = arith.constant 0 : i32
    return %c0_i32, %c0_i32_0 : i32, i32
  }
  func.func @transform_7(%arg0: i32) -> (i32, i32) {
    %c0_i32 = arith.constant 0 : i32
    %c0_i32_0 = arith.constant 0 : i32
    %c0_i32_1 = arith.constant 0 : i32
    return %c0_i32, %c0_i32_0 : i32, i32
  }
  func.func @transform_8(%arg0: i32) -> (i32, i32) {
    %c0_i32 = arith.constant 0 : i32
    %c0_i32_0 = arith.constant 0 : i32
    %c0_i32_1 = arith.constant 0 : i32
    return %c0_i32, %c0_i32_0 : i32, i32
  }
  func.func @transform_9(%arg0: i32) -> (i32, i32) {
    %c0_i32 = arith.constant 0 : i32
    %c0_i32_0 = arith.constant 0 : i32
    return %arg0, %c0_i32 : i32, i32
  }
}

</mosaic_0001>

<llo_original>
// kernel: tpu_custom_call.1
$region0: #{tpu_custom_call.1}
  #allocation0 [shape = 'u32[]', space=smem, size = 0x4, offset = 0x4, fixed_abs, tag = 'smem constant byte address 0x4 - core index']
  #allocation1 [shape = 'u32[144,128]{1,0:T(1,128)}', space=vmem, size = 0x12000, scoped, tag = 'internal scratch']
  %s0 = inlined_call_operand.hbm [shape: bf16[256,896], index: 0, kind: input, shape index: {}]
  %s1 = inlined_call_operand.hbm [shape: bf16[896,512], index: 1, kind: input, shape index: {}]
  %s2 = inlined_call_operand.hbm [shape: f32[1,512], index: 2, kind: input, shape index: {}]
  %s3 = inlined_call_operand.hbm [shape: bf16[512,256], index: 3, kind: input, shape index: {}]
  %s4 = inlined_call_operand.vmem [shape: f32[1,256], index: 4, kind: input, shape index: {}]
  %s5 = inlined_call_operand.hbm [shape: bf16[256,128], index: 5, kind: input, shape index: {}]
  %s6 = inlined_call_operand.vmem [shape: f32[1,128], index: 6, kind: input, shape index: {}]
  %s7 = inlined_call_operand.hbm [shape: bf16[128,128], index: 7, kind: input, shape index: {}]
  %s8 = inlined_call_operand.vmem [shape: f32[1,128], index: 8, kind: input, shape index: {}]
  %s9 = inlined_call_operand.hbm [shape: f32[256,128], index: 9, kind: output, shape index: {}]
  %s10 = sld [smem:[#allocation0]]
  $region93: #{tpu_custom_call.1} parent=0
    _
  %s12 = ssub.s32 1, %s10
  %s13 = scalar_select 0, %s12, %s10
  $region1: #{tpu_custom_call.1} parent=0
    #allocation2 [shape = 'u8[458752]{0}', space=vmem, size = 0x70000, scoped, tag = 'input window, operand 0']
    #allocation3 [shape = 's32[2]{0}', space=sflag, size = 0x8, scoped, tag = 'scoped memory for tpu_custom_call.1']
    #allocation4 [shape = 's32[2]{0}', space=sflag, size = 0x8, scoped, tag = 'scoped memory for tpu_custom_call.1']
    #allocation5 [shape = 'u8[917504]{0}', space=vmem, size = 0xe0000, scoped, tag = 'input window, operand 1, single buffered']
    #allocation6 [shape = 's32[1]{0}', space=sflag, size = 0x4, scoped, tag = 'scoped memory for tpu_custom_call.1']
    #allocation7 [shape = 'u8[2048]{0}', space=vmem, size = 0x800, scoped, tag = 'input window, operand 2, single buffered']
    #allocation8 [shape = 'u8[262144]{0}', space=vmem, size = 0x40000, scoped, tag = 'input window, operand 3, single buffered']
    #allocation9 [shape = 's32[1]{0}', space=sflag, size = 0x4, scoped, tag = 'scoped memory for tpu_custom_call.1']
    #allocation10 [shape = 'u8[65536]{0}', space=vmem, size = 0x10000, scoped, tag = 'input window, operand 5, single buffered']
    #allocation11 [shape = 'u8[32768]{0}', space=vmem, size = 0x8000, scoped, tag = 'input window, operand 7, single buffered']
    #allocation12 [shape = 's32[1]{0}', space=sflag, size = 0x4, scoped, tag = 'scoped memory for tpu_custom_call.1']
    #allocation13 [shape = 'u8[131072]{0}', space=vmem, size = 0x20000, scoped, tag = 'output window, operand 0']
    %14 = vsyncpa [#allocation3], 0
    %s15 = scalar_lea.sflag [#allocation3], 1
    %16 = vsyncpa %s15, 0
    %17 = vsyncpa [#allocation6], 0
    %18 = vsyncpa [#allocation9], 0
    %19 = vsyncpa [#allocation12], 0
    %20 = vsyncpa [#allocation4], 0
    %s21 = scalar_lea.sflag [#allocation4], 1
    %22 = vsyncpa %s21, 0
    loop: start=0, step=1, limit=4
    $region2: #{tpu_custom_call.1} parent=1 // loop_pre_header
      _
    $region3: #{tpu_custom_call.1} parent=1 // loop_header
      %s24 = sphi 0, %s28
      %p25 = scmp.ge.s32.totalorder %s24, 4
      %s34 = sphi 0, %s36
      %s37 = sphi 0, %s34
      %s38 = sphi 0, %s37
      %s54 = sphi 0, %s38
      %s58 = sphi 0, %s58
      %s60 = sphi 0, %s58
      %s61 = sphi 0, %s60
      %s75 = sphi 0, %s61
      %s79 = sphi 0, %s79
      %s81 = sphi 0, %s79
      %s82 = sphi 0, %s81
      %s96 = sphi 0, %s82
      %s100 = sphi 0, %s100
      %s102 = sphi 0, %s100
      %s103 = sphi 0, %s102
      %s117 = sphi 0, %s103
      %s121 = sphi 0, %s121
      %s123 = sphi 0, %s121
      %s124 = sphi 0, %s123
      %s138 = sphi 0, %s124
      %s142 = sphi 0, %s142
      %s144 = sphi 0, %s142
      %s145 = sphi 0, %s144
      %s159 = sphi 0, %s145
      %s163 = sphi 0, %s163
      %s165 = sphi 0, %s163
      %s166 = sphi 0, %s165
      %s180 = sphi 0, %s166
      %s184 = sphi 0, %s184
      %s186 = sphi 0, %s184
      %s187 = sphi 0, %s186
      %s201 = sphi 0, %s187
      %s205 = sphi 0, %s205
      %s207 = sphi 0, %s205
      %s208 = sphi 0, %s207
      %s222 = sphi 0, %s208
      %s228 = sphi 0, %s230
      %s231 = sphi 0, %s228
      %s232 = sphi 0, %s231
      %s248 = sphi 0, %s232
    $region4: #{tpu_custom_call.1} parent=1 // loop_header_branch
      %27 = sbr.rel (%p25) target = $region8
    $region5: #{tpu_custom_call.1} parent=1 // loop_body
      %s29 = ssub.s32 %s24, 1
      %s30 = ssub.s32 %s24, 2
      %s31 = sadd.s32 %s24, 1
      %s32 = ssub.s32 %s24, %s31
      %p33 = scmp.eq.s32.totalorder %s32, 0
      %s35 = sadd.s32 %s34, 1
      %s36 = scalar_select %p33, %s34, %s35
      %p39 = pneg %p33
      %p40 = scmp.eq.s32.totalorder %s24, 1
      %p41 = por %p39, %p40
      %p42 = scmp.ne.s32.totalorder %s34, %s37
      %p43 = scmp.eq.s32.totalorder %s24, 0
      %p44 = por %p42, %p43
      %p45 = scmp.ne.s32.totalorder %s34, %s37
      %p46 = scmp.eq.s32.totalorder %s29, 1
      %p47 = por %p45, %p46
      %p48 = scmp.ne.s32.totalorder %s37, %s38
      %p49 = scmp.eq.s32.totalorder %s29, 0
      %p50 = por %p48, %p49
      %p51 = scmp.ne.s32.totalorder %s37, %s38
      %p52 = scmp.eq.s32.totalorder %s30, 1
      %p53 = por %p51, %p52
      %p55 = scmp.ne.s32.totalorder %s38, %s54
      %p56 = scmp.eq.s32.totalorder %s30, 0
      %p57 = por %p55, %p56
      %s59 = sadd.s32 %s58, 1
      %p62 = scmp.eq.s32.totalorder %s24, 1
      %p63 = scmp.ne.s32.totalorder %s58, %s60
      %p64 = scmp.eq.s32.totalorder %s24, 0
      %p65 = por %p63, %p64
      %p66 = scmp.ne.s32.totalorder %s58, %s60
      %p67 = scmp.eq.s32.totalorder %s29, 1
      %p68 = por %p66, %p67
      %p69 = scmp.ne.s32.totalorder %s60, %s61
      %p70 = scmp.eq.s32.totalorder %s29, 0
      %p71 = por %p69, %p70
      %p72 = scmp.ne.s32.totalorder %s60, %s61
      %p73 = scmp.eq.s32.totalorder %s30, 1
      %p74 = por %p72, %p73
      %p76 = scmp.ne.s32.totalorder %s61, %s75
      %p77 = scmp.eq.s32.totalorder %s30, 0
      %p78 = por %p76, %p77
      %s80 = sadd.s32 %s79, 1
      %p83 = scmp.eq.s32.totalorder %s24, 1
      %p84 = scmp.ne.s32.totalorder %s79, %s81
      %p85 = scmp.eq.s32.totalorder %s24, 0
      %p86 = por %p84, %p85
      %p87 = scmp.ne.s32.totalorder %s79, %s81
      %p88 = scmp.eq.s32.totalorder %s29, 1
      %p89 = por %p87, %p88
      %p90 = scmp.ne.s32.totalorder %s81, %s82
      %p91 = scmp.eq.s32.totalorder %s29, 0
      %p92 = por %p90, %p91
      %p93 = scmp.ne.s32.totalorder %s81, %s82
      %p94 = scmp.eq.s32.totalorder %s30, 1
      %p95 = por %p93, %p94
      %p97 = scmp.ne.s32.totalorder %s82, %s96
      %p98 = scmp.eq.s32.totalorder %s30, 0
      %p99 = por %p97, %p98
      %s101 = sadd.s32 %s100, 1
      %p104 = scmp.eq.s32.totalorder %s24, 1
      %p105 = scmp.ne.s32.totalorder %s100, %s102
      %p106 = scmp.eq.s32.totalorder %s24, 0
      %p107 = por %p105, %p106
      %p108 = scmp.ne.s32.totalorder %s100, %s102
      %p109 = scmp.eq.s32.totalorder %s29, 1
      %p110 = por %p108, %p109
      %p111 = scmp.ne.s32.totalorder %s102, %s103
      %p112 = scmp.eq.s32.totalorder %s29, 0
      %p113 = por %p111, %p112
      %p114 = scmp.ne.s32.totalorder %s102, %s103
      %p115 = scmp.eq.s32.totalorder %s30, 1
      %p116 = por %p114, %p115
      %p118 = scmp.ne.s32.totalorder %s103, %s117
      %p119 = scmp.eq.s32.totalorder %s30, 0
      %p120 = por %p118, %p119
      %s122 = sadd.s32 %s121, 1
      %p125 = scmp.eq.s32.totalorder %s24, 1
      %p126 = scmp.ne.s32.totalorder %s121, %s123
      %p127 = scmp.eq.s32.totalorder %s24, 0
      %p128 = por %p126, %p127
      %p129 = scmp.ne.s32.totalorder %s121, %s123
      %p130 = scmp.eq.s32.totalorder %s29, 1
      %p131 = por %p129, %p130
      %p132 = scmp.ne.s32.totalorder %s123, %s124
      %p133 = scmp.eq.s32.totalorder %s29, 0
      %p134 = por %p132, %p133
      %p135 = scmp.ne.s32.totalorder %s123, %s124
      %p136 = scmp.eq.s32.totalorder %s30, 1
      %p137 = por %p135, %p136
      %p139 = scmp.ne.s32.totalorder %s124, %s138
      %p140 = scmp.eq.s32.totalorder %s30, 0
      %p141 = por %p139, %p140
      %s143 = sadd.s32 %s142, 1
      %p146 = scmp.eq.s32.totalorder %s24, 1
      %p147 = scmp.ne.s32.totalorder %s142, %s144
      %p148 = scmp.eq.s32.totalorder %s24, 0
      %p149 = por %p147, %p148
      %p150 = scmp.ne.s32.totalorder %s142, %s144
      %p151 = scmp.eq.s32.totalorder %s29, 1
      %p152 = por %p150, %p151
      %p153 = scmp.ne.s32.totalorder %s144, %s145
      %p154 = scmp.eq.s32.totalorder %s29, 0
      %p155 = por %p153, %p154
      %p156 = scmp.ne.s32.totalorder %s144, %s145
      %p157 = scmp.eq.s32.totalorder %s30, 1
      %p158 = por %p156, %p157
      %p160 = scmp.ne.s32.totalorder %s145, %s159
      %p161 = scmp.eq.s32.totalorder %s30, 0
      %p162 = por %p160, %p161
      %s164 = sadd.s32 %s163, 1
      %p167 = scmp.eq.s32.totalorder %s24, 1
      %p168 = scmp.ne.s32.totalorder %s163, %s165
      %p169 = scmp.eq.s32.totalorder %s24, 0
      %p170 = por %p168, %p169
      %p171 = scmp.ne.s32.totalorder %s163, %s165
      %p172 = scmp.eq.s32.totalorder %s29, 1
      %p173 = por %p171, %p172
      %p174 = scmp.ne.s32.totalorder %s165, %s166
      %p175 = scmp.eq.s32.totalorder %s29, 0
      %p176 = por %p174, %p175
      %p177 = scmp.ne.s32.totalorder %s165, %s166
      %p178 = scmp.eq.s32.totalorder %s30, 1
      %p179 = por %p177, %p178
      %p181 = scmp.ne.s32.totalorder %s166, %s180
      %p182 = scmp.eq.s32.totalorder %s30, 0
      %p183 = por %p181, %p182
      %s185 = sadd.s32 %s184, 1
      %p188 = scmp.eq.s32.totalorder %s24, 1
      %p189 = scmp.ne.s32.totalorder %s184, %s186
      %p190 = scmp.eq.s32.totalorder %s24, 0
      %p191 = por %p189, %p190
      %p192 = scmp.ne.s32.totalorder %s184, %s186
      %p193 = scmp.eq.s32.totalorder %s29, 1
      %p194 = por %p192, %p193
      %p195 = scmp.ne.s32.totalorder %s186, %s187
      %p196 = scmp.eq.s32.totalorder %s29, 0
      %p197 = por %p195, %p196
      %p198 = scmp.ne.s32.totalorder %s186, %s187
      %p199 = scmp.eq.s32.totalorder %s30, 1
      %p200 = por %p198, %p199
      %p202 = scmp.ne.s32.totalorder %s187, %s201
      %p203 = scmp.eq.s32.totalorder %s30, 0
      %p204 = por %p202, %p203
      %s206 = sadd.s32 %s205, 1
      %p209 = scmp.eq.s32.totalorder %s24, 1
      %p210 = scmp.ne.s32.totalorder %s205, %s207
      %p211 = scmp.eq.s32.totalorder %s24, 0
      %p212 = por %p210, %p211
      %p213 = scmp.ne.s32.totalorder %s205, %s207
      %p214 = scmp.eq.s32.totalorder %s29, 1
      %p215 = por %p213, %p214
      %p216 = scmp.ne.s32.totalorder %s207, %s208
      %p217 = scmp.eq.s32.totalorder %s29, 0
      %p218 = por %p216, %p217
      %p219 = scmp.ne.s32.totalorder %s207, %s208
      %p220 = scmp.eq.s32.totalorder %s30, 1
      %p221 = por %p219, %p220
      %p223 = scmp.ne.s32.totalorder %s208, %s222
      %p224 = scmp.eq.s32.totalorder %s30, 0
      %p225 = por %p223, %p224
      %s226 = ssub.s32 %s24, %s31
      %p227 = scmp.eq.s32.totalorder %s226, 0
      %s229 = sadd.s32 %s228, 1
      %s230 = scalar_select %p227, %s228, %s229
      %p233 = pneg %p227
      %p234 = scmp.eq.s32.totalorder %s24, 1
      %p235 = por %p233, %p234
      %p236 = scmp.ne.s32.totalorder %s228, %s231
      %p237 = scmp.eq.s32.totalorder %s24, 0
      %p238 = por %p236, %p237
      %p239 = scmp.ne.s32.totalorder %s228, %s231
      %p240 = scmp.eq.s32.totalorder %s29, 1
      %p241 = por %p239, %p240
      %p242 = scmp.ne.s32.totalorder %s231, %s232
      %p243 = scmp.eq.s32.totalorder %s29, 0
      %p244 = por %p242, %p243
      %p245 = scmp.ne.s32.totalorder %s231, %s232
      %p246 = scmp.eq.s32.totalorder %s30, 1
      %p247 = por %p245, %p246
      %p249 = scmp.ne.s32.totalorder %s232, %s248
      %p250 = scmp.eq.s32.totalorder %s30, 0
      %p251 = por %p249, %p250
      %p252 = scmp.le.s32.totalorder 1, %s24
      %p253 = scmp.lt.s32.totalorder %s24, 3
      %p254 = pnand %p252, %p253
      %p255 = pneg %p254
      // Predicated region
      $region9: #{tpu_custom_call.1} parent=5 // pred_check
        _
      $region10: #{tpu_custom_call.1} parent=5 // pred_check_branch
        %257 = sbr.rel (%p254) target = $region12
      $region11: #{tpu_custom_call.1} parent=5 // pred_region
        %s258 = ssub.s32 %s24, 1
        // Predicated region
        $region13: #{tpu_custom_call.1} parent=11 // pred_check
          %p259 = pneg %p71
        $region14: #{tpu_custom_call.1} parent=11 // pred_check_branch
          %261 = sbr.rel (%p259) target = $region16
        $region15: #{tpu_custom_call.1} parent=11 // pred_region
          %s263 = ssub.s32 28672, 28672
          %264 = vsyncadd [#allocation6], %s263
          %s265 = sshll.u32 [#allocation5], 4
          %s266 = int_to_ptr.vmem [resolvable:$true] %s265
          %271 = dma.hbm_to_vmem [thread:$0]  %s1, 28672, %s266, [#allocation6], 256, 256, 16
        $region16: #{tpu_custom_call.1} parent=11 // pred_fallthru
          _
        // Predicated region
        $region17: #{tpu_custom_call.1} parent=11 // pred_check
          %p272 = pneg %p92
        $region18: #{tpu_custom_call.1} parent=11 // pred_check_branch
          %274 = sbr.rel (%p272) target = $region20
        $region19: #{tpu_custom_call.1} parent=11 // pred_region
          %s276 = ssub.s32 64, 64
          %277 = vsyncadd [#allocation6], %s276
          %s279 = sshll.u32 [#allocation7], 4
          %s280 = int_to_ptr.vmem [resolvable:$true] %s279
          %282 = dma.hbm_to_vmem [thread:$0]  %s2, 64, %s280, [#allocation6]
        $region20: #{tpu_custom_call.1} parent=11 // pred_fallthru
          _
        // Predicated region
        $region21: #{tpu_custom_call.1} parent=11 // pred_check
          %p283 = pneg %p113
        $region22: #{tpu_custom_call.1} parent=11 // pred_check_branch
          %285 = sbr.rel (%p283) target = $region24
        $region23: #{tpu_custom_call.1} parent=11 // pred_region
          %s287 = ssub.s32 8192, 8192
          %288 = vsyncadd [#allocation9], %s287
          %s289 = sshll.u32 [#allocation8], 4
          %s290 = int_to_ptr.vmem [resolvable:$true] %s289
          %295 = dma.hbm_to_vmem [thread:$0]  %s3, 8192, %s290, [#allocation9], 128, 128, 8
        $region24: #{tpu_custom_call.1} parent=11 // pred_fallthru
          _
        // Predicated region
        $region25: #{tpu_custom_call.1} parent=11 // pred_check
          %p296 = pneg %p134
        $region26: #{tpu_custom_call.1} parent=11 // pred_check_branch
          %298 = sbr.rel (%p296) target = $region28
        $region27: #{tpu_custom_call.1} parent=11 // pred_region
          _
        $region28: #{tpu_custom_call.1} parent=11 // pred_fallthru
          _
        // Predicated region
        $region29: #{tpu_custom_call.1} parent=11 // pred_check
          %p299 = pneg %p155
        $region30: #{tpu_custom_call.1} parent=11 // pred_check_branch
          %301 = sbr.rel (%p299) target = $region32
        $region31: #{tpu_custom_call.1} parent=11 // pred_region
          %s303 = ssub.s32 2048, 2048
          %304 = vsyncadd [#allocation9], %s303
          %s305 = sshll.u32 [#allocation10], 4
          %s306 = int_to_ptr.vmem [resolvable:$true] %s305
          %311 = dma.hbm_to_vmem [thread:$0]  %s5, 2048, %s306, [#allocation9], 64, 64, 4
        $region32: #{tpu_custom_call.1} parent=11 // pred_fallthru
          _
        // Predicated region
        $region33: #{tpu_custom_call.1} parent=11 // pred_check
          %p312 = pneg %p176
        $region34: #{tpu_custom_call.1} parent=11 // pred_check_branch
          %314 = sbr.rel (%p312) target = $region36
        $region35: #{tpu_custom_call.1} parent=11 // pred_region
          _
        $region36: #{tpu_custom_call.1} parent=11 // pred_fallthru
          _
        // Predicated region
        $region37: #{tpu_custom_call.1} parent=11 // pred_check
          %p315 = pneg %p197
        $region38: #{tpu_custom_call.1} parent=11 // pred_check_branch
          %317 = sbr.rel (%p315) target = $region40
        $region39: #{tpu_custom_call.1} parent=11 // pred_region
          %s319 = ssub.s32 1024, 1024
          %320 = vsyncadd [#allocation12], %s319
          %s321 = sshll.u32 [#allocation11], 4
          %s322 = int_to_ptr.vmem [resolvable:$true] %s321
          %327 = dma.hbm_to_vmem [thread:$0]  %s7, 1024, %s322, [#allocation12], 64, 64, 4
        $region40: #{tpu_custom_call.1} parent=11 // pred_fallthru
          _
        // Predicated region
        $region41: #{tpu_custom_call.1} parent=11 // pred_check
          %p328 = pneg %p218
        $region42: #{tpu_custom_call.1} parent=11 // pred_check_branch
          %330 = sbr.rel (%p328) target = $region44
        $region43: #{tpu_custom_call.1} parent=11 // pred_region
          _
        $region44: #{tpu_custom_call.1} parent=11 // pred_fallthru
          _
      $region12: #{tpu_custom_call.1} parent=5 // pred_fallthru
        _
      %p331 = scmp.lt.s32.totalorder %s24, 2
      // Predicated region
      $region45: #{tpu_custom_call.1} parent=5 // pred_check
        %p332 = pneg %p331
      $region46: #{tpu_custom_call.1} parent=5 // pred_check_branch
        %334 = sbr.rel (%p332) target = $region48
      $region47: #{tpu_custom_call.1} parent=5 // pred_region
        // Predicated region
        $region49: #{tpu_custom_call.1} parent=47 // pred_check
          %p335 = pneg %p44
        $region50: #{tpu_custom_call.1} parent=47 // pred_check_branch
          %337 = sbr.rel (%p335) target = $region52
        $region51: #{tpu_custom_call.1} parent=47 // pred_region
          %s338 = sand.u32 %s34, 1
          %s339 = scalar_lea.sflag [#allocation3], %s338
          %s340 = sand.u32 %s34, 1
          %s341 = smul.addr %s340, 448
          %s342 = scalar_lea.vmem [#allocation2], %s341
          %s343 = smul.u32 16, %s24
          %s345 = ssub.s32 7168, 7168
          %346 = vsyncadd %s339, %s345
          %s347 = smul.addr %s343, 7
          %s348 = smul.addr %s347, 64
          %s349 = scalar_lea.hbm %s0, %s348
          %s350 = sshll.u32 %s342, 4
          %s351 = int_to_ptr.vmem [resolvable:$true] %s350
          %356 = dma.hbm_to_vmem [thread:$0]  %s349, 7168, %s351, %s339, 448, 448, 28
        $region52: #{tpu_custom_call.1} parent=47 // pred_fallthru
          _
      $region48: #{tpu_custom_call.1} parent=5 // pred_fallthru
        _
      %p357 = scmp.le.s32.totalorder 1, %s24
      %p358 = scmp.lt.s32.totalorder %s24, 3
      %p359 = pnand %p357, %p358
      %p360 = pneg %p359
      // Predicated region
      $region53: #{tpu_custom_call.1} parent=5 // pred_check
        _
      $region54: #{tpu_custom_call.1} parent=5 // pred_check_branch
        %362 = sbr.rel (%p359) target = $region56
      $region55: #{tpu_custom_call.1} parent=5 // pred_region
        %s363 = ssub.s32 %s24, 1
        %s364 = sand.u32 %s37, 1
        %s365 = scalar_lea.sflag [#allocation3], %s364
        %s366 = sand.u32 %s37, 1
        %s367 = smul.addr %s366, 448
        %s368 = scalar_lea.vmem [#allocation2], %s367
        // Predicated region
        $region57: #{tpu_custom_call.1} parent=55 // pred_check
          %p369 = pneg %p50
        $region58: #{tpu_custom_call.1} parent=55 // pred_check_branch
          %371 = sbr.rel (%p369) target = $region60
        $region59: #{tpu_custom_call.1} parent=55 // pred_region
          %372 = dma.done %s365, 7168
        $region60: #{tpu_custom_call.1} parent=55 // pred_fallthru
          _
        // Predicated region
        $region61: #{tpu_custom_call.1} parent=55 // pred_check
          %p373 = pneg %p71
        $region62: #{tpu_custom_call.1} parent=55 // pred_check_branch
          %375 = sbr.rel (%p373) target = $region64
        $region63: #{tpu_custom_call.1} parent=55 // pred_region
          %376 = dma.done [#allocation6], 28672
        $region64: #{tpu_custom_call.1} parent=55 // pred_fallthru
          _
        // Predicated region
        $region65: #{tpu_custom_call.1} parent=55 // pred_check
          %p377 = pneg %p92
        $region66: #{tpu_custom_call.1} parent=55 // pred_check_branch
          %379 = sbr.rel (%p377) target = $region68
        $region67: #{tpu_custom_call.1} parent=55 // pred_region
          %380 = dma.done [#allocation6], 64
        $region68: #{tpu_custom_call.1} parent=55 // pred_fallthru
          _
        // Predicated region
        $region69: #{tpu_custom_call.1} parent=55 // pred_check
          %p381 = pneg %p113
        $region70: #{tpu_custom_call.1} parent=55 // pred_check_branch
          %383 = sbr.rel (%p381) target = $region72
        $region71: #{tpu_custom_call.1} parent=55 // pred_region
          %384 = dma.done [#allocation9], 8192
        $region72: #{tpu_custom_call.1} parent=55 // pred_fallthru
          _
        // Predicated region
        $region73: #{tpu_custom_call.1} parent=55 // pred_check
          %p385 = pneg %p155
        $region74: #{tpu_custom_call.1} parent=55 // pred_check_branch
          %387 = sbr.rel (%p385) target = $region76
        $region75: #{tpu_custom_call.1} parent=55 // pred_region
          %388 = dma.done [#allocation9], 2048
        $region76: #{tpu_custom_call.1} parent=55 // pred_fallthru
          _
        // Predicated region
        $region77: #{tpu_custom_call.1} parent=55 // pred_check
          %p389 = pneg %p197
        $region78: #{tpu_custom_call.1} parent=55 // pred_check_branch
          %391 = sbr.rel (%p389) target = $region80
        $region79: #{tpu_custom_call.1} parent=55 // pred_region
          %392 = dma.done [#allocation12], 1024
        $region80: #{tpu_custom_call.1} parent=55 // pred_fallthru
          _
        %s393 = sand.u32 %s37, 1
        %s394 = scalar_lea.sflag [#allocation3], %s393
        %s395 = sand.u32 %s37, 1
        %s396 = smul.addr %s395, 448
        %s397 = scalar_lea.vmem [#allocation2], %s396
        %p398 = pneg %p50
        %p399 = pneg %p47
        %p400 = pneg %p71
        %p401 = pneg %p68
        %p402 = pneg %p92
        %p403 = pneg %p89
        %p404 = pneg %p113
        %p405 = pneg %p110
        %p406 = pneg %p134
        %p407 = pneg %p131
        %p408 = pneg %p155
        %p409 = pneg %p152
        %p410 = pneg %p176
        %p411 = pneg %p173
        %p412 = pneg %p197
        %p413 = pneg %p194
        %p414 = pneg %p218
        %p415 = pneg %p215
        %p416 = pneg %p244
        %p417 = pneg %p241
        %s418 = sand.u32 %s231, 1
        %s419 = scalar_lea.sflag [#allocation4], %s418
        %s420 = sand.u32 %s231, 1
        %s421 = smul.addr %s420, 128
        %s422 = scalar_lea.vmem [#allocation13], %s421
        %s423 = smul.u32 16, %s29
        %s424 = smul.u32 16, %s29
        %v426 = vld [vmem:[%s368] sm:$0xff]
        %v427 = vld [vmem:[%s368 + $0x8] sm:$0xff]
        %v428 = vld [vmem:[%s368 + $0x10] sm:$0xff]
        %v429 = vld [vmem:[%s368 + $0x18] sm:$0xf]
        %v430 = vld [vmem:[%s368 + $0x1c] sm:$0xff]
        %v431 = vld [vmem:[%s368 + $0x24] sm:$0xff]
        %v432 = vld [vmem:[%s368 + $0x2c] sm:$0xff]
        %v433 = vld [vmem:[%s368 + $0x34] sm:$0xf]
        %v434 = vld [vmem:[%s368 + $0x38] sm:$0xff]
        %v435 = vld [vmem:[%s368 + $0x40] sm:$0xff]
        %v436 = vld [vmem:[%s368 + $0x48] sm:$0xff]
        %v437 = vld [vmem:[%s368 + $0x50] sm:$0xf]
        %v438 = vld [vmem:[%s368 + $0x54] sm:$0xff]
        %v439 = vld [vmem:[%s368 + $0x5c] sm:$0xff]
        %v440 = vld [vmem:[%s368 + $0x64] sm:$0xff]
        %v441 = vld [vmem:[%s368 + $0x6c] sm:$0xf]
        %v442 = vld [vmem:[%s368 + $0x70] sm:$0xff]
        %v443 = vld [vmem:[%s368 + $0x78] sm:$0xff]
        %v444 = vld [vmem:[%s368 + $0x80] sm:$0xff]
        %v445 = vld [vmem:[%s368 + $0x88] sm:$0xf]
        %v446 = vld [vmem:[%s368 + $0x8c] sm:$0xff]
        %v447 = vld [vmem:[%s368 + $0x94] sm:$0xff]
        %v448 = vld [vmem:[%s368 + $0x9c] sm:$0xff]
        %v449 = vld [vmem:[%s368 + $0xa4] sm:$0xf]
        %v450 = vld [vmem:[%s368 + $0xa8] sm:$0xff]
        %v451 = vld [vmem:[%s368 + $0xb0] sm:$0xff]
        %v452 = vld [vmem:[%s368 + $0xb8] sm:$0xff]
        %v453 = vld [vmem:[%s368 + $0xc0] sm:$0xf]
        %v454 = vld [vmem:[%s368 + $0xc4] sm:$0xff]
        %v455 = vld [vmem:[%s368 + $0xcc] sm:$0xff]
        %v456 = vld [vmem:[%s368 + $0xd4] sm:$0xff]
        %v457 = vld [vmem:[%s368 + $0xdc] sm:$0xf]
        %v458 = vld [vmem:[%s368 + $0xe0] sm:$0xff]
        %v459 = vld [vmem:[%s368 + $0xe8] sm:$0xff]
        %v460 = vld [vmem:[%s368 + $0xf0] sm:$0xff]
        %v461 = vld [vmem:[%s368 + $0xf8] sm:$0xf]
        %v462 = vld [vmem:[%s368 + $0xfc] sm:$0xff]
        %v463 = vld [vmem:[%s368 + $0x104] sm:$0xff]
        %v464 = vld [vmem:[%s368 + $0x10c] sm:$0xff]
        %v465 = vld [vmem:[%s368 + $0x114] sm:$0xf]
        %v466 = vld [vmem:[%s368 + $0x118] sm:$0xff]
        %v467 = vld [vmem:[%s368 + $0x120] sm:$0xff]
        %v468 = vld [vmem:[%s368 + $0x128] sm:$0xff]
        %v469 = vld [vmem:[%s368 + $0x130] sm:$0xf]
        %v470 = vld [vmem:[%s368 + $0x134] sm:$0xff]
        %v471 = vld [vmem:[%s368 + $0x13c] sm:$0xff]
        %v472 = vld [vmem:[%s368 + $0x144] sm:$0xff]
        %v473 = vld [vmem:[%s368 + $0x14c] sm:$0xf]
        %v474 = vld [vmem:[%s368 + $0x150] sm:$0xff]
        %v475 = vld [vmem:[%s368 + $0x158] sm:$0xff]
        %v476 = vld [vmem:[%s368 + $0x160] sm:$0xff]
        %v477 = vld [vmem:[%s368 + $0x168] sm:$0xf]
        %v478 = vld [vmem:[%s368 + $0x16c] sm:$0xff]
        %v479 = vld [vmem:[%s368 + $0x174] sm:$0xff]
        %v480 = vld [vmem:[%s368 + $0x17c] sm:$0xff]
        %v481 = vld [vmem:[%s368 + $0x184] sm:$0xf]
        %v482 = vld [vmem:[%s368 + $0x188] sm:$0xff]
        %v483 = vld [vmem:[%s368 + $0x190] sm:$0xff]
        %v484 = vld [vmem:[%s368 + $0x198] sm:$0xff]
        %v485 = vld [vmem:[%s368 + $0x1a0] sm:$0xf]
        %v486 = vld [vmem:[%s368 + $0x1a4] sm:$0xff]
        %v487 = vld [vmem:[%s368 + $0x1ac] sm:$0xff]
        %v488 = vld [vmem:[%s368 + $0x1b4] sm:$0xff]
        %v489 = vld [vmem:[%s368 + $0x1bc] sm:$0xf]
        %v490 = vld [vmem:[#allocation5] sm:$0xff]
        %v491 = vld [vmem:[#allocation5 + $0x8] sm:$0xff]
        %v492 = vld [vmem:[#allocation5 + $0x10] sm:$0xff]
        %v493 = vld [vmem:[#allocation5 + $0x18] sm:$0xff]
        %v494 = vld [vmem:[#allocation5 + $0x20] sm:$0xff]
        %v495 = vld [vmem:[#allocation5 + $0x28] sm:$0xff]
        %v496 = vld [vmem:[#allocation5 + $0x30] sm:$0xff]
        %v497 = vld [vmem:[#allocation5 + $0x38] sm:$0xff]
        %v498 = vld [vmem:[#allocation5 + $0x40] sm:$0xff]
        %v499 = vld [vmem:[#allocation5 + $0x48] sm:$0xff]
        %v500 = vld [vmem:[#allocation5 + $0x50] sm:$0xff]
        %v501 = vld [vmem:[#allocation5 + $0x58] sm:$0xff]
        %v502 = vld [vmem:[#allocation5 + $0x60] sm:$0xff]
        %v503 = vld [vmem:[#allocation5 + $0x68] sm:$0xff]
        %v504 = vld [vmem:[#allocation5 + $0x70] sm:$0xff]
        %v505 = vld [vmem:[#allocation5 + $0x78] sm:$0xff]
        %v506 = vld [vmem:[#allocation5 + $0x80] sm:$0xff]
        %v507 = vld [vmem:[#allocation5 + $0x88] sm:$0xff]
        %v508 = vld [vmem:[#allocation5 + $0x90] sm:$0xff]
        %v509 = vld [vmem:[#allocation5 + $0x98] sm:$0xff]
        %v510 = vld [vmem:[#allocation5 + $0xa0] sm:$0xff]
        %v511 = vld [vmem:[#allocation5 + $0xa8] sm:$0xff]
        %v512 = vld [vmem:[#allocation5 + $0xb0] sm:$0xff]
        %v513 = vld [vmem:[#allocation5 + $0xb8] sm:$0xff]
        %v514 = vld [vmem:[#allocation5 + $0xc0] sm:$0xff]
        %v515 = vld [vmem:[#allocation5 + $0xc8] sm:$0xff]
        %v516 = vld [vmem:[#allocation5 + $0xd0] sm:$0xff]
        %v517 = vld [vmem:[#allocation5 + $0xd8] sm:$0xff]
        %v518 = vld [vmem:[#allocation5 + $0xe0] sm:$0xff]
        %v519 = vld [vmem:[#allocation5 + $0xe8] sm:$0xff]
        %v520 = vld [vmem:[#allocation5 + $0xf0] sm:$0xff]
        %v521 = vld [vmem:[#allocation5 + $0xf8] sm:$0xff]
        %v522 = vld [vmem:[#allocation5 + $0x100] sm:$0xff]
        %v523 = vld [vmem:[#allocation5 + $0x108] sm:$0xff]
        %v524 = vld [vmem:[#allocation5 + $0x110] sm:$0xff]
        %v525 = vld [vmem:[#allocation5 + $0x118] sm:$0xff]
        %v526 = vld [vmem:[#allocation5 + $0x120] sm:$0xff]
        %v527 = vld [vmem:[#allocation5 + $0x128] sm:$0xff]
        %v528 = vld [vmem:[#allocation5 + $0x130] sm:$0xff]
        %v529 = vld [vmem:[#allocation5 + $0x138] sm:$0xff]
        %v530 = vld [vmem:[#allocation5 + $0x140] sm:$0xff]
        %v531 = vld [vmem:[#allocation5 + $0x148] sm:$0xff]
        %v532 = vld [vmem:[#allocation5 + $0x150] sm:$0xff]
        %v533 = vld [vmem:[#allocation5 + $0x158] sm:$0xff]
        %v534 = vld [vmem:[#allocation5 + $0x160] sm:$0xff]
        %v535 = vld [vmem:[#allocation5 + $0x168] sm:$0xff]
        %v536 = vld [vmem:[#allocation5 + $0x170] sm:$0xff]
        %v537 = vld [vmem:[#allocation5 + $0x178] sm:$0xff]
        %v538 = vld [vmem:[#allocation5 + $0x180] sm:$0xff]
        %v539 = vld [vmem:[#allocation5 + $0x188] sm:$0xff]
        %v540 = vld [vmem:[#allocation5 + $0x190] sm:$0xff]
        %v541 = vld [vmem:[#allocation5 + $0x198] sm:$0xff]
        %v542 = vld [vmem:[#allocation5 + $0x1a0] sm:$0xff]
        %v543 = vld [vmem:[#allocation5 + $0x1a8] sm:$0xff]
        %v544 = vld [vmem:[#allocation5 + $0x1b0] sm:$0xff]
        %v545 = vld [vmem:[#allocation5 + $0x1b8] sm:$0xff]
        %v546 = vld [vmem:[#allocation5 + $0x1c0] sm:$0xff]
        %v547 = vld [vmem:[#allocation5 + $0x1c8] sm:$0xff]
        %v548 = vld [vmem:[#allocation5 + $0x1d0] sm:$0xff]
        %v549 = vld [vmem:[#allocation5 + $0x1d8] sm:$0xff]
        %v550 = vld [vmem:[#allocation5 + $0x1e0] sm:$0xff]
        %v551 = vld [vmem:[#allocation5 + $0x1e8] sm:$0xff]
        %v552 = vld [vmem:[#allocation5 + $0x1f0] sm:$0xff]
        %v553 = vld [vmem:[#allocation5 + $0x1f8] sm:$0xff]
        %v554 = vld [vmem:[#allocation5 + $0x200] sm:$0xff]
        %v555 = vld [vmem:[#allocation5 + $0x208] sm:$0xff]
        %v556 = vld [vmem:[#allocation5 + $0x210] sm:$0xff]
        %v557 = vld [vmem:[#allocation5 + $0x218] sm:$0xff]
        %v558 = vld [vmem:[#allocation5 + $0x220] sm:$0xff]
        %v559 = vld [vmem:[#allocation5 + $0x228] sm:$0xff]
        %v560 = vld [vmem:[#allocation5 + $0x230] sm:$0xff]
        %v561 = vld [vmem:[#allocation5 + $0x238] sm:$0xff]
        %v562 = vld [vmem:[#allocation5 + $0x240] sm:$0xff]
        %v563 = vld [vmem:[#allocation5 + $0x248] sm:$0xff]
        %v564 = vld [vmem:[#allocation5 + $0x250] sm:$0xff]
        %v565 = vld [vmem:[#allocation5 + $0x258] sm:$0xff]
        %v566 = vld [vmem:[#allocation5 + $0x260] sm:$0xff]
        %v567 = vld [vmem:[#allocation5 + $0x268] sm:$0xff]
        %v568 = vld [vmem:[#allocation5 + $0x270] sm:$0xff]
        %v569 = vld [vmem:[#allocation5 + $0x278] sm:$0xff]
        %v570 = vld [vmem:[#allocation5 + $0x280] sm:$0xff]
        %v571 = vld [vmem:[#allocation5 + $0x288] sm:$0xff]
        %v572 = vld [vmem:[#allocation5 + $0x290] sm:$0xff]
        %v573 = vld [vmem:[#allocation5 + $0x298] sm:$0xff]
        %v574 = vld [vmem:[#allocation5 + $0x2a0] sm:$0xff]
        %v575 = vld [vmem:[#allocation5 + $0x2a8] sm:$0xff]
        %v576 = vld [vmem:[#allocation5 + $0x2b0] sm:$0xff]
        %v577 = vld [vmem:[#allocation5 + $0x2b8] sm:$0xff]
        %v578 = vld [vmem:[#allocation5 + $0x2c0] sm:$0xff]
        %v579 = vld [vmem:[#allocation5 + $0x2c8] sm:$0xff]
        %v580 = vld [vmem:[#allocation5 + $0x2d0] sm:$0xff]
        %v581 = vld [vmem:[#allocation5 + $0x2d8] sm:$0xff]
        %v582 = vld [vmem:[#allocation5 + $0x2e0] sm:$0xff]
        %v583 = vld [vmem:[#allocation5 + $0x2e8] sm:$0xff]
        %v584 = vld [vmem:[#allocation5 + $0x2f0] sm:$0xff]
        %v585 = vld [vmem:[#allocation5 + $0x2f8] sm:$0xff]
        %v586 = vld [vmem:[#allocation5 + $0x300] sm:$0xff]
        %v587 = vld [vmem:[#allocation5 + $0x308] sm:$0xff]
        %v588 = vld [vmem:[#allocation5 + $0x310] sm:$0xff]
        %v589 = vld [vmem:[#allocation5 + $0x318] sm:$0xff]
        %v590 = vld [vmem:[#allocation5 + $0x320] sm:$0xff]
        %v591 = vld [vmem:[#allocation5 + $0x328] sm:$0xff]
        %v592 = vld [vmem:[#allocation5 + $0x330] sm:$0xff]
        %v593 = vld [vmem:[#allocation5 + $0x338] sm:$0xff]
        %v594 = vld [vmem:[#allocation5 + $0x340] sm:$0xff]
        %v595 = vld [vmem:[#allocation5 + $0x348] sm:$0xff]
        %v596 = vld [vmem:[#allocation5 + $0x350] sm:$0xff]
        %v597 = vld [vmem:[#allocation5 + $0x358] sm:$0xff]
        %v598 = vld [vmem:[#allocation5 + $0x360] sm:$0xff]
        %v599 = vld [vmem:[#allocation5 + $0x368] sm:$0xff]
        %v600 = vld [vmem:[#allocation5 + $0x370] sm:$0xff]
        %v601 = vld [vmem:[#allocation5 + $0x378] sm:$0xff]
        %v602 = vld [vmem:[#allocation5 + $0x380] sm:$0xff]
        %v603 = vld [vmem:[#allocation5 + $0x388] sm:$0xff]
        %v604 = vld [vmem:[#allocation5 + $0x390] sm:$0xff]
        %v605 = vld [vmem:[#allocation5 + $0x398] sm:$0xff]
        %v606 = vld [vmem:[#allocation5 + $0x3a0] sm:$0xff]
        %v607 = vld [vmem:[#allocation5 + $0x3a8] sm:$0xff]
        %v608 = vld [vmem:[#allocation5 + $0x3b0] sm:$0xff]
        %v609 = vld [vmem:[#allocation5 + $0x3b8] sm:$0xff]
        %v610 = vld [vmem:[#allocation5 + $0x3c0] sm:$0xff]
        %v611 = vld [vmem:[#allocation5 + $0x3c8] sm:$0xff]
        %v612 = vld [vmem:[#allocation5 + $0x3d0] sm:$0xff]
        %v613 = vld [vmem:[#allocation5 + $0x3d8] sm:$0xff]
        %v614 = vld [vmem:[#allocation5 + $0x3e0] sm:$0xff]
        %v615 = vld [vmem:[#allocation5 + $0x3e8] sm:$0xff]
        %v616 = vld [vmem:[#allocation5 + $0x3f0] sm:$0xff]
        %v617 = vld [vmem:[#allocation5 + $0x3f8] sm:$0xff]
        %v618 = vld [vmem:[#allocation5 + $0x400] sm:$0xff]
        %v619 = vld [vmem:[#allocation5 + $0x408] sm:$0xff]
        %v620 = vld [vmem:[#allocation5 + $0x410] sm:$0xff]
        %v621 = vld [vmem:[#allocation5 + $0x418] sm:$0xff]
        %v622 = vld [vmem:[#allocation5 + $0x420] sm:$0xff]
        %v623 = vld [vmem:[#allocation5 + $0x428] sm:$0xff]
        %v624 = vld [vmem:[#allocation5 + $0x430] sm:$0xff]
        %v625 = vld [vmem:[#allocation5 + $0x438] sm:$0xff]
        %v626 = vld [vmem:[#allocation5 + $0x440] sm:$0xff]
        %v627 = vld [vmem:[#allocation5 + $0x448] sm:$0xff]
        %v628 = vld [vmem:[#allocation5 + $0x450] sm:$0xff]
        %v629 = vld [vmem:[#allocation5 + $0x458] sm:$0xff]
        %v630 = vld [vmem:[#allocation5 + $0x460] sm:$0xff]
        %v631 = vld [vmem:[#allocation5 + $0x468] sm:$0xff]
        %v632 = vld [vmem:[#allocation5 + $0x470] sm:$0xff]
        %v633 = vld [vmem:[#allocation5 + $0x478] sm:$0xff]
        %v634 = vld [vmem:[#allocation5 + $0x480] sm:$0xff]
        %v635 = vld [vmem:[#allocation5 + $0x488] sm:$0xff]
        %v636 = vld [vmem:[#allocation5 + $0x490] sm:$0xff]
        %v637 = vld [vmem:[#allocation5 + $0x498] sm:$0xff]
        %v638 = vld [vmem:[#allocation5 + $0x4a0] sm:$0xff]
        %v639 = vld [vmem:[#allocation5 + $0x4a8] sm:$0xff]
        %v640 = vld [vmem:[#allocation5 + $0x4b0] sm:$0xff]
        %v641 = vld [vmem:[#allocation5 + $0x4b8] sm:$0xff]
        %v642 = vld [vmem:[#allocation5 + $0x4c0] sm:$0xff]
        %v643 = vld [vmem:[#allocation5 + $0x4c8] sm:$0xff]
        %v644 = vld [vmem:[#allocation5 + $0x4d0] sm:$0xff]
        %v645 = vld [vmem:[#allocation5 + $0x4d8] sm:$0xff]
        %v646 = vld [vmem:[#allocation5 + $0x4e0] sm:$0xff]
        %v647 = vld [vmem:[#allocation5 + $0x4e8] sm:$0xff]
        %v648 = vld [vmem:[#allocation5 + $0x4f0] sm:$0xff]
        %v649 = vld [vmem:[#allocation5 + $0x4f8] sm:$0xff]
        %v650 = vld [vmem:[#allocation5 + $0x500] sm:$0xff]
        %v651 = vld [vmem:[#allocation5 + $0x508] sm:$0xff]
        %v652 = vld [vmem:[#allocation5 + $0x510] sm:$0xff]
        %v653 = vld [vmem:[#allocation5 + $0x518] sm:$0xff]
        %v654 = vld [vmem:[#allocation5 + $0x520] sm:$0xff]
        %v655 = vld [vmem:[#allocation5 + $0x528] sm:$0xff]
        %v656 = vld [vmem:[#allocation5 + $0x530] sm:$0xff]
        %v657 = vld [vmem:[#allocation5 + $0x538] sm:$0xff]
        %v658 = vld [vmem:[#allocation5 + $0x540] sm:$0xff]
        %v659 = vld [vmem:[#allocation5 + $0x548] sm:$0xff]
        %v660 = vld [vmem:[#allocation5 + $0x550] sm:$0xff]
        %v661 = vld [vmem:[#allocation5 + $0x558] sm:$0xff]
        %v662 = vld [vmem:[#allocation5 + $0x560] sm:$0xff]
        %v663 = vld [vmem:[#allocation5 + $0x568] sm:$0xff]
        %v664 = vld [vmem:[#allocation5 + $0x570] sm:$0xff]
        %v665 = vld [vmem:[#allocation5 + $0x578] sm:$0xff]
        %v666 = vld [vmem:[#allocation5 + $0x580] sm:$0xff]
        %v667 = vld [vmem:[#allocation5 + $0x588] sm:$0xff]
        %v668 = vld [vmem:[#allocation5 + $0x590] sm:$0xff]
        %v669 = vld [vmem:[#allocation5 + $0x598] sm:$0xff]
        %v670 = vld [vmem:[#allocation5 + $0x5a0] sm:$0xff]
        %v671 = vld [vmem:[#allocation5 + $0x5a8] sm:$0xff]
        %v672 = vld [vmem:[#allocation5 + $0x5b0] sm:$0xff]
        %v673 = vld [vmem:[#allocation5 + $0x5b8] sm:$0xff]
        %v674 = vld [vmem:[#allocation5 + $0x5c0] sm:$0xff]
        %v675 = vld [vmem:[#allocation5 + $0x5c8] sm:$0xff]
        %v676 = vld [vmem:[#allocation5 + $0x5d0] sm:$0xff]
        %v677 = vld [vmem:[#allocation5 + $0x5d8] sm:$0xff]
        %v678 = vld [vmem:[#allocation5 + $0x5e0] sm:$0xff]
        %v679 = vld [vmem:[#allocation5 + $0x5e8] sm:$0xff]
        %v680 = vld [vmem:[#allocation5 + $0x5f0] sm:$0xff]
        %v681 = vld [vmem:[#allocation5 + $0x5f8] sm:$0xff]
        %v682 = vld [vmem:[#allocation5 + $0x600] sm:$0xff]
        %v683 = vld [vmem:[#allocation5 + $0x608] sm:$0xff]
        %v684 = vld [vmem:[#allocation5 + $0x610] sm:$0xff]
        %v685 = vld [vmem:[#allocation5 + $0x618] sm:$0xff]
        %v686 = vld [vmem:[#allocation5 + $0x620] sm:$0xff]
        %v687 = vld [vmem:[#allocation5 + $0x628] sm:$0xff]
        %v688 = vld [vmem:[#allocation5 + $0x630] sm:$0xff]
        %v689 = vld [vmem:[#allocation5 + $0x638] sm:$0xff]
        %v690 = vld [vmem:[#allocation5 + $0x640] sm:$0xff]
        %v691 = vld [vmem:[#allocation5 + $0x648] sm:$0xff]
        %v692 = vld [vmem:[#allocation5 + $0x650] sm:$0xff]
        %v693 = vld [vmem:[#allocation5 + $0x658] sm:$0xff]
        %v694 = vld [vmem:[#allocation5 + $0x660] sm:$0xff]
        %v695 = vld [vmem:[#allocation5 + $0x668] sm:$0xff]
        %v696 = vld [vmem:[#allocation5 + $0x670] sm:$0xff]
        %v697 = vld [vmem:[#allocation5 + $0x678] sm:$0xff]
        %v698 = vld [vmem:[#allocation5 + $0x680] sm:$0xff]
        %v699 = vld [vmem:[#allocation5 + $0x688] sm:$0xff]
        %v700 = vld [vmem:[#allocation5 + $0x690] sm:$0xff]
        %v701 = vld [vmem:[#allocation5 + $0x698] sm:$0xff]
        %v702 = vld [vmem:[#allocation5 + $0x6a0] sm:$0xff]
        %v703 = vld [vmem:[#allocation5 + $0x6a8] sm:$0xff]
        %v704 = vld [vmem:[#allocation5 + $0x6b0] sm:$0xff]
        %v705 = vld [vmem:[#allocation5 + $0x6b8] sm:$0xff]
        %v706 = vld [vmem:[#allocation5 + $0x6c0] sm:$0xff]
        %v707 = vld [vmem:[#allocation5 + $0x6c8] sm:$0xff]
        %v708 = vld [vmem:[#allocation5 + $0x6d0] sm:$0xff]
        %v709 = vld [vmem:[#allocation5 + $0x6d8] sm:$0xff]
        %v710 = vld [vmem:[#allocation5 + $0x6e0] sm:$0xff]
        %v711 = vld [vmem:[#allocation5 + $0x6e8] sm:$0xff]
        %v712 = vld [vmem:[#allocation5 + $0x6f0] sm:$0xff]
        %v713 = vld [vmem:[#allocation5 + $0x6f8] sm:$0xff]
        %v714 = vld [vmem:[#allocation7] sm:$0xf]
        %v716 = vlaneseq
        %v717 = vshrl.u32 %v716, 7
        %v718 = vsub.s32 0, %v717
        %v719 = vrot.slane %v714, %v718
        %v720 = vlaneseq
        %v721 = vshrl.u32 %v720, 7
        %v722 = vsub.s32 1, %v721
        %v723 = vrot.slane %v714, %v722
        %v724 = vlaneseq
        %v725 = vshrl.u32 %v724, 7
        %v726 = vsub.s32 2, %v725
        %v727 = vrot.slane %v714, %v726
        %v728 = vlaneseq
        %v729 = vshrl.u32 %v728, 7
        %v730 = vsub.s32 3, %v729
        %v731 = vrot.slane %v714, %v730
        %v800 = vunpack.c.l.b16 %v426
        %v801 = vunpack.c.h.b16 %v426
        %v802 = vunpack.c.l.b16 %v427
        %v803 = vunpack.c.h.b16 %v427
        %v804 = vunpack.c.l.b16 %v428
        %v805 = vunpack.c.h.b16 %v428
        %v806 = vunpack.c.l.b16 %v429
        %v807 = vunpack.c.l.b16 %v430
        %v808 = vunpack.c.h.b16 %v430
        %v809 = vunpack.c.l.b16 %v431
        %v810 = vunpack.c.h.b16 %v431
        %v811 = vunpack.c.l.b16 %v432
        %v812 = vunpack.c.h.b16 %v432
        %v813 = vunpack.c.l.b16 %v433
        %v814 = vunpack.c.l.b16 %v434
        %v815 = vunpack.c.h.b16 %v434
        %v816 = vunpack.c.l.b16 %v435
        %v817 = vunpack.c.h.b16 %v435
        %v818 = vunpack.c.l.b16 %v436
        %v819 = vunpack.c.h.b16 %v436
        %v820 = vunpack.c.l.b16 %v437
        %v821 = vunpack.c.l.b16 %v438
        %v822 = vunpack.c.h.b16 %v438
        %v823 = vunpack.c.l.b16 %v439
        %v824 = vunpack.c.h.b16 %v439
        %v825 = vunpack.c.l.b16 %v440
        %v826 = vunpack.c.h.b16 %v440
        %v827 = vunpack.c.l.b16 %v441
        %v828 = vunpack.c.l.b16 %v442
        %v829 = vunpack.c.h.b16 %v442
        %v830 = vunpack.c.l.b16 %v443
        %v831 = vunpack.c.h.b16 %v443
        %v832 = vunpack.c.l.b16 %v444
        %v833 = vunpack.c.h.b16 %v444
        %v834 = vunpack.c.l.b16 %v445
        %v835 = vunpack.c.l.b16 %v446
        %v836 = vunpack.c.h.b16 %v446
        %v837 = vunpack.c.l.b16 %v447
        %v838 = vunpack.c.h.b16 %v447
        %v839 = vunpack.c.l.b16 %v448
        %v840 = vunpack.c.h.b16 %v448
        %v841 = vunpack.c.l.b16 %v449
        %v842 = vunpack.c.l.b16 %v450
        %v843 = vunpack.c.h.b16 %v450
        %v844 = vunpack.c.l.b16 %v451
        %v845 = vunpack.c.h.b16 %v451
        %v846 = vunpack.c.l.b16 %v452
        %v847 = vunpack.c.h.b16 %v452
        %v848 = vunpack.c.l.b16 %v453
        %v849 = vunpack.c.l.b16 %v454
        %v850 = vunpack.c.h.b16 %v454
        %v851 = vunpack.c.l.b16 %v455
        %v852 = vunpack.c.h.b16 %v455
        %v853 = vunpack.c.l.b16 %v456
        %v854 = vunpack.c.h.b16 %v456
        %v855 = vunpack.c.l.b16 %v457
        %v856 = vunpack.c.l.b16 %v458
        %v857 = vunpack.c.h.b16 %v458
        %v858 = vunpack.c.l.b16 %v459
        %v859 = vunpack.c.h.b16 %v459
        %v860 = vunpack.c.l.b16 %v460
        %v861 = vunpack.c.h.b16 %v460
        %v862 = vunpack.c.l.b16 %v461
        %v863 = vunpack.c.l.b16 %v462
        %v864 = vunpack.c.h.b16 %v462
        %v865 = vunpack.c.l.b16 %v463
        %v866 = vunpack.c.h.b16 %v463
        %v867 = vunpack.c.l.b16 %v464
        %v868 = vunpack.c.h.b16 %v464
        %v869 = vunpack.c.l.b16 %v465
        %v870 = vunpack.c.l.b16 %v466
        %v871 = vunpack.c.h.b16 %v466
        %v872 = vunpack.c.l.b16 %v467
        %v873 = vunpack.c.h.b16 %v467
        %v874 = vunpack.c.l.b16 %v468
        %v875 = vunpack.c.h.b16 %v468
        %v876 = vunpack.c.l.b16 %v469
        %v877 = vunpack.c.l.b16 %v470
        %v878 = vunpack.c.h.b16 %v470
        %v879 = vunpack.c.l.b16 %v471
        %v880 = vunpack.c.h.b16 %v471
        %v881 = vunpack.c.l.b16 %v472
        %v882 = vunpack.c.h.b16 %v472
        %v883 = vunpack.c.l.b16 %v473
        %v884 = vunpack.c.l.b16 %v474
        %v885 = vunpack.c.h.b16 %v474
        %v886 = vunpack.c.l.b16 %v475
        %v887 = vunpack.c.h.b16 %v475
        %v888 = vunpack.c.l.b16 %v476
        %v889 = vunpack.c.h.b16 %v476
        %v890 = vunpack.c.l.b16 %v477
        %v891 = vunpack.c.l.b16 %v478
        %v892 = vunpack.c.h.b16 %v478
        %v893 = vunpack.c.l.b16 %v479
        %v894 = vunpack.c.h.b16 %v479
        %v895 = vunpack.c.l.b16 %v480
        %v896 = vunpack.c.h.b16 %v480
        %v897 = vunpack.c.l.b16 %v481
        %v898 = vunpack.c.l.b16 %v482
        %v899 = vunpack.c.h.b16 %v482
        %v900 = vunpack.c.l.b16 %v483
        %v901 = vunpack.c.h.b16 %v483
        %v902 = vunpack.c.l.b16 %v484
        %v903 = vunpack.c.h.b16 %v484
        %v904 = vunpack.c.l.b16 %v485
        %v905 = vunpack.c.l.b16 %v486
        %v906 = vunpack.c.h.b16 %v486
        %v907 = vunpack.c.l.b16 %v487
        %v908 = vunpack.c.h.b16 %v487
        %v909 = vunpack.c.l.b16 %v488
        %v910 = vunpack.c.h.b16 %v488
        %v911 = vunpack.c.l.b16 %v489
        %v912 = vpack.c.b16 %v807, %v800
        %v913 = vpack.c.b16 %v808, %v801
        %v914 = vpack.c.b16 %v809, %v802
        %v915 = vpack.c.b16 %v810, %v803
        %v916 = vpack.c.b16 %v811, %v804
        %v917 = vpack.c.b16 %v812, %v805
        %v918 = vpack.c.b16 %v813, %v806
        %v919 = vpack.c.b16 %v821, %v814
        %v920 = vpack.c.b16 %v822, %v815
        %v921 = vpack.c.b16 %v823, %v816
        %v922 = vpack.c.b16 %v824, %v817
        %v923 = vpack.c.b16 %v825, %v818
        %v924 = vpack.c.b16 %v826, %v819
        %v925 = vpack.c.b16 %v827, %v820
        %v926 = vpack.c.b16 %v835, %v828
        %v927 = vpack.c.b16 %v836, %v829
        %v928 = vpack.c.b16 %v837, %v830
        %v929 = vpack.c.b16 %v838, %v831
        %v930 = vpack.c.b16 %v839, %v832
        %v931 = vpack.c.b16 %v840, %v833
        %v932 = vpack.c.b16 %v841, %v834
        %v933 = vpack.c.b16 %v849, %v842
        %v934 = vpack.c.b16 %v850, %v843
        %v935 = vpack.c.b16 %v851, %v844
        %v936 = vpack.c.b16 %v852, %v845
        %v937 = vpack.c.b16 %v853, %v846
        %v938 = vpack.c.b16 %v854, %v847
        %v939 = vpack.c.b16 %v855, %v848
        %v940 = vpack.c.b16 %v863, %v856
        %v941 = vpack.c.b16 %v864, %v857
        %v942 = vpack.c.b16 %v865, %v858
        %v943 = vpack.c.b16 %v866, %v859
        %v944 = vpack.c.b16 %v867, %v860
        %v945 = vpack.c.b16 %v868, %v861
        %v946 = vpack.c.b16 %v869, %v862
        %v947 = vpack.c.b16 %v877, %v870
        %v948 = vpack.c.b16 %v878, %v871
        %v949 = vpack.c.b16 %v879, %v872
        %v950 = vpack.c.b16 %v880, %v873
        %v951 = vpack.c.b16 %v881, %v874
        %v952 = vpack.c.b16 %v882, %v875
        %v953 = vpack.c.b16 %v883, %v876
        %v954 = vpack.c.b16 %v891, %v884
        %v955 = vpack.c.b16 %v892, %v885
        %v956 = vpack.c.b16 %v893, %v886
        %v957 = vpack.c.b16 %v894, %v887
        %v958 = vpack.c.b16 %v895, %v888
        %v959 = vpack.c.b16 %v896, %v889
        %v960 = vpack.c.b16 %v897, %v890
        %v961 = vpack.c.b16 %v905, %v898
        %v962 = vpack.c.b16 %v906, %v899
        %v963 = vpack.c.b16 %v907, %v900
        %v964 = vpack.c.b16 %v908, %v901
        %v965 = vpack.c.b16 %v909, %v902
        %v966 = vpack.c.b16 %v910, %v903
        %v967 = vpack.c.b16 %v911, %v904
        %v1248 = vunpack.c.l.b16 %v490
        %v1249 = vunpack.c.h.b16 %v490
        %v1250 = vunpack.c.l.b16 %v491
        %v1251 = vunpack.c.h.b16 %v491
        %v1252 = vunpack.c.l.b16 %v492
        %v1253 = vunpack.c.h.b16 %v492
        %v1254 = vunpack.c.l.b16 %v493
        %v1255 = vunpack.c.h.b16 %v493
        %v1256 = vunpack.c.l.b16 %v494
        %v1257 = vunpack.c.h.b16 %v494
        %v1258 = vunpack.c.l.b16 %v495
        %v1259 = vunpack.c.h.b16 %v495
        %v1260 = vunpack.c.l.b16 %v496
        %v1261 = vunpack.c.h.b16 %v496
        %v1262 = vunpack.c.l.b16 %v497
        %v1263 = vunpack.c.h.b16 %v497
        %v1264 = vunpack.c.l.b16 %v498
        %v1265 = vunpack.c.h.b16 %v498
        %v1266 = vunpack.c.l.b16 %v499
        %v1267 = vunpack.c.h.b16 %v499
        %v1268 = vunpack.c.l.b16 %v500
        %v1269 = vunpack.c.h.b16 %v500
        %v1270 = vunpack.c.l.b16 %v501
        %v1271 = vunpack.c.h.b16 %v501
        %v1272 = vunpack.c.l.b16 %v502
        %v1273 = vunpack.c.h.b16 %v502
        %v1274 = vunpack.c.l.b16 %v503
        %v1275 = vunpack.c.h.b16 %v503
        %v1276 = vunpack.c.l.b16 %v504
        %v1277 = vunpack.c.h.b16 %v504
        %v1278 = vunpack.c.l.b16 %v505
        %v1279 = vunpack.c.h.b16 %v505
        %v1280 = vunpack.c.l.b16 %v506
        %v1281 = vunpack.c.h.b16 %v506
        %v1282 = vunpack.c.l.b16 %v507
        %v1283 = vunpack.c.h.b16 %v507
        %v1284 = vunpack.c.l.b16 %v508
        %v1285 = vunpack.c.h.b16 %v508
        %v1286 = vunpack.c.l.b16 %v509
        %v1287 = vunpack.c.h.b16 %v509
        %v1288 = vunpack.c.l.b16 %v510
        %v1289 = vunpack.c.h.b16 %v510
        %v1290 = vunpack.c.l.b16 %v511
        %v1291 = vunpack.c.h.b16 %v511
        %v1292 = vunpack.c.l.b16 %v512
        %v1293 = vunpack.c.h.b16 %v512
        %v1294 = vunpack.c.l.b16 %v513
        %v1295 = vunpack.c.h.b16 %v513
        %v1296 = vunpack.c.l.b16 %v514
        %v1297 = vunpack.c.h.b16 %v514
        %v1298 = vunpack.c.l.b16 %v515
        %v1299 = vunpack.c.h.b16 %v515
        %v1300 = vunpack.c.l.b16 %v516
        %v1301 = vunpack.c.h.b16 %v516
        %v1302 = vunpack.c.l.b16 %v517
        %v1303 = vunpack.c.h.b16 %v517
        %v1304 = vunpack.c.l.b16 %v518
        %v1305 = vunpack.c.h.b16 %v518
        %v1306 = vunpack.c.l.b16 %v519
        %v1307 = vunpack.c.h.b16 %v519
        %v1308 = vunpack.c.l.b16 %v520
        %v1309 = vunpack.c.h.b16 %v520
        %v1310 = vunpack.c.l.b16 %v521
        %v1311 = vunpack.c.h.b16 %v521
        %v1312 = vunpack.c.l.b16 %v522
        %v1313 = vunpack.c.h.b16 %v522
        %v1314 = vunpack.c.l.b16 %v523
        %v1315 = vunpack.c.h.b16 %v523
        %v1316 = vunpack.c.l.b16 %v524
        %v1317 = vunpack.c.h.b16 %v524
        %v1318 = vunpack.c.l.b16 %v525
        %v1319 = vunpack.c.h.b16 %v525
        %v1320 = vunpack.c.l.b16 %v526
        %v1321 = vunpack.c.h.b16 %v526
        %v1322 = vunpack.c.l.b16 %v527
        %v1323 = vunpack.c.h.b16 %v527
        %v1324 = vunpack.c.l.b16 %v528
        %v1325 = vunpack.c.h.b16 %v528
        %v1326 = vunpack.c.l.b16 %v529
        %v1327 = vunpack.c.h.b16 %v529
        %v1328 = vunpack.c.l.b16 %v530
        %v1329 = vunpack.c.h.b16 %v530
        %v1330 = vunpack.c.l.b16 %v531
        %v1331 = vunpack.c.h.b16 %v531
        %v1332 = vunpack.c.l.b16 %v532
        %v1333 = vunpack.c.h.b16 %v532
        %v1334 = vunpack.c.l.b16 %v533
        %v1335 = vunpack.c.h.b16 %v533
        %v1336 = vunpack.c.l.b16 %v534
        %v1337 = vunpack.c.h.b16 %v534
        %v1338 = vunpack.c.l.b16 %v535
        %v1339 = vunpack.c.h.b16 %v535
        %v1340 = vunpack.c.l.b16 %v536
        %v1341 = vunpack.c.h.b16 %v536
        %v1342 = vunpack.c.l.b16 %v537
        %v1343 = vunpack.c.h.b16 %v537
        %v1344 = vunpack.c.l.b16 %v538
        %v1345 = vunpack.c.h.b16 %v538
        %v1346 = vunpack.c.l.b16 %v539
        %v1347 = vunpack.c.h.b16 %v539
        %v1348 = vunpack.c.l.b16 %v540
        %v1349 = vunpack.c.h.b16 %v540
        %v1350 = vunpack.c.l.b16 %v541
        %v1351 = vunpack.c.h.b16 %v541
        %v1352 = vunpack.c.l.b16 %v542
        %v1353 = vunpack.c.h.b16 %v542
        %v1354 = vunpack.c.l.b16 %v543
        %v1355 = vunpack.c.h.b16 %v543
        %v1356 = vunpack.c.l.b16 %v544
        %v1357 = vunpack.c.h.b16 %v544
        %v1358 = vunpack.c.l.b16 %v545
        %v1359 = vunpack.c.h.b16 %v545
        %v1360 = vunpack.c.l.b16 %v546
        %v1361 = vunpack.c.h.b16 %v546
        %v1362 = vunpack.c.l.b16 %v547
        %v1363 = vunpack.c.h.b16 %v547
        %v1364 = vunpack.c.l.b16 %v548
        %v1365 = vunpack.c.h.b16 %v548
        %v1366 = vunpack.c.l.b16 %v549
        %v1367 = vunpack.c.h.b16 %v549
        %v1368 = vunpack.c.l.b16 %v550
        %v1369 = vunpack.c.h.b16 %v550
        %v1370 = vunpack.c.l.b16 %v551
        %v1371 = vunpack.c.h.b16 %v551
        %v1372 = vunpack.c.l.b16 %v552
        %v1373 = vunpack.c.h.b16 %v552
        %v1374 = vunpack.c.l.b16 %v553
        %v1375 = vunpack.c.h.b16 %v553
        %v1376 = vunpack.c.l.b16 %v554
        %v1377 = vunpack.c.h.b16 %v554
        %v1378 = vunpack.c.l.b16 %v555
        %v1379 = vunpack.c.h.b16 %v555
        %v1380 = vunpack.c.l.b16 %v556
        %v1381 = vunpack.c.h.b16 %v556
        %v1382 = vunpack.c.l.b16 %v557
        %v1383 = vunpack.c.h.b16 %v557
        %v1384 = vunpack.c.l.b16 %v558
        %v1385 = vunpack.c.h.b16 %v558
        %v1386 = vunpack.c.l.b16 %v559
        %v1387 = vunpack.c.h.b16 %v559
        %v1388 = vunpack.c.l.b16 %v560
        %v1389 = vunpack.c.h.b16 %v560
        %v1390 = vunpack.c.l.b16 %v561
        %v1391 = vunpack.c.h.b16 %v561
        %v1392 = vunpack.c.l.b16 %v562
        %v1393 = vunpack.c.h.b16 %v562
        %v1394 = vunpack.c.l.b16 %v563
        %v1395 = vunpack.c.h.b16 %v563
        %v1396 = vunpack.c.l.b16 %v564
        %v1397 = vunpack.c.h.b16 %v564
        %v1398 = vunpack.c.l.b16 %v565
        %v1399 = vunpack.c.h.b16 %v565
        %v1400 = vunpack.c.l.b16 %v566
        %v1401 = vunpack.c.h.b16 %v566
        %v1402 = vunpack.c.l.b16 %v567
        %v1403 = vunpack.c.h.b16 %v567
        %v1404 = vunpack.c.l.b16 %v568
        %v1405 = vunpack.c.h.b16 %v568
        %v1406 = vunpack.c.l.b16 %v569
        %v1407 = vunpack.c.h.b16 %v569
        %v1408 = vunpack.c.l.b16 %v570
        %v1409 = vunpack.c.h.b16 %v570
        %v1410 = vunpack.c.l.b16 %v571
        %v1411 = vunpack.c.h.b16 %v571
        %v1412 = vunpack.c.l.b16 %v572
        %v1413 = vunpack.c.h.b16 %v572
        %v1414 = vunpack.c.l.b16 %v573
        %v1415 = vunpack.c.h.b16 %v573
        %v1416 = vunpack.c.l.b16 %v574
        %v1417 = vunpack.c.h.b16 %v574
        %v1418 = vunpack.c.l.b16 %v575
        %v1419 = vunpack.c.h.b16 %v575
        %v1420 = vunpack.c.l.b16 %v576
        %v1421 = vunpack.c.h.b16 %v576
        %v1422 = vunpack.c.l.b16 %v577
        %v1423 = vunpack.c.h.b16 %v577
        %v1424 = vunpack.c.l.b16 %v578
        %v1425 = vunpack.c.h.b16 %v578
        %v1426 = vunpack.c.l.b16 %v579
        %v1427 = vunpack.c.h.b16 %v579
        %v1428 = vunpack.c.l.b16 %v580
        %v1429 = vunpack.c.h.b16 %v580
        %v1430 = vunpack.c.l.b16 %v581
        %v1431 = vunpack.c.h.b16 %v581
        %v1432 = vunpack.c.l.b16 %v582
        %v1433 = vunpack.c.h.b16 %v582
        %v1434 = vunpack.c.l.b16 %v583
        %v1435 = vunpack.c.h.b16 %v583
        %v1436 = vunpack.c.l.b16 %v584
        %v1437 = vunpack.c.h.b16 %v584
        %v1438 = vunpack.c.l.b16 %v585
        %v1439 = vunpack.c.h.b16 %v585
        %v1440 = vunpack.c.l.b16 %v586
        %v1441 = vunpack.c.h.b16 %v586
        %v1442 = vunpack.c.l.b16 %v587
        %v1443 = vunpack.c.h.b16 %v587
        %v1444 = vunpack.c.l.b16 %v588
        %v1445 = vunpack.c.h.b16 %v588
        %v1446 = vunpack.c.l.b16 %v589
        %v1447 = vunpack.c.h.b16 %v589
        %v1448 = vunpack.c.l.b16 %v590
        %v1449 = vunpack.c.h.b16 %v590
        %v1450 = vunpack.c.l.b16 %v591
        %v1451 = vunpack.c.h.b16 %v591
        %v1452 = vunpack.c.l.b16 %v592
        %v1453 = vunpack.c.h.b16 %v592
        %v1454 = vunpack.c.l.b16 %v593
        %v1455 = vunpack.c.h.b16 %v593
        %v1456 = vunpack.c.l.b16 %v594
        %v1457 = vunpack.c.h.b16 %v594
        %v1458 = vunpack.c.l.b16 %v595
        %v1459 = vunpack.c.h.b16 %v595
        %v1460 = vunpack.c.l.b16 %v596
        %v1461 = vunpack.c.h.b16 %v596
        %v1462 = vunpack.c.l.b16 %v597
        %v1463 = vunpack.c.h.b16 %v597
        %v1464 = vunpack.c.l.b16 %v598
        %v1465 = vunpack.c.h.b16 %v598
        %v1466 = vunpack.c.l.b16 %v599
        %v1467 = vunpack.c.h.b16 %v599
        %v1468 = vunpack.c.l.b16 %v600
        %v1469 = vunpack.c.h.b16 %v600
        %v1470 = vunpack.c.l.b16 %v601
        %v1471 = vunpack.c.h.b16 %v601
        %v1472 = vunpack.c.l.b16 %v602
        %v1473 = vunpack.c.h.b16 %v602
        %v1474 = vunpack.c.l.b16 %v603
        %v1475 = vunpack.c.h.b16 %v603
        %v1476 = vunpack.c.l.b16 %v604
        %v1477 = vunpack.c.h.b16 %v604
        %v1478 = vunpack.c.l.b16 %v605
        %v1479 = vunpack.c.h.b16 %v605
        %v1480 = vunpack.c.l.b16 %v606
        %v1481 = vunpack.c.h.b16 %v606
        %v1482 = vunpack.c.l.b16 %v607
        %v1483 = vunpack.c.h.b16 %v607
        %v1484 = vunpack.c.l.b16 %v608
        %v1485 = vunpack.c.h.b16 %v608
        %v1486 = vunpack.c.l.b16 %v609
        %v1487 = vunpack.c.h.b16 %v609
        %v1488 = vunpack.c.l.b16 %v610
        %v1489 = vunpack.c.h.b16 %v610
        %v1490 = vunpack.c.l.b16 %v611
        %v1491 = vunpack.c.h.b16 %v611
        %v1492 = vunpack.c.l.b16 %v612
        %v1493 = vunpack.c.h.b16 %v612
        %v1494 = vunpack.c.l.b16 %v613
        %v1495 = vunpack.c.h.b16 %v613
        %v1496 = vunpack.c.l.b16 %v614
        %v1497 = vunpack.c.h.b16 %v614
        %v1498 = vunpack.c.l.b16 %v615
        %v1499 = vunpack.c.h.b16 %v615
        %v1500 = vunpack.c.l.b16 %v616
        %v1501 = vunpack.c.h.b16 %v616
        %v1502 = vunpack.c.l.b16 %v617
        %v1503 = vunpack.c.h.b16 %v617
        %v1504 = vunpack.c.l.b16 %v618
        %v1505 = vunpack.c.h.b16 %v618
        %v1506 = vunpack.c.l.b16 %v619
        %v1507 = vunpack.c.h.b16 %v619
        %v1508 = vunpack.c.l.b16 %v620
        %v1509 = vunpack.c.h.b16 %v620
        %v1510 = vunpack.c.l.b16 %v621
        %v1511 = vunpack.c.h.b16 %v621
        %v1512 = vunpack.c.l.b16 %v622
        %v1513 = vunpack.c.h.b16 %v622
        %v1514 = vunpack.c.l.b16 %v623
        %v1515 = vunpack.c.h.b16 %v623
        %v1516 = vunpack.c.l.b16 %v624
        %v1517 = vunpack.c.h.b16 %v624
        %v1518 = vunpack.c.l.b16 %v625
        %v1519 = vunpack.c.h.b16 %v625
        %v1520 = vunpack.c.l.b16 %v626
        %v1521 = vunpack.c.h.b16 %v626
        %v1522 = vunpack.c.l.b16 %v627
        %v1523 = vunpack.c.h.b16 %v627
        %v1524 = vunpack.c.l.b16 %v628
        %v1525 = vunpack.c.h.b16 %v628
        %v1526 = vunpack.c.l.b16 %v629
        %v1527 = vunpack.c.h.b16 %v629
        %v1528 = vunpack.c.l.b16 %v630
        %v1529 = vunpack.c.h.b16 %v630
        %v1530 = vunpack.c.l.b16 %v631
        %v1531 = vunpack.c.h.b16 %v631
        %v1532 = vunpack.c.l.b16 %v632
        %v1533 = vunpack.c.h.b16 %v632
        %v1534 = vunpack.c.l.b16 %v633
        %v1535 = vunpack.c.h.b16 %v633
        %v1536 = vunpack.c.l.b16 %v634
        %v1537 = vunpack.c.h.b16 %v634
        %v1538 = vunpack.c.l.b16 %v635
        %v1539 = vunpack.c.h.b16 %v635
        %v1540 = vunpack.c.l.b16 %v636
        %v1541 = vunpack.c.h.b16 %v636
        %v1542 = vunpack.c.l.b16 %v637
        %v1543 = vunpack.c.h.b16 %v637
        %v1544 = vunpack.c.l.b16 %v638
        %v1545 = vunpack.c.h.b16 %v638
        %v1546 = vunpack.c.l.b16 %v639
        %v1547 = vunpack.c.h.b16 %v639
        %v1548 = vunpack.c.l.b16 %v640
        %v1549 = vunpack.c.h.b16 %v640
        %v1550 = vunpack.c.l.b16 %v641
        %v1551 = vunpack.c.h.b16 %v641
        %v1552 = vunpack.c.l.b16 %v642
        %v1553 = vunpack.c.h.b16 %v642
        %v1554 = vunpack.c.l.b16 %v643
        %v1555 = vunpack.c.h.b16 %v643
        %v1556 = vunpack.c.l.b16 %v644
        %v1557 = vunpack.c.h.b16 %v644
        %v1558 = vunpack.c.l.b16 %v645
        %v1559 = vunpack.c.h.b16 %v645
        %v1560 = vunpack.c.l.b16 %v646
        %v1561 = vunpack.c.h.b16 %v646
        %v1562 = vunpack.c.l.b16 %v647
        %v1563 = vunpack.c.h.b16 %v647
        %v1564 = vunpack.c.l.b16 %v648
        %v1565 = vunpack.c.h.b16 %v648
        %v1566 = vunpack.c.l.b16 %v649
        %v1567 = vunpack.c.h.b16 %v649
        %v1568 = vunpack.c.l.b16 %v650
        %v1569 = vunpack.c.h.b16 %v650
        %v1570 = vunpack.c.l.b16 %v651
        %v1571 = vunpack.c.h.b16 %v651
        %v1572 = vunpack.c.l.b16 %v652
        %v1573 = vunpack.c.h.b16 %v652
        %v1574 = vunpack.c.l.b16 %v653
        %v1575 = vunpack.c.h.b16 %v653
        %v1576 = vunpack.c.l.b16 %v654
        %v1577 = vunpack.c.h.b16 %v654
        %v1578 = vunpack.c.l.b16 %v655
        %v1579 = vunpack.c.h.b16 %v655
        %v1580 = vunpack.c.l.b16 %v656
        %v1581 = vunpack.c.h.b16 %v656
        %v1582 = vunpack.c.l.b16 %v657
        %v1583 = vunpack.c.h.b16 %v657
        %v1584 = vunpack.c.l.b16 %v658
        %v1585 = vunpack.c.h.b16 %v658
        %v1586 = vunpack.c.l.b16 %v659
        %v1587 = vunpack.c.h.b16 %v659
        %v1588 = vunpack.c.l.b16 %v660
        %v1589 = vunpack.c.h.b16 %v660
        %v1590 = vunpack.c.l.b16 %v661
        %v1591 = vunpack.c.h.b16 %v661
        %v1592 = vunpack.c.l.b16 %v662
        %v1593 = vunpack.c.h.b16 %v662
        %v1594 = vunpack.c.l.b16 %v663
        %v1595 = vunpack.c.h.b16 %v663
        %v1596 = vunpack.c.l.b16 %v664
        %v1597 = vunpack.c.h.b16 %v664
        %v1598 = vunpack.c.l.b16 %v665
        %v1599 = vunpack.c.h.b16 %v665
        %v1600 = vunpack.c.l.b16 %v666
        %v1601 = vunpack.c.h.b16 %v666
        %v1602 = vunpack.c.l.b16 %v667
        %v1603 = vunpack.c.h.b16 %v667
        %v1604 = vunpack.c.l.b16 %v668
        %v1605 = vunpack.c.h.b16 %v668
        %v1606 = vunpack.c.l.b16 %v669
        %v1607 = vunpack.c.h.b16 %v669
        %v1608 = vunpack.c.l.b16 %v670
        %v1609 = vunpack.c.h.b16 %v670
        %v1610 = vunpack.c.l.b16 %v671
        %v1611 = vunpack.c.h.b16 %v671
        %v1612 = vunpack.c.l.b16 %v672
        %v1613 = vunpack.c.h.b16 %v672
        %v1614 = vunpack.c.l.b16 %v673
        %v1615 = vunpack.c.h.b16 %v673
        %v1616 = vunpack.c.l.b16 %v674
        %v1617 = vunpack.c.h.b16 %v674
        %v1618 = vunpack.c.l.b16 %v675
        %v1619 = vunpack.c.h.b16 %v675
        %v1620 = vunpack.c.l.b16 %v676
        %v1621 = vunpack.c.h.b16 %v676
        %v1622 = vunpack.c.l.b16 %v677
        %v1623 = vunpack.c.h.b16 %v677
        %v1624 = vunpack.c.l.b16 %v678
        %v1625 = vunpack.c.h.b16 %v678
        %v1626 = vunpack.c.l.b16 %v679
        %v1627 = vunpack.c.h.b16 %v679
        %v1628 = vunpack.c.l.b16 %v680
        %v1629 = vunpack.c.h.b16 %v680
        %v1630 = vunpack.c.l.b16 %v681
        %v1631 = vunpack.c.h.b16 %v681
        %v1632 = vunpack.c.l.b16 %v682
        %v1633 = vunpack.c.h.b16 %v682
        %v1634 = vunpack.c.l.b16 %v683
        %v1635 = vunpack.c.h.b16 %v683
        %v1636 = vunpack.c.l.b16 %v684
        %v1637 = vunpack.c.h.b16 %v684
        %v1638 = vunpack.c.l.b16 %v685
        %v1639 = vunpack.c.h.b16 %v685
        %v1640 = vunpack.c.l.b16 %v686
        %v1641 = vunpack.c.h.b16 %v686
        %v1642 = vunpack.c.l.b16 %v687
        %v1643 = vunpack.c.h.b16 %v687
        %v1644 = vunpack.c.l.b16 %v688
        %v1645 = vunpack.c.h.b16 %v688
        %v1646 = vunpack.c.l.b16 %v689
        %v1647 = vunpack.c.h.b16 %v689
        %v1648 = vunpack.c.l.b16 %v690
        %v1649 = vunpack.c.h.b16 %v690
        %v1650 = vunpack.c.l.b16 %v691
        %v1651 = vunpack.c.h.b16 %v691
        %v1652 = vunpack.c.l.b16 %v692
        %v1653 = vunpack.c.h.b16 %v692
        %v1654 = vunpack.c.l.b16 %v693
        %v1655 = vunpack.c.h.b16 %v693
        %v1656 = vunpack.c.l.b16 %v694
        %v1657 = vunpack.c.h.b16 %v694
        %v1658 = vunpack.c.l.b16 %v695
        %v1659 = vunpack.c.h.b16 %v695
        %v1660 = vunpack.c.l.b16 %v696
        %v1661 = vunpack.c.h.b16 %v696
        %v1662 = vunpack.c.l.b16 %v697
        %v1663 = vunpack.c.h.b16 %v697
        %v1664 = vunpack.c.l.b16 %v698
        %v1665 = vunpack.c.h.b16 %v698
        %v1666 = vunpack.c.l.b16 %v699
        %v1667 = vunpack.c.h.b16 %v699
        %v1668 = vunpack.c.l.b16 %v700
        %v1669 = vunpack.c.h.b16 %v700
        %v1670 = vunpack.c.l.b16 %v701
        %v1671 = vunpack.c.h.b16 %v701
        %v1672 = vunpack.c.l.b16 %v702
        %v1673 = vunpack.c.h.b16 %v702
        %v1674 = vunpack.c.l.b16 %v703
        %v1675 = vunpack.c.h.b16 %v703
        %v1676 = vunpack.c.l.b16 %v704
        %v1677 = vunpack.c.h.b16 %v704
        %v1678 = vunpack.c.l.b16 %v705
        %v1679 = vunpack.c.h.b16 %v705
        %v1680 = vunpack.c.l.b16 %v706
        %v1681 = vunpack.c.h.b16 %v706
        %v1682 = vunpack.c.l.b16 %v707
        %v1683 = vunpack.c.h.b16 %v707
        %v1684 = vunpack.c.l.b16 %v708
        %v1685 = vunpack.c.h.b16 %v708
        %v1686 = vunpack.c.l.b16 %v709
        %v1687 = vunpack.c.h.b16 %v709
        %v1688 = vunpack.c.l.b16 %v710
        %v1689 = vunpack.c.h.b16 %v710
        %v1690 = vunpack.c.l.b16 %v711
        %v1691 = vunpack.c.h.b16 %v711
        %v1692 = vunpack.c.l.b16 %v712
        %v1693 = vunpack.c.h.b16 %v712
        %v1694 = vunpack.c.l.b16 %v713
        %v1695 = vunpack.c.h.b16 %v713
        %v1696 = vpack.c.b16 %v1252, %v1248
        %v1697 = vpack.c.b16 %v1253, %v1249
        %v1698 = vpack.c.b16 %v1254, %v1250
        %v1699 = vpack.c.b16 %v1255, %v1251
        %v1700 = vpack.c.b16 %v1260, %v1256
        %v1701 = vpack.c.b16 %v1261, %v1257
        %v1702 = vpack.c.b16 %v1262, %v1258
        %v1703 = vpack.c.b16 %v1263, %v1259
        %v1704 = vpack.c.b16 %v1268, %v1264
        %v1705 = vpack.c.b16 %v1269, %v1265
        %v1706 = vpack.c.b16 %v1270, %v1266
        %v1707 = vpack.c.b16 %v1271, %v1267
        %v1708 = vpack.c.b16 %v1276, %v1272
        %v1709 = vpack.c.b16 %v1277, %v1273
        %v1710 = vpack.c.b16 %v1278, %v1274
        %v1711 = vpack.c.b16 %v1279, %v1275
        %v1712 = vpack.c.b16 %v1284, %v1280
        %v1713 = vpack.c.b16 %v1285, %v1281
        %v1714 = vpack.c.b16 %v1286, %v1282
        %v1715 = vpack.c.b16 %v1287, %v1283
        %v1716 = vpack.c.b16 %v1292, %v1288
        %v1717 = vpack.c.b16 %v1293, %v1289
        %v1718 = vpack.c.b16 %v1294, %v1290
        %v1719 = vpack.c.b16 %v1295, %v1291
        %v1720 = vpack.c.b16 %v1300, %v1296
        %v1721 = vpack.c.b16 %v1301, %v1297
        %v1722 = vpack.c.b16 %v1302, %v1298
        %v1723 = vpack.c.b16 %v1303, %v1299
        %v1724 = vpack.c.b16 %v1308, %v1304
        %v1725 = vpack.c.b16 %v1309, %v1305
        %v1726 = vpack.c.b16 %v1310, %v1306
        %v1727 = vpack.c.b16 %v1311, %v1307
        %v1728 = vpack.c.b16 %v1316, %v1312
        %v1729 = vpack.c.b16 %v1317, %v1313
        %v1730 = vpack.c.b16 %v1318, %v1314
        %v1731 = vpack.c.b16 %v1319, %v1315
        %v1732 = vpack.c.b16 %v1324, %v1320
        %v1733 = vpack.c.b16 %v1325, %v1321
        %v1734 = vpack.c.b16 %v1326, %v1322
        %v1735 = vpack.c.b16 %v1327, %v1323
        %v1736 = vpack.c.b16 %v1332, %v1328
        %v1737 = vpack.c.b16 %v1333, %v1329
        %v1738 = vpack.c.b16 %v1334, %v1330
        %v1739 = vpack.c.b16 %v1335, %v1331
        %v1740 = vpack.c.b16 %v1340, %v1336
        %v1741 = vpack.c.b16 %v1341, %v1337
        %v1742 = vpack.c.b16 %v1342, %v1338
        %v1743 = vpack.c.b16 %v1343, %v1339
        %v1744 = vpack.c.b16 %v1348, %v1344
        %v1745 = vpack.c.b16 %v1349, %v1345
        %v1746 = vpack.c.b16 %v1350, %v1346
        %v1747 = vpack.c.b16 %v1351, %v1347
        %v1748 = vpack.c.b16 %v1356, %v1352
        %v1749 = vpack.c.b16 %v1357, %v1353
        %v1750 = vpack.c.b16 %v1358, %v1354
        %v1751 = vpack.c.b16 %v1359, %v1355
        %v1752 = vpack.c.b16 %v1364, %v1360
        %v1753 = vpack.c.b16 %v1365, %v1361
        %v1754 = vpack.c.b16 %v1366, %v1362
        %v1755 = vpack.c.b16 %v1367, %v1363
        %v1756 = vpack.c.b16 %v1372, %v1368
        %v1757 = vpack.c.b16 %v1373, %v1369
        %v1758 = vpack.c.b16 %v1374, %v1370
        %v1759 = vpack.c.b16 %v1375, %v1371
        %v1760 = vpack.c.b16 %v1380, %v1376
        %v1761 = vpack.c.b16 %v1381, %v1377
        %v1762 = vpack.c.b16 %v1382, %v1378
        %v1763 = vpack.c.b16 %v1383, %v1379
        %v1764 = vpack.c.b16 %v1388, %v1384
        %v1765 = vpack.c.b16 %v1389, %v1385
        %v1766 = vpack.c.b16 %v1390, %v1386
        %v1767 = vpack.c.b16 %v1391, %v1387
        %v1768 = vpack.c.b16 %v1396, %v1392
        %v1769 = vpack.c.b16 %v1397, %v1393
        %v1770 = vpack.c.b16 %v1398, %v1394
        %v1771 = vpack.c.b16 %v1399, %v1395
        %v1772 = vpack.c.b16 %v1404, %v1400
        %v1773 = vpack.c.b16 %v1405, %v1401
        %v1774 = vpack.c.b16 %v1406, %v1402
        %v1775 = vpack.c.b16 %v1407, %v1403
        %v1776 = vpack.c.b16 %v1412, %v1408
        %v1777 = vpack.c.b16 %v1413, %v1409
        %v1778 = vpack.c.b16 %v1414, %v1410
        %v1779 = vpack.c.b16 %v1415, %v1411
        %v1780 = vpack.c.b16 %v1420, %v1416
        %v1781 = vpack.c.b16 %v1421, %v1417
        %v1782 = vpack.c.b16 %v1422, %v1418
        %v1783 = vpack.c.b16 %v1423, %v1419
        %v1784 = vpack.c.b16 %v1428, %v1424
        %v1785 = vpack.c.b16 %v1429, %v1425
        %v1786 = vpack.c.b16 %v1430, %v1426
        %v1787 = vpack.c.b16 %v1431, %v1427
        %v1788 = vpack.c.b16 %v1436, %v1432
        %v1789 = vpack.c.b16 %v1437, %v1433
        %v1790 = vpack.c.b16 %v1438, %v1434
        %v1791 = vpack.c.b16 %v1439, %v1435
        %v1792 = vpack.c.b16 %v1444, %v1440
        %v1793 = vpack.c.b16 %v1445, %v1441
        %v1794 = vpack.c.b16 %v1446, %v1442
        %v1795 = vpack.c.b16 %v1447, %v1443
        %v1796 = vpack.c.b16 %v1452, %v1448
        %v1797 = vpack.c.b16 %v1453, %v1449
        %v1798 = vpack.c.b16 %v1454, %v1450
        %v1799 = vpack.c.b16 %v1455, %v1451
        %v1800 = vpack.c.b16 %v1460, %v1456
        %v1801 = vpack.c.b16 %v1461, %v1457
        %v1802 = vpack.c.b16 %v1462, %v1458
        %v1803 = vpack.c.b16 %v1463, %v1459
        %v1804 = vpack.c.b16 %v1468, %v1464
        %v1805 = vpack.c.b16 %v1469, %v1465
        %v1806 = vpack.c.b16 %v1470, %v1466
        %v1807 = vpack.c.b16 %v1471, %v1467
        %v1808 = vpack.c.b16 %v1476, %v1472
        %v1809 = vpack.c.b16 %v1477, %v1473
        %v1810 = vpack.c.b16 %v1478, %v1474
        %v1811 = vpack.c.b16 %v1479, %v1475
        %v1812 = vpack.c.b16 %v1484, %v1480
        %v1813 = vpack.c.b16 %v1485, %v1481
        %v1814 = vpack.c.b16 %v1486, %v1482
        %v1815 = vpack.c.b16 %v1487, %v1483
        %v1816 = vpack.c.b16 %v1492, %v1488
        %v1817 = vpack.c.b16 %v1493, %v1489
        %v1818 = vpack.c.b16 %v1494, %v1490
        %v1819 = vpack.c.b16 %v1495, %v1491
        %v1820 = vpack.c.b16 %v1500, %v1496
        %v1821 = vpack.c.b16 %v1501, %v1497
        %v1822 = vpack.c.b16 %v1502, %v1498
        %v1823 = vpack.c.b16 %v1503, %v1499
        %v1824 = vpack.c.b16 %v1508, %v1504
        %v1825 = vpack.c.b16 %v1509, %v1505
        %v1826 = vpack.c.b16 %v1510, %v1506
        %v1827 = vpack.c.b16 %v1511, %v1507
        %v1828 = vpack.c.b16 %v1516, %v1512
        %v1829 = vpack.c.b16 %v1517, %v1513
        %v1830 = vpack.c.b16 %v1518, %v1514
        %v1831 = vpack.c.b16 %v1519, %v1515
        %v1832 = vpack.c.b16 %v1524, %v1520
        %v1833 = vpack.c.b16 %v1525, %v1521
        %v1834 = vpack.c.b16 %v1526, %v1522
        %v1835 = vpack.c.b16 %v1527, %v1523
        %v1836 = vpack.c.b16 %v1532, %v1528
        %v1837 = vpack.c.b16 %v1533, %v1529
        %v1838 = vpack.c.b16 %v1534, %v1530
        %v1839 = vpack.c.b16 %v1535, %v1531
        %v1840 = vpack.c.b16 %v1540, %v1536
        %v1841 = vpack.c.b16 %v1541, %v1537
        %v1842 = vpack.c.b16 %v1542, %v1538
        %v1843 = vpack.c.b16 %v1543, %v1539
        %v1844 = vpack.c.b16 %v1548, %v1544
        %v1845 = vpack.c.b16 %v1549, %v1545
        %v1846 = vpack.c.b16 %v1550, %v1546
        %v1847 = vpack.c.b16 %v1551, %v1547
        %v1848 = vpack.c.b16 %v1556, %v1552
        %v1849 = vpack.c.b16 %v1557, %v1553
        %v1850 = vpack.c.b16 %v1558, %v1554
        %v1851 = vpack.c.b16 %v1559, %v1555
        %v1852 = vpack.c.b16 %v1564, %v1560
        %v1853 = vpack.c.b16 %v1565, %v1561
        %v1854 = vpack.c.b16 %v1566, %v1562
        %v1855 = vpack.c.b16 %v1567, %v1563
        %v1856 = vpack.c.b16 %v1572, %v1568
        %v1857 = vpack.c.b16 %v1573, %v1569
        %v1858 = vpack.c.b16 %v1574, %v1570
        %v1859 = vpack.c.b16 %v1575, %v1571
        %v1860 = vpack.c.b16 %v1580, %v1576
        %v1861 = vpack.c.b16 %v1581, %v1577
        %v1862 = vpack.c.b16 %v1582, %v1578
        %v1863 = vpack.c.b16 %v1583, %v1579
        %v1864 = vpack.c.b16 %v1588, %v1584
        %v1865 = vpack.c.b16 %v1589, %v1585
        %v1866 = vpack.c.b16 %v1590, %v1586
        %v1867 = vpack.c.b16 %v1591, %v1587
        %v1868 = vpack.c.b16 %v1596, %v1592
        %v1869 = vpack.c.b16 %v1597, %v1593
        %v1870 = vpack.c.b16 %v1598, %v1594
        %v1871 = vpack.c.b16 %v1599, %v1595
        %v1872 = vpack.c.b16 %v1604, %v1600
        %v1873 = vpack.c.b16 %v1605, %v1601
        %v1874 = vpack.c.b16 %v1606, %v1602
        %v1875 = vpack.c.b16 %v1607, %v1603
        %v1876 = vpack.c.b16 %v1612, %v1608
        %v1877 = vpack.c.b16 %v1613, %v1609
        %v1878 = vpack.c.b16 %v1614, %v1610
        %v1879 = vpack.c.b16 %v1615, %v1611
        %v1880 = vpack.c.b16 %v1620, %v1616
        %v1881 = vpack.c.b16 %v1621, %v1617
        %v1882 = vpack.c.b16 %v1622, %v1618
        %v1883 = vpack.c.b16 %v1623, %v1619
        %v1884 = vpack.c.b16 %v1628, %v1624
        %v1885 = vpack.c.b16 %v1629, %v1625
        %v1886 = vpack.c.b16 %v1630, %v1626
        %v1887 = vpack.c.b16 %v1631, %v1627
        %v1888 = vpack.c.b16 %v1636, %v1632
        %v1889 = vpack.c.b16 %v1637, %v1633
        %v1890 = vpack.c.b16 %v1638, %v1634
        %v1891 = vpack.c.b16 %v1639, %v1635
        %v1892 = vpack.c.b16 %v1644, %v1640
        %v1893 = vpack.c.b16 %v1645, %v1641
        %v1894 = vpack.c.b16 %v1646, %v1642
        %v1895 = vpack.c.b16 %v1647, %v1643
        %v1896 = vpack.c.b16 %v1652, %v1648
        %v1897 = vpack.c.b16 %v1653, %v1649
        %v1898 = vpack.c.b16 %v1654, %v1650
        %v1899 = vpack.c.b16 %v1655, %v1651
        %v1900 = vpack.c.b16 %v1660, %v1656
        %v1901 = vpack.c.b16 %v1661, %v1657
        %v1902 = vpack.c.b16 %v1662, %v1658
        %v1903 = vpack.c.b16 %v1663, %v1659
        %v1904 = vpack.c.b16 %v1668, %v1664
        %v1905 = vpack.c.b16 %v1669, %v1665
        %v1906 = vpack.c.b16 %v1670, %v1666
        %v1907 = vpack.c.b16 %v1671, %v1667
        %v1908 = vpack.c.b16 %v1676, %v1672
        %v1909 = vpack.c.b16 %v1677, %v1673
        %v1910 = vpack.c.b16 %v1678, %v1674
        %v1911 = vpack.c.b16 %v1679, %v1675
        %v1912 = vpack.c.b16 %v1684, %v1680
        %v1913 = vpack.c.b16 %v1685, %v1681
        %v1914 = vpack.c.b16 %v1686, %v1682
        %v1915 = vpack.c.b16 %v1687, %v1683
        %v1916 = vpack.c.b16 %v1692, %v1688
        %v1917 = vpack.c.b16 %v1693, %v1689
        %v1918 = vpack.c.b16 %v1694, %v1690
        %v1919 = vpack.c.b16 %v1695, %v1691
        %2144 = vmatprep.subr.bf16.mxu0 %v1725
        %2145 = vmatpush1.bf16.msra.mxu0 %v1724
        %2146 = vmatprep.subr.bf16.mxu0 %v1721
        %2147 = vmatpush1.bf16.msra.mxu0 %v1720
        %2148 = vmatprep.subr.bf16.mxu0 %v1717
        %2149 = vmatpush1.bf16.msra.mxu0 %v1716
        %2150 = vmatprep.subr.bf16.mxu0 %v1713
        %2151 = vmatpush1.bf16.msra.mxu0 %v1712
        %2152 = vmatprep.subr.bf16.mxu0 %v1709
        %2153 = vmatpush1.bf16.msra.mxu0 %v1708
        %2154 = vmatprep.subr.bf16.mxu0 %v1705
        %2155 = vmatpush1.bf16.msra.mxu0 %v1704
        %2156 = vmatprep.subr.bf16.mxu0 %v1701
        %2157 = vmatpush1.bf16.msra.mxu0 %v1700
        %2158 = vmatprep.subr.bf16.mxu0 %v1697
        %2159 = vmatpush1.bf16.msra.mxu0 %v1696
        %2160 = vmatprep.subr.bf16.mxu0 %v1757
        %2161 = vmatpush2.bf16.msra.mxu0 %v1756
        %2162 = vmatprep.subr.bf16.mxu0 %v1753
        %2163 = vmatpush2.bf16.msra.mxu0 %v1752
        %2164 = vmatprep.subr.bf16.mxu0 %v1749
        %2165 = vmatpush2.bf16.msra.mxu0 %v1748
        %2166 = vmatprep.subr.bf16.mxu0 %v1745
        %2167 = vmatpush2.bf16.msra.mxu0 %v1744
        %2168 = vmatprep.subr.bf16.mxu0 %v1741
        %2169 = vmatpush2.bf16.msra.mxu0 %v1740
        %2170 = vmatprep.subr.bf16.mxu0 %v1737
        %2171 = vmatpush2.bf16.msra.mxu0 %v1736
        %2172 = vmatprep.subr.bf16.mxu0 %v1733
        %2173 = vmatpush2.bf16.msra.mxu0 %v1732
        %2174 = vmatprep.subr.bf16.mxu0 %v1729
        %2175 = vmatpush2.bf16.msra.mxu0 %v1728
        %2176 = vmatprep.mubr.bf16.mxu0 %v913
        %2177 = vmatmul.mubr.bf16.gmra.mxu0 %v912
        %v2178 = vpop.f32.mrf.mxu0
        %v2179 = vadd.f32 %v719, %v2178
        %v2180 = vpop.f32.mrf.mxu0
        %v2181 = vadd.f32 %v723, %v2180
        %v2182 = vpop.f32.mrf.mxu0
        %v2183 = vadd.f32 %v719, %v2182
        %v2184 = vpop.f32.mrf.mxu0
        %v2185 = vadd.f32 %v723, %v2184
        %2186 = vmatprep.mubr.bf16.mxu0 %v920
        %2187 = vmatmul.mubr.bf16.gmra.mxu0 %v919
        %v2188 = vpop.f32.mrf.mxu0
        %v2189 = vadd.f32 %v719, %v2188
        %v2190 = vpop.f32.mrf.mxu0
        %v2191 = vadd.f32 %v723, %v2190
        %v2192 = vpop.f32.mrf.mxu0
        %v2193 = vadd.f32 %v719, %v2192
        %v2194 = vpop.f32.mrf.mxu0
        %v2195 = vadd.f32 %v723, %v2194
        %2196 = vmatprep.mubr.bf16.mxu0 %v927
        %2197 = vmatmul.mubr.bf16.gmra.mxu0 %v926
        %v2198 = vpop.f32.mrf.mxu0
        %v2199 = vadd.f32 %v719, %v2198
        %v2200 = vpop.f32.mrf.mxu0
        %v2201 = vadd.f32 %v723, %v2200
        %v2202 = vpop.f32.mrf.mxu0
        %v2203 = vadd.f32 %v719, %v2202
        %v2204 = vpop.f32.mrf.mxu0
        %v2205 = vadd.f32 %v723, %v2204
        %2206 = vmatprep.mubr.bf16.mxu0 %v934
        %2207 = vmatmul.mubr.bf16.gmra.mxu0 %v933
        %v2208 = vpop.f32.mrf.mxu0
        %v2209 = vadd.f32 %v719, %v2208
        %v2210 = vpop.f32.mrf.mxu0
        %v2211 = vadd.f32 %v723, %v2210
        %v2212 = vpop.f32.mrf.mxu0
        %v2213 = vadd.f32 %v719, %v2212
        %v2214 = vpop.f32.mrf.mxu0
        %v2215 = vadd.f32 %v723, %v2214
        %2216 = vmatprep.mubr.bf16.mxu0 %v941
        %2217 = vmatmul.mubr.bf16.gmra.mxu0 %v940
        %v2218 = vpop.f32.mrf.mxu0
        %v2219 = vadd.f32 %v719, %v2218
        %v2220 = vpop.f32.mrf.mxu0
        %v2221 = vadd.f32 %v723, %v2220
        %v2222 = vpop.f32.mrf.mxu0
        %v2223 = vadd.f32 %v719, %v2222
        %v2224 = vpop.f32.mrf.mxu0
        %v2225 = vadd.f32 %v723, %v2224
        %2226 = vmatprep.mubr.bf16.mxu0 %v948
        %2227 = vmatmul.mubr.bf16.gmra.mxu0 %v947
        %v2228 = vpop.f32.mrf.mxu0
        %v2229 = vadd.f32 %v719, %v2228
        %v2230 = vpop.f32.mrf.mxu0
        %v2231 = vadd.f32 %v723, %v2230
        %v2232 = vpop.f32.mrf.mxu0
        %v2233 = vadd.f32 %v719, %v2232
        %v2234 = vpop.f32.mrf.mxu0
        %v2235 = vadd.f32 %v723, %v2234
        %2236 = vmatprep.mubr.bf16.mxu0 %v955
        %2237 = vmatmul.mubr.bf16.gmra.mxu0 %v954
        %v2238 = vpop.f32.mrf.mxu0
        %v2239 = vadd.f32 %v719, %v2238
        %v2240 = vpop.f32.mrf.mxu0
        %v2241 = vadd.f32 %v723, %v2240
        %v2242 = vpop.f32.mrf.mxu0
        %v2243 = vadd.f32 %v719, %v2242
        %v2244 = vpop.f32.mrf.mxu0
        %v2245 = vadd.f32 %v723, %v2244
        %2246 = vmatprep.mubr.bf16.mxu0 %v962
        %2247 = vmatmul.mubr.bf16.gmra.mxu0 %v961
        %v2248 = vpop.f32.mrf.mxu0
        %v2249 = vadd.f32 %v719, %v2248
        %v2250 = vpop.f32.mrf.mxu0
        %v2251 = vadd.f32 %v723, %v2250
        %v2252 = vpop.f32.mrf.mxu0
        %v2253 = vadd.f32 %v719, %v2252
        %v2254 = vpop.f32.mrf.mxu0
        %v2255 = vadd.f32 %v723, %v2254
        %2256 = vdwg.mxu0
        %2257 = vmatprep.subr.bf16.mxu0 %v1789
        %2258 = vmatpush1.bf16.msra.mxu0 %v1788
        %2259 = vmatprep.subr.bf16.mxu0 %v1785
        %2260 = vmatpush1.bf16.msra.mxu0 %v1784
        %2261 = vmatprep.subr.bf16.mxu0 %v1781
        %2262 = vmatpush1.bf16.msra.mxu0 %v1780
        %2263 = vmatprep.subr.bf16.mxu0 %v1777
        %2264 = vmatpush1.bf16.msra.mxu0 %v1776
        %2265 = vmatprep.subr.bf16.mxu0 %v1773
        %2266 = vmatpush1.bf16.msra.mxu0 %v1772
        %2267 = vmatprep.subr.bf16.mxu0 %v1769
        %2268 = vmatpush1.bf16.msra.mxu0 %v1768
        %2269 = vmatprep.subr.bf16.mxu0 %v1765
        %2270 = vmatpush1.bf16.msra.mxu0 %v1764
        %2271 = vmatprep.subr.bf16.mxu0 %v1761
        %2272 = vmatpush1.bf16.msra.mxu0 %v1760
        %2273 = vmatprep.subr.bf16.mxu0 %v1821
        %2274 = vmatpush2.bf16.msra.mxu0 %v1820
        %2275 = vmatprep.subr.bf16.mxu0 %v1817
        %2276 = vmatpush2.bf16.msra.mxu0 %v1816
        %2277 = vmatprep.subr.bf16.mxu0 %v1813
        %2278 = vmatpush2.bf16.msra.mxu0 %v1812
        %2279 = vmatprep.subr.bf16.mxu0 %v1809
        %2280 = vmatpush2.bf16.msra.mxu0 %v1808
        %2281 = vmatprep.subr.bf16.mxu0 %v1805
        %2282 = vmatpush2.bf16.msra.mxu0 %v1804
        %2283 = vmatprep.subr.bf16.mxu0 %v1801
        %2284 = vmatpush2.bf16.msra.mxu0 %v1800
        %2285 = vmatprep.subr.bf16.mxu0 %v1797
        %2286 = vmatpush2.bf16.msra.mxu0 %v1796
        %2287 = vmatprep.subr.bf16.mxu0 %v1793
        %2288 = vmatpush2.bf16.msra.mxu0 %v1792
        %2289 = vmatprep.mubr.bf16.mxu0 %v915
        %2290 = vmatmul.mubr.bf16.gmra.mxu0 %v914
        %v2291 = vpop.f32.mrf.mxu0
        %v2292 = vadd.f32 %v2179, %v2291
        %v2293 = vpop.f32.mrf.mxu0
        %v2294 = vadd.f32 %v2181, %v2293
        %v2295 = vpop.f32.mrf.mxu0
        %v2296 = vadd.f32 %v2183, %v2295
        %v2297 = vpop.f32.mrf.mxu0
        %v2298 = vadd.f32 %v2185, %v2297
        %2299 = vmatprep.mubr.bf16.mxu0 %v922
        %2300 = vmatmul.mubr.bf16.gmra.mxu0 %v921
        %v2301 = vpop.f32.mrf.mxu0
        %v2302 = vadd.f32 %v2189, %v2301
        %v2303 = vpop.f32.mrf.mxu0
        %v2304 = vadd.f32 %v2191, %v2303
        %v2305 = vpop.f32.mrf.mxu0
        %v2306 = vadd.f32 %v2193, %v2305
        %v2307 = vpop.f32.mrf.mxu0
        %v2308 = vadd.f32 %v2195, %v2307
        %2309 = vmatprep.mubr.bf16.mxu0 %v929
        %2310 = vmatmul.mubr.bf16.gmra.mxu0 %v928
        %v2311 = vpop.f32.mrf.mxu0
        %v2312 = vadd.f32 %v2199, %v2311
        %v2313 = vpop.f32.mrf.mxu0
        %v2314 = vadd.f32 %v2201, %v2313
        %v2315 = vpop.f32.mrf.mxu0
        %v2316 = vadd.f32 %v2203, %v2315
        %v2317 = vpop.f32.mrf.mxu0
        %v2318 = vadd.f32 %v2205, %v2317
        %2319 = vmatprep.mubr.bf16.mxu0 %v936
        %2320 = vmatmul.mubr.bf16.gmra.mxu0 %v935
        %v2321 = vpop.f32.mrf.mxu0
        %v2322 = vadd.f32 %v2209, %v2321
        %v2323 = vpop.f32.mrf.mxu0
        %v2324 = vadd.f32 %v2211, %v2323
        %v2325 = vpop.f32.mrf.mxu0
        %v2326 = vadd.f32 %v2213, %v2325
        %v2327 = vpop.f32.mrf.mxu0
        %v2328 = vadd.f32 %v2215, %v2327
        %2329 = vmatprep.mubr.bf16.mxu0 %v943
        %2330 = vmatmul.mubr.bf16.gmra.mxu0 %v942
        %v2331 = vpop.f32.mrf.mxu0
        %v2332 = vadd.f32 %v2219, %v2331
        %v2333 = vpop.f32.mrf.mxu0
        %v2334 = vadd.f32 %v2221, %v2333
        %v2335 = vpop.f32.mrf.mxu0
        %v2336 = vadd.f32 %v2223, %v2335
        %v2337 = vpop.f32.mrf.mxu0
        %v2338 = vadd.f32 %v2225, %v2337
        %2339 = vmatprep.mubr.bf16.mxu0 %v950
        %2340 = vmatmul.mubr.bf16.gmra.mxu0 %v949
        %v2341 = vpop.f32.mrf.mxu0
        %v2342 = vadd.f32 %v2229, %v2341
        %v2343 = vpop.f32.mrf.mxu0
        %v2344 = vadd.f32 %v2231, %v2343
        %v2345 = vpop.f32.mrf.mxu0
        %v2346 = vadd.f32 %v2233, %v2345
        %v2347 = vpop.f32.mrf.mxu0
        %v2348 = vadd.f32 %v2235, %v2347
        %2349 = vmatprep.mubr.bf16.mxu0 %v957
        %2350 = vmatmul.mubr.bf16.gmra.mxu0 %v956
        %v2351 = vpop.f32.mrf.mxu0
        %v2352 = vadd.f32 %v2239, %v2351
        %v2353 = vpop.f32.mrf.mxu0
        %v2354 = vadd.f32 %v2241, %v2353
        %v2355 = vpop.f32.mrf.mxu0
        %v2356 = vadd.f32 %v2243, %v2355
        %v2357 = vpop.f32.mrf.mxu0
        %v2358 = vadd.f32 %v2245, %v2357
        %2359 = vmatprep.mubr.bf16.mxu0 %v964
        %2360 = vmatmul.mubr.bf16.gmra.mxu0 %v963
        %v2361 = vpop.f32.mrf.mxu0
        %v2362 = vadd.f32 %v2249, %v2361
        %v2363 = vpop.f32.mrf.mxu0
        %v2364 = vadd.f32 %v2251, %v2363
        %v2365 = vpop.f32.mrf.mxu0
        %v2366 = vadd.f32 %v2253, %v2365
        %v2367 = vpop.f32.mrf.mxu0
        %v2368 = vadd.f32 %v2255, %v2367
        %2369 = vdwg.mxu0
        %2370 = vmatprep.subr.bf16.mxu0 %v1853
        %2371 = vmatpush1.bf16.msra.mxu0 %v1852
        %2372 = vmatprep.subr.bf16.mxu0 %v1849
        %2373 = vmatpush1.bf16.msra.mxu0 %v1848
        %2374 = vmatprep.subr.bf16.mxu0 %v1845
        %2375 = vmatpush1.bf16.msra.mxu0 %v1844
        %2376 = vmatprep.subr.bf16.mxu0 %v1841
        %2377 = vmatpush1.bf16.msra.mxu0 %v1840
        %2378 = vmatprep.subr.bf16.mxu0 %v1837
        %2379 = vmatpush1.bf16.msra.mxu0 %v1836
        %2380 = vmatprep.subr.bf16.mxu0 %v1833
        %2381 = vmatpush1.bf16.msra.mxu0 %v1832
        %2382 = vmatprep.subr.bf16.mxu0 %v1829
        %2383 = vmatpush1.bf16.msra.mxu0 %v1828
        %2384 = vmatprep.subr.bf16.mxu0 %v1825
        %2385 = vmatpush1.bf16.msra.mxu0 %v1824
        %2386 = vmatprep.subr.bf16.mxu0 %v1885
        %2387 = vmatpush2.bf16.msra.mxu0 %v1884
        %2388 = vmatprep.subr.bf16.mxu0 %v1881
        %2389 = vmatpush2.bf16.msra.mxu0 %v1880
        %2390 = vmatprep.subr.bf16.mxu0 %v1877
        %2391 = vmatpush2.bf16.msra.mxu0 %v1876
        %2392 = vmatprep.subr.bf16.mxu0 %v1873
        %2393 = vmatpush2.bf16.msra.mxu0 %v1872
        %2394 = vmatprep.subr.bf16.mxu0 %v1869
        %2395 = vmatpush2.bf16.msra.mxu0 %v1868
        %2396 = vmatprep.subr.bf16.mxu0 %v1865
        %2397 = vmatpush2.bf16.msra.mxu0 %v1864
        %2398 = vmatprep.subr.bf16.mxu0 %v1861
        %2399 = vmatpush2.bf16.msra.mxu0 %v1860
        %2400 = vmatprep.subr.bf16.mxu0 %v1857
        %2401 = vmatpush2.bf16.msra.mxu0 %v1856
        %2402 = vmatprep.mubr.bf16.mxu0 %v917
        %2403 = vmatmul.mubr.bf16.gmra.mxu0 %v916
        %v2404 = vpop.f32.mrf.mxu0
        %v2405 = vadd.f32 %v2292, %v2404
        %v2406 = vpop.f32.mrf.mxu0
        %v2407 = vadd.f32 %v2294, %v2406
        %v2408 = vpop.f32.mrf.mxu0
        %v2409 = vadd.f32 %v2296, %v2408
        %v2410 = vpop.f32.mrf.mxu0
        %v2411 = vadd.f32 %v2298, %v2410
        %2412 = vmatprep.mubr.bf16.mxu0 %v924
        %2413 = vmatmul.mubr.bf16.gmra.mxu0 %v923
        %v2414 = vpop.f32.mrf.mxu0
        %v2415 = vadd.f32 %v2302, %v2414
        %v2416 = vpop.f32.mrf.mxu0
        %v2417 = vadd.f32 %v2304, %v2416
        %v2418 = vpop.f32.mrf.mxu0
        %v2419 = vadd.f32 %v2306, %v2418
        %v2420 = vpop.f32.mrf.mxu0
        %v2421 = vadd.f32 %v2308, %v2420
        %2422 = vmatprep.mubr.bf16.mxu0 %v931
        %2423 = vmatmul.mubr.bf16.gmra.mxu0 %v930
        %v2424 = vpop.f32.mrf.mxu0
        %v2425 = vadd.f32 %v2312, %v2424
        %v2426 = vpop.f32.mrf.mxu0
        %v2427 = vadd.f32 %v2314, %v2426
        %v2428 = vpop.f32.mrf.mxu0
        %v2429 = vadd.f32 %v2316, %v2428
        %v2430 = vpop.f32.mrf.mxu0
        %v2431 = vadd.f32 %v2318, %v2430
        %2432 = vmatprep.mubr.bf16.mxu0 %v938
        %2433 = vmatmul.mubr.bf16.gmra.mxu0 %v937
        %v2434 = vpop.f32.mrf.mxu0
        %v2435 = vadd.f32 %v2322, %v2434
        %v2436 = vpop.f32.mrf.mxu0
        %v2437 = vadd.f32 %v2324, %v2436
        %v2438 = vpop.f32.mrf.mxu0
        %v2439 = vadd.f32 %v2326, %v2438
        %v2440 = vpop.f32.mrf.mxu0
        %v2441 = vadd.f32 %v2328, %v2440
        %2442 = vmatprep.mubr.bf16.mxu0 %v945
        %2443 = vmatmul.mubr.bf16.gmra.mxu0 %v944
        %v2444 = vpop.f32.mrf.mxu0
        %v2445 = vadd.f32 %v2332, %v2444
        %v2446 = vpop.f32.mrf.mxu0
        %v2447 = vadd.f32 %v2334, %v2446
        %v2448 = vpop.f32.mrf.mxu0
        %v2449 = vadd.f32 %v2336, %v2448
        %v2450 = vpop.f32.mrf.mxu0
        %v2451 = vadd.f32 %v2338, %v2450
        %2452 = vmatprep.mubr.bf16.mxu0 %v952
        %2453 = vmatmul.mubr.bf16.gmra.mxu0 %v951
        %v2454 = vpop.f32.mrf.mxu0
        %v2455 = vadd.f32 %v2342, %v2454
        %v2456 = vpop.f32.mrf.mxu0
        %v2457 = vadd.f32 %v2344, %v2456
        %v2458 = vpop.f32.mrf.mxu0
        %v2459 = vadd.f32 %v2346, %v2458
        %v2460 = vpop.f32.mrf.mxu0
        %v2461 = vadd.f32 %v2348, %v2460
        %2462 = vmatprep.mubr.bf16.mxu0 %v959
        %2463 = vmatmul.mubr.bf16.gmra.mxu0 %v958
        %v2464 = vpop.f32.mrf.mxu0
        %v2465 = vadd.f32 %v2352, %v2464
        %v2466 = vpop.f32.mrf.mxu0
        %v2467 = vadd.f32 %v2354, %v2466
        %v2468 = vpop.f32.mrf.mxu0
        %v2469 = vadd.f32 %v2356, %v2468
        %v2470 = vpop.f32.mrf.mxu0
        %v2471 = vadd.f32 %v2358, %v2470
        %2472 = vmatprep.mubr.bf16.mxu0 %v966
        %2473 = vmatmul.mubr.bf16.gmra.mxu0 %v965
        %v2474 = vpop.f32.mrf.mxu0
        %v2475 = vadd.f32 %v2362, %v2474
        %v2476 = vpop.f32.mrf.mxu0
        %v2477 = vadd.f32 %v2364, %v2476
        %v2478 = vpop.f32.mrf.mxu0
        %v2479 = vadd.f32 %v2366, %v2478
        %v2480 = vpop.f32.mrf.mxu0
        %v2481 = vadd.f32 %v2368, %v2480
        %2482 = vdwg.mxu0
        %2483 = vmatprep.subr.bf16.mxu0 %v1917
        %2484 = vmatpush1.bf16.msra.mxu0 %v1916
        %2485 = vmatprep.subr.bf16.mxu0 %v1913
        %2486 = vmatpush1.bf16.msra.mxu0 %v1912
        %2487 = vmatprep.subr.bf16.mxu0 %v1909
        %2488 = vmatpush1.bf16.msra.mxu0 %v1908
        %2489 = vmatprep.subr.bf16.mxu0 %v1905
        %2490 = vmatpush1.bf16.msra.mxu0 %v1904
        %2491 = vmatprep.subr.bf16.mxu0 %v1901
        %2492 = vmatpush1.bf16.msra.mxu0 %v1900
        %2493 = vmatprep.subr.bf16.mxu0 %v1897
        %2494 = vmatpush1.bf16.msra.mxu0 %v1896
        %2495 = vmatprep.subr.bf16.mxu0 %v1893
        %2496 = vmatpush1.bf16.msra.mxu0 %v1892
        %2497 = vmatprep.subr.bf16.mxu0 %v1889
        %2498 = vmatpush1.bf16.msra.mxu0 %v1888
        %2499 = vmatprep.subr.bf16.mxu0 0
        %2500 = vmatpush2.bf16.msra.mxu0 0
        %2501 = vmatprep.subr.bf16.mxu0 0
        %2502 = vmatpush2.bf16.msra.mxu0 0
        %2503 = vmatprep.subr.bf16.mxu0 0
        %2504 = vmatpush2.bf16.msra.mxu0 0
        %2505 = vmatprep.subr.bf16.mxu0 0
        %2506 = vmatpush2.bf16.msra.mxu0 0
        %2507 = vmatprep.subr.bf16.mxu0 0
        %2508 = vmatpush2.bf16.msra.mxu0 0
        %2509 = vmatprep.subr.bf16.mxu0 0
        %2510 = vmatpush2.bf16.msra.mxu0 0
        %2511 = vmatprep.subr.bf16.mxu0 0
        %2512 = vmatpush2.bf16.msra.mxu0 0
        %2513 = vmatprep.subr.bf16.mxu0 0
        %2514 = vmatpush2.bf16.msra.mxu0 0
        %2515 = vmatprep.mubr.bf16.mxu0 0
        %2516 = vmatmul.mubr.bf16.gmra.mxu0 %v918
        %v2517 = vpop.f32.mrf.mxu0
        %v2518 = vadd.f32 %v2405, %v2517
        %v2519 = vpop.f32.mrf.mxu0
        %v2520 = vadd.f32 %v2407, %v2519
        %v2521 = vpop.f32.mrf.mxu0
        %v2522 = vadd.f32 %v2409, %v2521
        %v2523 = vpop.f32.mrf.mxu0
        %v2524 = vadd.f32 %v2411, %v2523
        %2525 = vmatprep.mubr.bf16.mxu0 0
        %2526 = vmatmul.mubr.bf16.gmra.mxu0 %v925
        %v2527 = vpop.f32.mrf.mxu0
        %v2528 = vadd.f32 %v2415, %v2527
        %v2529 = vpop.f32.mrf.mxu0
        %v2530 = vadd.f32 %v2417, %v2529
        %v2531 = vpop.f32.mrf.mxu0
        %v2532 = vadd.f32 %v2419, %v2531
        %v2533 = vpop.f32.mrf.mxu0
        %v2534 = vadd.f32 %v2421, %v2533
        %2535 = vmatprep.mubr.bf16.mxu0 0
        %2536 = vmatmul.mubr.bf16.gmra.mxu0 %v932
        %v2537 = vpop.f32.mrf.mxu0
        %v2538 = vadd.f32 %v2425, %v2537
        %v2539 = vpop.f32.mrf.mxu0
        %v2540 = vadd.f32 %v2427, %v2539
        %v2541 = vpop.f32.mrf.mxu0
        %v2542 = vadd.f32 %v2429, %v2541
        %v2543 = vpop.f32.mrf.mxu0
        %v2544 = vadd.f32 %v2431, %v2543
        %2545 = vmatprep.mubr.bf16.mxu0 0
        %2546 = vmatmul.mubr.bf16.gmra.mxu0 %v939
        %v2547 = vpop.f32.mrf.mxu0
        %v2548 = vadd.f32 %v2435, %v2547
        %v2549 = vpop.f32.mrf.mxu0
        %v2550 = vadd.f32 %v2437, %v2549
        %v2551 = vpop.f32.mrf.mxu0
        %v2552 = vadd.f32 %v2439, %v2551
        %v2553 = vpop.f32.mrf.mxu0
        %v2554 = vadd.f32 %v2441, %v2553
        %2555 = vmatprep.mubr.bf16.mxu0 0
        %2556 = vmatmul.mubr.bf16.gmra.mxu0 %v946
        %v2557 = vpop.f32.mrf.mxu0
        %v2558 = vadd.f32 %v2445, %v2557
        %v2559 = vpop.f32.mrf.mxu0
        %v2560 = vadd.f32 %v2447, %v2559
        %v2561 = vpop.f32.mrf.mxu0
        %v2562 = vadd.f32 %v2449, %v2561
        %v2563 = vpop.f32.mrf.mxu0
        %v2564 = vadd.f32 %v2451, %v2563
        %2565 = vmatprep.mubr.bf16.mxu0 0
        %2566 = vmatmul.mubr.bf16.gmra.mxu0 %v953
        %v2567 = vpop.f32.mrf.mxu0
        %v2568 = vadd.f32 %v2455, %v2567
        %v2569 = vpop.f32.mrf.mxu0
        %v2570 = vadd.f32 %v2457, %v2569
        %v2571 = vpop.f32.mrf.mxu0
        %v2572 = vadd.f32 %v2459, %v2571
        %v2573 = vpop.f32.mrf.mxu0
        %v2574 = vadd.f32 %v2461, %v2573
        %2575 = vmatprep.mubr.bf16.mxu0 0
        %2576 = vmatmul.mubr.bf16.gmra.mxu0 %v960
        %v2577 = vpop.f32.mrf.mxu0
        %v2578 = vadd.f32 %v2465, %v2577
        %v2579 = vpop.f32.mrf.mxu0
        %v2580 = vadd.f32 %v2467, %v2579
        %v2581 = vpop.f32.mrf.mxu0
        %v2582 = vadd.f32 %v2469, %v2581
        %v2583 = vpop.f32.mrf.mxu0
        %v2584 = vadd.f32 %v2471, %v2583
        %2585 = vmatprep.mubr.bf16.mxu0 0
        %2586 = vmatmul.mubr.bf16.gmra.mxu0 %v967
        %v2587 = vpop.f32.mrf.mxu0
        %v2588 = vadd.f32 %v2475, %v2587
        %v2589 = vpop.f32.mrf.mxu0
        %v2590 = vadd.f32 %v2477, %v2589
        %v2591 = vpop.f32.mrf.mxu0
        %v2592 = vadd.f32 %v2479, %v2591
        %v2593 = vpop.f32.mrf.mxu0
        %v2594 = vadd.f32 %v2481, %v2593
        %2595 = vdwg.mxu0
        %2596 = vmatprep.subr.bf16.mxu0 %v1727
        %2597 = vmatpush1.bf16.msra.mxu0 %v1726
        %2598 = vmatprep.subr.bf16.mxu0 %v1723
        %2599 = vmatpush1.bf16.msra.mxu0 %v1722
        %2600 = vmatprep.subr.bf16.mxu0 %v1719
        %2601 = vmatpush1.bf16.msra.mxu0 %v1718
        %2602 = vmatprep.subr.bf16.mxu0 %v1715
        %2603 = vmatpush1.bf16.msra.mxu0 %v1714
        %2604 = vmatprep.subr.bf16.mxu0 %v1711
        %2605 = vmatpush1.bf16.msra.mxu0 %v1710
        %2606 = vmatprep.subr.bf16.mxu0 %v1707
        %2607 = vmatpush1.bf16.msra.mxu0 %v1706
        %2608 = vmatprep.subr.bf16.mxu0 %v1703
        %2609 = vmatpush1.bf16.msra.mxu0 %v1702
        %2610 = vmatprep.subr.bf16.mxu0 %v1699
        %2611 = vmatpush1.bf16.msra.mxu0 %v1698
        %2612 = vmatprep.subr.bf16.mxu0 %v1759
        %2613 = vmatpush2.bf16.msra.mxu0 %v1758
        %2614 = vmatprep.subr.bf16.mxu0 %v1755
        %2615 = vmatpush2.bf16.msra.mxu0 %v1754
        %2616 = vmatprep.subr.bf16.mxu0 %v1751
        %2617 = vmatpush2.bf16.msra.mxu0 %v1750
        %2618 = vmatprep.subr.bf16.mxu0 %v1747
        %2619 = vmatpush2.bf16.msra.mxu0 %v1746
        %2620 = vmatprep.subr.bf16.mxu0 %v1743
        %2621 = vmatpush2.bf16.msra.mxu0 %v1742
        %2622 = vmatprep.subr.bf16.mxu0 %v1739
        %2623 = vmatpush2.bf16.msra.mxu0 %v1738
        %2624 = vmatprep.subr.bf16.mxu0 %v1735
        %2625 = vmatpush2.bf16.msra.mxu0 %v1734
        %2626 = vmatprep.subr.bf16.mxu0 %v1731
        %2627 = vmatpush2.bf16.msra.mxu0 %v1730
        %2628 = vmatprep.mubr.bf16.mxu0 %v913
        %2629 = vmatmul.mubr.bf16.gmra.mxu0 %v912
        %v2630 = vpop.f32.mrf.mxu0
        %v2631 = vadd.f32 %v727, %v2630
        %v2632 = vpop.f32.mrf.mxu0
        %v2633 = vadd.f32 %v731, %v2632
        %v2634 = vpop.f32.mrf.mxu0
        %v2635 = vadd.f32 %v727, %v2634
        %v2636 = vpop.f32.mrf.mxu0
        %v2637 = vadd.f32 %v731, %v2636
        %2638 = vmatprep.mubr.bf16.mxu0 %v920
        %2639 = vmatmul.mubr.bf16.gmra.mxu0 %v919
        %v2640 = vpop.f32.mrf.mxu0
        %v2641 = vadd.f32 %v727, %v2640
        %v2642 = vpop.f32.mrf.mxu0
        %v2643 = vadd.f32 %v731, %v2642
        %v2644 = vpop.f32.mrf.mxu0
        %v2645 = vadd.f32 %v727, %v2644
        %v2646 = vpop.f32.mrf.mxu0
        %v2647 = vadd.f32 %v731, %v2646
        %2648 = vmatprep.mubr.bf16.mxu0 %v927
        %2649 = vmatmul.mubr.bf16.gmra.mxu0 %v926
        %v2650 = vpop.f32.mrf.mxu0
        %v2651 = vadd.f32 %v727, %v2650
        %v2652 = vpop.f32.mrf.mxu0
        %v2653 = vadd.f32 %v731, %v2652
        %v2654 = vpop.f32.mrf.mxu0
        %v2655 = vadd.f32 %v727, %v2654
        %v2656 = vpop.f32.mrf.mxu0
        %v2657 = vadd.f32 %v731, %v2656
        %2658 = vmatprep.mubr.bf16.mxu0 %v934
        %2659 = vmatmul.mubr.bf16.gmra.mxu0 %v933
        %v2660 = vpop.f32.mrf.mxu0
        %v2661 = vadd.f32 %v727, %v2660
        %v2662 = vpop.f32.mrf.mxu0
        %v2663 = vadd.f32 %v731, %v2662
        %v2664 = vpop.f32.mrf.mxu0
        %v2665 = vadd.f32 %v727, %v2664
        %v2666 = vpop.f32.mrf.mxu0
        %v2667 = vadd.f32 %v731, %v2666
        %2668 = vmatprep.mubr.bf16.mxu0 %v941
        %2669 = vmatmul.mubr.bf16.gmra.mxu0 %v940
        %v2670 = vpop.f32.mrf.mxu0
        %v2671 = vadd.f32 %v727, %v2670
        %v2672 = vpop.f32.mrf.mxu0
        %v2673 = vadd.f32 %v731, %v2672
        %v2674 = vpop.f32.mrf.mxu0
        %v2675 = vadd.f32 %v727, %v2674
        %v2676 = vpop.f32.mrf.mxu0
        %v2677 = vadd.f32 %v731, %v2676
        %2678 = vmatprep.mubr.bf16.mxu0 %v948
        %2679 = vmatmul.mubr.bf16.gmra.mxu0 %v947
        %v2680 = vpop.f32.mrf.mxu0
        %v2681 = vadd.f32 %v727, %v2680
        %v2682 = vpop.f32.mrf.mxu0
        %v2683 = vadd.f32 %v731, %v2682
        %v2684 = vpop.f32.mrf.mxu0
        %v2685 = vadd.f32 %v727, %v2684
        %v2686 = vpop.f32.mrf.mxu0
        %v2687 = vadd.f32 %v731, %v2686
        %2688 = vmatprep.mubr.bf16.mxu0 %v955
        %2689 = vmatmul.mubr.bf16.gmra.mxu0 %v954
        %v2690 = vpop.f32.mrf.mxu0
        %v2691 = vadd.f32 %v727, %v2690
        %v2692 = vpop.f32.mrf.mxu0
        %v2693 = vadd.f32 %v731, %v2692
        %v2694 = vpop.f32.mrf.mxu0
        %v2695 = vadd.f32 %v727, %v2694
        %v2696 = vpop.f32.mrf.mxu0
        %v2697 = vadd.f32 %v731, %v2696
        %2698 = vmatprep.mubr.bf16.mxu0 %v962
        %2699 = vmatmul.mubr.bf16.gmra.mxu0 %v961
        %v2700 = vpop.f32.mrf.mxu0
        %v2701 = vadd.f32 %v727, %v2700
        %v2702 = vpop.f32.mrf.mxu0
        %v2703 = vadd.f32 %v731, %v2702
        %v2704 = vpop.f32.mrf.mxu0
        %v2705 = vadd.f32 %v727, %v2704
        %v2706 = vpop.f32.mrf.mxu0
        %v2707 = vadd.f32 %v731, %v2706
        %2708 = vdwg.mxu0
        %2709 = vmatprep.subr.bf16.mxu0 %v1791
        %2710 = vmatpush1.bf16.msra.mxu0 %v1790
        %2711 = vmatprep.subr.bf16.mxu0 %v1787
        %2712 = vmatpush1.bf16.msra.mxu0 %v1786
        %2713 = vmatprep.subr.bf16.mxu0 %v1783
        %2714 = vmatpush1.bf16.msra.mxu0 %v1782
        %2715 = vmatprep.subr.bf16.mxu0 %v1779
        %2716 = vmatpush1.bf16.msra.mxu0 %v1778
        %2717 = vmatprep.subr.bf16.mxu0 %v1775
        %2718 = vmatpush1.bf16.msra.mxu0 %v1774
        %2719 = vmatprep.subr.bf16.mxu0 %v1771
        %2720 = vmatpush1.bf16.msra.mxu0 %v1770
        %2721 = vmatprep.subr.bf16.mxu0 %v1767
        %2722 = vmatpush1.bf16.msra.mxu0 %v1766
        %2723 = vmatprep.subr.bf16.mxu0 %v1763
        %2724 = vmatpush1.bf16.msra.mxu0 %v1762
        %2725 = vmatprep.subr.bf16.mxu0 %v1823
        %2726 = vmatpush2.bf16.msra.mxu0 %v1822
        %2727 = vmatprep.subr.bf16.mxu0 %v1819
        %2728 = vmatpush2.bf16.msra.mxu0 %v1818
        %2729 = vmatprep.subr.bf16.mxu0 %v1815
        %2730 = vmatpush2.bf16.msra.mxu0 %v1814
        %2731 = vmatprep.subr.bf16.mxu0 %v1811
        %2732 = vmatpush2.bf16.msra.mxu0 %v1810
        %2733 = vmatprep.subr.bf16.mxu0 %v1807
        %2734 = vmatpush2.bf16.msra.mxu0 %v1806
        %2735 = vmatprep.subr.bf16.mxu0 %v1803
        %2736 = vmatpush2.bf16.msra.mxu0 %v1802
        %2737 = vmatprep.subr.bf16.mxu0 %v1799
        %2738 = vmatpush2.bf16.msra.mxu0 %v1798
        %2739 = vmatprep.subr.bf16.mxu0 %v1795
        %2740 = vmatpush2.bf16.msra.mxu0 %v1794
        %2741 = vmatprep.mubr.bf16.mxu0 %v915
        %2742 = vmatmul.mubr.bf16.gmra.mxu0 %v914
        %v2743 = vpop.f32.mrf.mxu0
        %v2744 = vadd.f32 %v2631, %v2743
        %v2745 = vpop.f32.mrf.mxu0
        %v2746 = vadd.f32 %v2633, %v2745
        %v2747 = vpop.f32.mrf.mxu0
        %v2748 = vadd.f32 %v2635, %v2747
        %v2749 = vpop.f32.mrf.mxu0
        %v2750 = vadd.f32 %v2637, %v2749
        %2751 = vmatprep.mubr.bf16.mxu0 %v922
        %2752 = vmatmul.mubr.bf16.gmra.mxu0 %v921
        %v2753 = vpop.f32.mrf.mxu0
        %v2754 = vadd.f32 %v2641, %v2753
        %v2755 = vpop.f32.mrf.mxu0
        %v2756 = vadd.f32 %v2643, %v2755
        %v2757 = vpop.f32.mrf.mxu0
        %v2758 = vadd.f32 %v2645, %v2757
        %v2759 = vpop.f32.mrf.mxu0
        %v2760 = vadd.f32 %v2647, %v2759
        %2761 = vmatprep.mubr.bf16.mxu0 %v929
        %2762 = vmatmul.mubr.bf16.gmra.mxu0 %v928
        %v2763 = vpop.f32.mrf.mxu0
        %v2764 = vadd.f32 %v2651, %v2763
        %v2765 = vpop.f32.mrf.mxu0
        %v2766 = vadd.f32 %v2653, %v2765
        %v2767 = vpop.f32.mrf.mxu0
        %v2768 = vadd.f32 %v2655, %v2767
        %v2769 = vpop.f32.mrf.mxu0
        %v2770 = vadd.f32 %v2657, %v2769
        %2771 = vmatprep.mubr.bf16.mxu0 %v936
        %2772 = vmatmul.mubr.bf16.gmra.mxu0 %v935
        %v2773 = vpop.f32.mrf.mxu0
        %v2774 = vadd.f32 %v2661, %v2773
        %v2775 = vpop.f32.mrf.mxu0
        %v2776 = vadd.f32 %v2663, %v2775
        %v2777 = vpop.f32.mrf.mxu0
        %v2778 = vadd.f32 %v2665, %v2777
        %v2779 = vpop.f32.mrf.mxu0
        %v2780 = vadd.f32 %v2667, %v2779
        %2781 = vmatprep.mubr.bf16.mxu0 %v943
        %2782 = vmatmul.mubr.bf16.gmra.mxu0 %v942
        %v2783 = vpop.f32.mrf.mxu0
        %v2784 = vadd.f32 %v2671, %v2783
        %v2785 = vpop.f32.mrf.mxu0
        %v2786 = vadd.f32 %v2673, %v2785
        %v2787 = vpop.f32.mrf.mxu0
        %v2788 = vadd.f32 %v2675, %v2787
        %v2789 = vpop.f32.mrf.mxu0
        %v2790 = vadd.f32 %v2677, %v2789
        %2791 = vmatprep.mubr.bf16.mxu0 %v950
        %2792 = vmatmul.mubr.bf16.gmra.mxu0 %v949
        %v2793 = vpop.f32.mrf.mxu0
        %v2794 = vadd.f32 %v2681, %v2793
        %v2795 = vpop.f32.mrf.mxu0
        %v2796 = vadd.f32 %v2683, %v2795
        %v2797 = vpop.f32.mrf.mxu0
        %v2798 = vadd.f32 %v2685, %v2797
        %v2799 = vpop.f32.mrf.mxu0
        %v2800 = vadd.f32 %v2687, %v2799
        %2801 = vmatprep.mubr.bf16.mxu0 %v957
        %2802 = vmatmul.mubr.bf16.gmra.mxu0 %v956
        %v2803 = vpop.f32.mrf.mxu0
        %v2804 = vadd.f32 %v2691, %v2803
        %v2805 = vpop.f32.mrf.mxu0
        %v2806 = vadd.f32 %v2693, %v2805
        %v2807 = vpop.f32.mrf.mxu0
        %v2808 = vadd.f32 %v2695, %v2807
        %v2809 = vpop.f32.mrf.mxu0
        %v2810 = vadd.f32 %v2697, %v2809
        %2811 = vmatprep.mubr.bf16.mxu0 %v964
        %2812 = vmatmul.mubr.bf16.gmra.mxu0 %v963
        %v2813 = vpop.f32.mrf.mxu0
        %v2814 = vadd.f32 %v2701, %v2813
        %v2815 = vpop.f32.mrf.mxu0
        %v2816 = vadd.f32 %v2703, %v2815
        %v2817 = vpop.f32.mrf.mxu0
        %v2818 = vadd.f32 %v2705, %v2817
        %v2819 = vpop.f32.mrf.mxu0
        %v2820 = vadd.f32 %v2707, %v2819
        %2821 = vdwg.mxu0
        %2822 = vmatprep.subr.bf16.mxu0 %v1855
        %2823 = vmatpush1.bf16.msra.mxu0 %v1854
        %2824 = vmatprep.subr.bf16.mxu0 %v1851
        %2825 = vmatpush1.bf16.msra.mxu0 %v1850
        %2826 = vmatprep.subr.bf16.mxu0 %v1847
        %2827 = vmatpush1.bf16.msra.mxu0 %v1846
        %2828 = vmatprep.subr.bf16.mxu0 %v1843
        %2829 = vmatpush1.bf16.msra.mxu0 %v1842
        %2830 = vmatprep.subr.bf16.mxu0 %v1839
        %2831 = vmatpush1.bf16.msra.mxu0 %v1838
        %2832 = vmatprep.subr.bf16.mxu0 %v1835
        %2833 = vmatpush1.bf16.msra.mxu0 %v1834
        %2834 = vmatprep.subr.bf16.mxu0 %v1831
        %2835 = vmatpush1.bf16.msra.mxu0 %v1830
        %2836 = vmatprep.subr.bf16.mxu0 %v1827
        %2837 = vmatpush1.bf16.msra.mxu0 %v1826
        %2838 = vmatprep.subr.bf16.mxu0 %v1887
        %2839 = vmatpush2.bf16.msra.mxu0 %v1886
        %2840 = vmatprep.subr.bf16.mxu0 %v1883
        %2841 = vmatpush2.bf16.msra.mxu0 %v1882
        %2842 = vmatprep.subr.bf16.mxu0 %v1879
        %2843 = vmatpush2.bf16.msra.mxu0 %v1878
        %2844 = vmatprep.subr.bf16.mxu0 %v1875
        %2845 = vmatpush2.bf16.msra.mxu0 %v1874
        %2846 = vmatprep.subr.bf16.mxu0 %v1871
        %2847 = vmatpush2.bf16.msra.mxu0 %v1870
        %2848 = vmatprep.subr.bf16.mxu0 %v1867
        %2849 = vmatpush2.bf16.msra.mxu0 %v1866
        %2850 = vmatprep.subr.bf16.mxu0 %v1863
        %2851 = vmatpush2.bf16.msra.mxu0 %v1862
        %2852 = vmatprep.subr.bf16.mxu0 %v1859
        %2853 = vmatpush2.bf16.msra.mxu0 %v1858
        %2854 = vmatprep.mubr.bf16.mxu0 %v917
        %2855 = vmatmul.mubr.bf16.gmra.mxu0 %v916
        %v2856 = vpop.f32.mrf.mxu0
        %v2857 = vadd.f32 %v2744, %v2856
        %v2858 = vpop.f32.mrf.mxu0
        %v2859 = vadd.f32 %v2746, %v2858
        %v2860 = vpop.f32.mrf.mxu0
        %v2861 = vadd.f32 %v2748, %v2860
        %v2862 = vpop.f32.mrf.mxu0
        %v2863 = vadd.f32 %v2750, %v2862
        %2864 = vmatprep.mubr.bf16.mxu0 %v924
        %2865 = vmatmul.mubr.bf16.gmra.mxu0 %v923
        %v2866 = vpop.f32.mrf.mxu0
        %v2867 = vadd.f32 %v2754, %v2866
        %v2868 = vpop.f32.mrf.mxu0
        %v2869 = vadd.f32 %v2756, %v2868
        %v2870 = vpop.f32.mrf.mxu0
        %v2871 = vadd.f32 %v2758, %v2870
        %v2872 = vpop.f32.mrf.mxu0
        %v2873 = vadd.f32 %v2760, %v2872
        %2874 = vmatprep.mubr.bf16.mxu0 %v931
        %2875 = vmatmul.mubr.bf16.gmra.mxu0 %v930
        %v2876 = vpop.f32.mrf.mxu0
        %v2877 = vadd.f32 %v2764, %v2876
        %v2878 = vpop.f32.mrf.mxu0
        %v2879 = vadd.f32 %v2766, %v2878
        %v2880 = vpop.f32.mrf.mxu0
        %v2881 = vadd.f32 %v2768, %v2880
        %v2882 = vpop.f32.mrf.mxu0
        %v2883 = vadd.f32 %v2770, %v2882
        %2884 = vmatprep.mubr.bf16.mxu0 %v938
        %2885 = vmatmul.mubr.bf16.gmra.mxu0 %v937
        %v2886 = vpop.f32.mrf.mxu0
        %v2887 = vadd.f32 %v2774, %v2886
        %v2888 = vpop.f32.mrf.mxu0
        %v2889 = vadd.f32 %v2776, %v2888
        %v2890 = vpop.f32.mrf.mxu0
        %v2891 = vadd.f32 %v2778, %v2890
        %v2892 = vpop.f32.mrf.mxu0
        %v2893 = vadd.f32 %v2780, %v2892
        %2894 = vmatprep.mubr.bf16.mxu0 %v945
        %2895 = vmatmul.mubr.bf16.gmra.mxu0 %v944
        %v2896 = vpop.f32.mrf.mxu0
        %v2897 = vadd.f32 %v2784, %v2896
        %v2898 = vpop.f32.mrf.mxu0
        %v2899 = vadd.f32 %v2786, %v2898
        %v2900 = vpop.f32.mrf.mxu0
        %v2901 = vadd.f32 %v2788, %v2900
        %v2902 = vpop.f32.mrf.mxu0
        %v2903 = vadd.f32 %v2790, %v2902
        %2904 = vmatprep.mubr.bf16.mxu0 %v952
        %2905 = vmatmul.mubr.bf16.gmra.mxu0 %v951
        %v2906 = vpop.f32.mrf.mxu0
        %v2907 = vadd.f32 %v2794, %v2906
        %v2908 = vpop.f32.mrf.mxu0
        %v2909 = vadd.f32 %v2796, %v2908
        %v2910 = vpop.f32.mrf.mxu0
        %v2911 = vadd.f32 %v2798, %v2910
        %v2912 = vpop.f32.mrf.mxu0
        %v2913 = vadd.f32 %v2800, %v2912
        %2914 = vmatprep.mubr.bf16.mxu0 %v959
        %2915 = vmatmul.mubr.bf16.gmra.mxu0 %v958
        %v2916 = vpop.f32.mrf.mxu0
        %v2917 = vadd.f32 %v2804, %v2916
        %v2918 = vpop.f32.mrf.mxu0
        %v2919 = vadd.f32 %v2806, %v2918
        %v2920 = vpop.f32.mrf.mxu0
        %v2921 = vadd.f32 %v2808, %v2920
        %v2922 = vpop.f32.mrf.mxu0
        %v2923 = vadd.f32 %v2810, %v2922
        %2924 = vmatprep.mubr.bf16.mxu0 %v966
        %2925 = vmatmul.mubr.bf16.gmra.mxu0 %v965
        %v2926 = vpop.f32.mrf.mxu0
        %v2927 = vadd.f32 %v2814, %v2926
        %v2928 = vpop.f32.mrf.mxu0
        %v2929 = vadd.f32 %v2816, %v2928
        %v2930 = vpop.f32.mrf.mxu0
        %v2931 = vadd.f32 %v2818, %v2930
        %v2932 = vpop.f32.mrf.mxu0
        %v2933 = vadd.f32 %v2820, %v2932
        %2934 = vdwg.mxu0
        %2935 = vmatprep.subr.bf16.mxu0 %v1919
        %2936 = vmatpush1.bf16.msra.mxu0 %v1918
        %2937 = vmatprep.subr.bf16.mxu0 %v1915
        %2938 = vmatpush1.bf16.msra.mxu0 %v1914
        %2939 = vmatprep.subr.bf16.mxu0 %v1911
        %2940 = vmatpush1.bf16.msra.mxu0 %v1910
        %2941 = vmatprep.subr.bf16.mxu0 %v1907
        %2942 = vmatpush1.bf16.msra.mxu0 %v1906
        %2943 = vmatprep.subr.bf16.mxu0 %v1903
        %2944 = vmatpush1.bf16.msra.mxu0 %v1902
        %2945 = vmatprep.subr.bf16.mxu0 %v1899
        %2946 = vmatpush1.bf16.msra.mxu0 %v1898
        %2947 = vmatprep.subr.bf16.mxu0 %v1895
        %2948 = vmatpush1.bf16.msra.mxu0 %v1894
        %2949 = vmatprep.subr.bf16.mxu0 %v1891
        %2950 = vmatpush1.bf16.msra.mxu0 %v1890
        %2951 = vmatprep.subr.bf16.mxu0 0
        %2952 = vmatpush2.bf16.msra.mxu0 0
        %2953 = vmatprep.subr.bf16.mxu0 0
        %2954 = vmatpush2.bf16.msra.mxu0 0
        %2955 = vmatprep.subr.bf16.mxu0 0
        %2956 = vmatpush2.bf16.msra.mxu0 0
        %2957 = vmatprep.subr.bf16.mxu0 0
        %2958 = vmatpush2.bf16.msra.mxu0 0
        %2959 = vmatprep.subr.bf16.mxu0 0
        %2960 = vmatpush2.bf16.msra.mxu0 0
        %2961 = vmatprep.subr.bf16.mxu0 0
        %2962 = vmatpush2.bf16.msra.mxu0 0
        %2963 = vmatprep.subr.bf16.mxu0 0
        %2964 = vmatpush2.bf16.msra.mxu0 0
        %2965 = vmatprep.subr.bf16.mxu0 0
        %2966 = vmatpush2.bf16.msra.mxu0 0
        %2967 = vmatprep.mubr.bf16.mxu0 0
        %2968 = vmatmul.mubr.bf16.gmra.mxu0 %v918
        %v2969 = vpop.f32.mrf.mxu0
        %v2970 = vadd.f32 %v2857, %v2969
        %v2971 = vpop.f32.mrf.mxu0
        %v2972 = vadd.f32 %v2859, %v2971
        %v2973 = vpop.f32.mrf.mxu0
        %v2974 = vadd.f32 %v2861, %v2973
        %v2975 = vpop.f32.mrf.mxu0
        %v2976 = vadd.f32 %v2863, %v2975
        %2977 = vmatprep.mubr.bf16.mxu0 0
        %2978 = vmatmul.mubr.bf16.gmra.mxu0 %v925
        %v2979 = vpop.f32.mrf.mxu0
        %v2980 = vadd.f32 %v2867, %v2979
        %v2981 = vpop.f32.mrf.mxu0
        %v2982 = vadd.f32 %v2869, %v2981
        %v2983 = vpop.f32.mrf.mxu0
        %v2984 = vadd.f32 %v2871, %v2983
        %v2985 = vpop.f32.mrf.mxu0
        %v2986 = vadd.f32 %v2873, %v2985
        %2987 = vmatprep.mubr.bf16.mxu0 0
        %2988 = vmatmul.mubr.bf16.gmra.mxu0 %v932
        %v2989 = vpop.f32.mrf.mxu0
        %v2990 = vadd.f32 %v2877, %v2989
        %v2991 = vpop.f32.mrf.mxu0
        %v2992 = vadd.f32 %v2879, %v2991
        %v2993 = vpop.f32.mrf.mxu0
        %v2994 = vadd.f32 %v2881, %v2993
        %v2995 = vpop.f32.mrf.mxu0
        %v2996 = vadd.f32 %v2883, %v2995
        %2997 = vmatprep.mubr.bf16.mxu0 0
        %2998 = vmatmul.mubr.bf16.gmra.mxu0 %v939
        %v2999 = vpop.f32.mrf.mxu0
        %v3000 = vadd.f32 %v2887, %v2999
        %v3001 = vpop.f32.mrf.mxu0
        %v3002 = vadd.f32 %v2889, %v3001
        %v3003 = vpop.f32.mrf.mxu0
        %v3004 = vadd.f32 %v2891, %v3003
        %v3005 = vpop.f32.mrf.mxu0
        %v3006 = vadd.f32 %v2893, %v3005
        %3007 = vmatprep.mubr.bf16.mxu0 0
        %3008 = vmatmul.mubr.bf16.gmra.mxu0 %v946
        %v3009 = vpop.f32.mrf.mxu0
        %v3010 = vadd.f32 %v2897, %v3009
        %v3011 = vpop.f32.mrf.mxu0
        %v3012 = vadd.f32 %v2899, %v3011
        %v3013 = vpop.f32.mrf.mxu0
        %v3014 = vadd.f32 %v2901, %v3013
        %v3015 = vpop.f32.mrf.mxu0
        %v3016 = vadd.f32 %v2903, %v3015
        %3017 = vmatprep.mubr.bf16.mxu0 0
        %3018 = vmatmul.mubr.bf16.gmra.mxu0 %v953
        %v3019 = vpop.f32.mrf.mxu0
        %v3020 = vadd.f32 %v2907, %v3019
        %v3021 = vpop.f32.mrf.mxu0
        %v3022 = vadd.f32 %v2909, %v3021
        %v3023 = vpop.f32.mrf.mxu0
        %v3024 = vadd.f32 %v2911, %v3023
        %v3025 = vpop.f32.mrf.mxu0
        %v3026 = vadd.f32 %v2913, %v3025
        %3027 = vmatprep.mubr.bf16.mxu0 0
        %3028 = vmatmul.mubr.bf16.gmra.mxu0 %v960
        %v3029 = vpop.f32.mrf.mxu0
        %v3030 = vadd.f32 %v2917, %v3029
        %v3031 = vpop.f32.mrf.mxu0
        %v3032 = vadd.f32 %v2919, %v3031
        %v3033 = vpop.f32.mrf.mxu0
        %v3034 = vadd.f32 %v2921, %v3033
        %v3035 = vpop.f32.mrf.mxu0
        %v3036 = vadd.f32 %v2923, %v3035
        %3037 = vmatprep.mubr.bf16.mxu0 0
        %3038 = vmatmul.mubr.bf16.gmra.mxu0 %v967
        %v3039 = vpop.f32.mrf.mxu0
        %v3040 = vadd.f32 %v2927, %v3039
        %v3041 = vpop.f32.mrf.mxu0
        %v3042 = vadd.f32 %v2929, %v3041
        %v3043 = vpop.f32.mrf.mxu0
        %v3044 = vadd.f32 %v2931, %v3043
        %v3045 = vpop.f32.mrf.mxu0
        %v3046 = vadd.f32 %v2933, %v3045
        %3047 = vdwg.mxu0
        %v3048 = vmax.f32 %v2518, 0.0
        %v3049 = vmax.f32 %v2520, 0.0
        %v3050 = vmax.f32 %v2970, 0.0
        %v3051 = vmax.f32 %v2972, 0.0
        %v3052 = vmax.f32 %v2522, 0.0
        %v3053 = vmax.f32 %v2524, 0.0
        %v3054 = vmax.f32 %v2974, 0.0
        %v3055 = vmax.f32 %v2976, 0.0
        %v3056 = vmax.f32 %v2528, 0.0
        %v3057 = vmax.f32 %v2530, 0.0
        %v3058 = vmax.f32 %v2980, 0.0
        %v3059 = vmax.f32 %v2982, 0.0
        %v3060 = vmax.f32 %v2532, 0.0
        %v3061 = vmax.f32 %v2534, 0.0
        %v3062 = vmax.f32 %v2984, 0.0
        %v3063 = vmax.f32 %v2986, 0.0
        %v3064 = vmax.f32 %v2538, 0.0
        %v3065 = vmax.f32 %v2540, 0.0
        %v3066 = vmax.f32 %v2990, 0.0
        %v3067 = vmax.f32 %v2992, 0.0
        %v3068 = vmax.f32 %v2542, 0.0
        %v3069 = vmax.f32 %v2544, 0.0
        %v3070 = vmax.f32 %v2994, 0.0
        %v3071 = vmax.f32 %v2996, 0.0
        %v3072 = vmax.f32 %v2548, 0.0
        %v3073 = vmax.f32 %v2550, 0.0
        %v3074 = vmax.f32 %v3000, 0.0
        %v3075 = vmax.f32 %v3002, 0.0
        %v3076 = vmax.f32 %v2552, 0.0
        %v3077 = vmax.f32 %v2554, 0.0
        %v3078 = vmax.f32 %v3004, 0.0
        %v3079 = vmax.f32 %v3006, 0.0
        %v3080 = vmax.f32 %v2558, 0.0
        %v3081 = vmax.f32 %v2560, 0.0
        %v3082 = vmax.f32 %v3010, 0.0
        %v3083 = vmax.f32 %v3012, 0.0
        %v3084 = vmax.f32 %v2562, 0.0
        %v3085 = vmax.f32 %v2564, 0.0
        %v3086 = vmax.f32 %v3014, 0.0
        %v3087 = vmax.f32 %v3016, 0.0
        %v3088 = vmax.f32 %v2568, 0.0
        %v3089 = vmax.f32 %v2570, 0.0
        %v3090 = vmax.f32 %v3020, 0.0
        %v3091 = vmax.f32 %v3022, 0.0
        %v3092 = vmax.f32 %v2572, 0.0
        %v3093 = vmax.f32 %v2574, 0.0
        %v3094 = vmax.f32 %v3024, 0.0
        %v3095 = vmax.f32 %v3026, 0.0
        %v3096 = vmax.f32 %v2578, 0.0
        %v3097 = vmax.f32 %v2580, 0.0
        %v3098 = vmax.f32 %v3030, 0.0
        %v3099 = vmax.f32 %v3032, 0.0
        %v3100 = vmax.f32 %v2582, 0.0
        %v3101 = vmax.f32 %v2584, 0.0
        %v3102 = vmax.f32 %v3034, 0.0
        %v3103 = vmax.f32 %v3036, 0.0
        %v3104 = vmax.f32 %v2588, 0.0
        %v3105 = vmax.f32 %v2590, 0.0
        %v3106 = vmax.f32 %v3040, 0.0
        %v3107 = vmax.f32 %v3042, 0.0
        %v3108 = vmax.f32 %v2592, 0.0
        %v3109 = vmax.f32 %v2594, 0.0
        %v3110 = vmax.f32 %v3044, 0.0
        %v3111 = vmax.f32 %v3046, 0.0
        %v3112 = vpack.c.bf16 %v3052, %v3048
        %v3113 = vpack.c.bf16 %v3053, %v3049
        %v3114 = vpack.c.bf16 %v3054, %v3050
        %v3115 = vpack.c.bf16 %v3055, %v3051
        %v3116 = vpack.c.bf16 %v3060, %v3056
        %v3117 = vpack.c.bf16 %v3061, %v3057
        %v3118 = vpack.c.bf16 %v3062, %v3058
        %v3119 = vpack.c.bf16 %v3063, %v3059
        %v3120 = vpack.c.bf16 %v3068, %v3064
        %v3121 = vpack.c.bf16 %v3069, %v3065
        %v3122 = vpack.c.bf16 %v3070, %v3066
        %v3123 = vpack.c.bf16 %v3071, %v3067
        %v3124 = vpack.c.bf16 %v3076, %v3072
        %v3125 = vpack.c.bf16 %v3077, %v3073
        %v3126 = vpack.c.bf16 %v3078, %v3074
        %v3127 = vpack.c.bf16 %v3079, %v3075
        %v3128 = vpack.c.bf16 %v3084, %v3080
        %v3129 = vpack.c.bf16 %v3085, %v3081
        %v3130 = vpack.c.bf16 %v3086, %v3082
        %v3131 = vpack.c.bf16 %v3087, %v3083
        %v3132 = vpack.c.bf16 %v3092, %v3088
        %v3133 = vpack.c.bf16 %v3093, %v3089
        %v3134 = vpack.c.bf16 %v3094, %v3090
        %v3135 = vpack.c.bf16 %v3095, %v3091
        %v3136 = vpack.c.bf16 %v3100, %v3096
        %v3137 = vpack.c.bf16 %v3101, %v3097
        %v3138 = vpack.c.bf16 %v3102, %v3098
        %v3139 = vpack.c.bf16 %v3103, %v3099
        %v3140 = vpack.c.bf16 %v3108, %v3104
        %v3141 = vpack.c.bf16 %v3109, %v3105
        %v3142 = vpack.c.bf16 %v3110, %v3106
        %v3143 = vpack.c.bf16 %v3111, %v3107
        %v3144 = vld [vmem:[#allocation8] sm:$0xff]
        %v3145 = vld [vmem:[#allocation8 + $0x8] sm:$0xff]
        %v3146 = vld [vmem:[#allocation8 + $0x10] sm:$0xff]
        %v3147 = vld [vmem:[#allocation8 + $0x18] sm:$0xff]
        %v3148 = vld [vmem:[#allocation8 + $0x20] sm:$0xff]
        %v3149 = vld [vmem:[#allocation8 + $0x28] sm:$0xff]
        %v3150 = vld [vmem:[#allocation8 + $0x30] sm:$0xff]
        %v3151 = vld [vmem:[#allocation8 + $0x38] sm:$0xff]
        %v3152 = vld [vmem:[#allocation8 + $0x40] sm:$0xff]
        %v3153 = vld [vmem:[#allocation8 + $0x48] sm:$0xff]
        %v3154 = vld [vmem:[#allocation8 + $0x50] sm:$0xff]
        %v3155 = vld [vmem:[#allocation8 + $0x58] sm:$0xff]
        %v3156 = vld [vmem:[#allocation8 + $0x60] sm:$0xff]
        %v3157 = vld [vmem:[#allocation8 + $0x68] sm:$0xff]
        %v3158 = vld [vmem:[#allocation8 + $0x70] sm:$0xff]
        %v3159 = vld [vmem:[#allocation8 + $0x78] sm:$0xff]
        %v3160 = vld [vmem:[#allocation8 + $0x80] sm:$0xff]
        %v3161 = vld [vmem:[#allocation8 + $0x88] sm:$0xff]
        %v3162 = vld [vmem:[#allocation8 + $0x90] sm:$0xff]
        %v3163 = vld [vmem:[#allocation8 + $0x98] sm:$0xff]
        %v3164 = vld [vmem:[#allocation8 + $0xa0] sm:$0xff]
        %v3165 = vld [vmem:[#allocation8 + $0xa8] sm:$0xff]
        %v3166 = vld [vmem:[#allocation8 + $0xb0] sm:$0xff]
        %v3167 = vld [vmem:[#allocation8 + $0xb8] sm:$0xff]
        %v3168 = vld [vmem:[#allocation8 + $0xc0] sm:$0xff]
        %v3169 = vld [vmem:[#allocation8 + $0xc8] sm:$0xff]
        %v3170 = vld [vmem:[#allocation8 + $0xd0] sm:$0xff]
        %v3171 = vld [vmem:[#allocation8 + $0xd8] sm:$0xff]
        %v3172 = vld [vmem:[#allocation8 + $0xe0] sm:$0xff]
        %v3173 = vld [vmem:[#allocation8 + $0xe8] sm:$0xff]
        %v3174 = vld [vmem:[#allocation8 + $0xf0] sm:$0xff]
        %v3175 = vld [vmem:[#allocation8 + $0xf8] sm:$0xff]
        %v3176 = vld [vmem:[#allocation8 + $0x100] sm:$0xff]
        %v3177 = vld [vmem:[#allocation8 + $0x108] sm:$0xff]
        %v3178 = vld [vmem:[#allocation8 + $0x110] sm:$0xff]
        %v3179 = vld [vmem:[#allocation8 + $0x118] sm:$0xff]
        %v3180 = vld [vmem:[#allocation8 + $0x120] sm:$0xff]
        %v3181 = vld [vmem:[#allocation8 + $0x128] sm:$0xff]
        %v3182 = vld [vmem:[#allocation8 + $0x130] sm:$0xff]
        %v3183 = vld [vmem:[#allocation8 + $0x138] sm:$0xff]
        %v3184 = vld [vmem:[#allocation8 + $0x140] sm:$0xff]
        %v3185 = vld [vmem:[#allocation8 + $0x148] sm:$0xff]
        %v3186 = vld [vmem:[#allocation8 + $0x150] sm:$0xff]
        %v3187 = vld [vmem:[#allocation8 + $0x158] sm:$0xff]
        %v3188 = vld [vmem:[#allocation8 + $0x160] sm:$0xff]
        %v3189 = vld [vmem:[#allocation8 + $0x168] sm:$0xff]
        %v3190 = vld [vmem:[#allocation8 + $0x170] sm:$0xff]
        %v3191 = vld [vmem:[#allocation8 + $0x178] sm:$0xff]
        %v3192 = vld [vmem:[#allocation8 + $0x180] sm:$0xff]
        %v3193 = vld [vmem:[#allocation8 + $0x188] sm:$0xff]
        %v3194 = vld [vmem:[#allocation8 + $0x190] sm:$0xff]
        %v3195 = vld [vmem:[#allocation8 + $0x198] sm:$0xff]
        %v3196 = vld [vmem:[#allocation8 + $0x1a0] sm:$0xff]
        %v3197 = vld [vmem:[#allocation8 + $0x1a8] sm:$0xff]
        %v3198 = vld [vmem:[#allocation8 + $0x1b0] sm:$0xff]
        %v3199 = vld [vmem:[#allocation8 + $0x1b8] sm:$0xff]
        %v3200 = vld [vmem:[#allocation8 + $0x1c0] sm:$0xff]
        %v3201 = vld [vmem:[#allocation8 + $0x1c8] sm:$0xff]
        %v3202 = vld [vmem:[#allocation8 + $0x1d0] sm:$0xff]
        %v3203 = vld [vmem:[#allocation8 + $0x1d8] sm:$0xff]
        %v3204 = vld [vmem:[#allocation8 + $0x1e0] sm:$0xff]
        %v3205 = vld [vmem:[#allocation8 + $0x1e8] sm:$0xff]
        %v3206 = vld [vmem:[#allocation8 + $0x1f0] sm:$0xff]
        %v3207 = vld [vmem:[#allocation8 + $0x1f8] sm:$0xff]
        %v3208 = vld [vmem:[%s4] sm:$0x3]
        %v3210 = vlaneseq
        %v3211 = vshrl.u32 %v3210, 7
        %v3212 = vsub.s32 0, %v3211
        %v3213 = vrot.slane %v3208, %v3212
        %v3214 = vlaneseq
        %v3215 = vshrl.u32 %v3214, 7
        %v3216 = vsub.s32 1, %v3215
        %v3217 = vrot.slane %v3208, %v3216
        %v3284 = vunpack.c.l.b16 %v3144
        %v3285 = vunpack.c.h.b16 %v3144
        %v3286 = vunpack.c.l.b16 %v3145
        %v3287 = vunpack.c.h.b16 %v3145
        %v3288 = vunpack.c.l.b16 %v3146
        %v3289 = vunpack.c.h.b16 %v3146
        %v3290 = vunpack.c.l.b16 %v3147
        %v3291 = vunpack.c.h.b16 %v3147
        %v3292 = vunpack.c.l.b16 %v3148
        %v3293 = vunpack.c.h.b16 %v3148
        %v3294 = vunpack.c.l.b16 %v3149
        %v3295 = vunpack.c.h.b16 %v3149
        %v3296 = vunpack.c.l.b16 %v3150
        %v3297 = vunpack.c.h.b16 %v3150
        %v3298 = vunpack.c.l.b16 %v3151
        %v3299 = vunpack.c.h.b16 %v3151
        %v3300 = vunpack.c.l.b16 %v3152
        %v3301 = vunpack.c.h.b16 %v3152
        %v3302 = vunpack.c.l.b16 %v3153
        %v3303 = vunpack.c.h.b16 %v3153
        %v3304 = vunpack.c.l.b16 %v3154
        %v3305 = vunpack.c.h.b16 %v3154
        %v3306 = vunpack.c.l.b16 %v3155
        %v3307 = vunpack.c.h.b16 %v3155
        %v3308 = vunpack.c.l.b16 %v3156
        %v3309 = vunpack.c.h.b16 %v3156
        %v3310 = vunpack.c.l.b16 %v3157
        %v3311 = vunpack.c.h.b16 %v3157
        %v3312 = vunpack.c.l.b16 %v3158
        %v3313 = vunpack.c.h.b16 %v3158
        %v3314 = vunpack.c.l.b16 %v3159
        %v3315 = vunpack.c.h.b16 %v3159
        %v3316 = vunpack.c.l.b16 %v3160
        %v3317 = vunpack.c.h.b16 %v3160
        %v3318 = vunpack.c.l.b16 %v3161
        %v3319 = vunpack.c.h.b16 %v3161
        %v3320 = vunpack.c.l.b16 %v3162
        %v3321 = vunpack.c.h.b16 %v3162
        %v3322 = vunpack.c.l.b16 %v3163
        %v3323 = vunpack.c.h.b16 %v3163
        %v3324 = vunpack.c.l.b16 %v3164
        %v3325 = vunpack.c.h.b16 %v3164
        %v3326 = vunpack.c.l.b16 %v3165
        %v3327 = vunpack.c.h.b16 %v3165
        %v3328 = vunpack.c.l.b16 %v3166
        %v3329 = vunpack.c.h.b16 %v3166
        %v3330 = vunpack.c.l.b16 %v3167
        %v3331 = vunpack.c.h.b16 %v3167
        %v3332 = vunpack.c.l.b16 %v3168
        %v3333 = vunpack.c.h.b16 %v3168
        %v3334 = vunpack.c.l.b16 %v3169
        %v3335 = vunpack.c.h.b16 %v3169
        %v3336 = vunpack.c.l.b16 %v3170
        %v3337 = vunpack.c.h.b16 %v3170
        %v3338 = vunpack.c.l.b16 %v3171
        %v3339 = vunpack.c.h.b16 %v3171
        %v3340 = vunpack.c.l.b16 %v3172
        %v3341 = vunpack.c.h.b16 %v3172
        %v3342 = vunpack.c.l.b16 %v3173
        %v3343 = vunpack.c.h.b16 %v3173
        %v3344 = vunpack.c.l.b16 %v3174
        %v3345 = vunpack.c.h.b16 %v3174
        %v3346 = vunpack.c.l.b16 %v3175
        %v3347 = vunpack.c.h.b16 %v3175
        %v3348 = vunpack.c.l.b16 %v3176
        %v3349 = vunpack.c.h.b16 %v3176
        %v3350 = vunpack.c.l.b16 %v3177
        %v3351 = vunpack.c.h.b16 %v3177
        %v3352 = vunpack.c.l.b16 %v3178
        %v3353 = vunpack.c.h.b16 %v3178
        %v3354 = vunpack.c.l.b16 %v3179
        %v3355 = vunpack.c.h.b16 %v3179
        %v3356 = vunpack.c.l.b16 %v3180
        %v3357 = vunpack.c.h.b16 %v3180
        %v3358 = vunpack.c.l.b16 %v3181
        %v3359 = vunpack.c.h.b16 %v3181
        %v3360 = vunpack.c.l.b16 %v3182
        %v3361 = vunpack.c.h.b16 %v3182
        %v3362 = vunpack.c.l.b16 %v3183
        %v3363 = vunpack.c.h.b16 %v3183
        %v3364 = vunpack.c.l.b16 %v3184
        %v3365 = vunpack.c.h.b16 %v3184
        %v3366 = vunpack.c.l.b16 %v3185
        %v3367 = vunpack.c.h.b16 %v3185
        %v3368 = vunpack.c.l.b16 %v3186
        %v3369 = vunpack.c.h.b16 %v3186
        %v3370 = vunpack.c.l.b16 %v3187
        %v3371 = vunpack.c.h.b16 %v3187
        %v3372 = vunpack.c.l.b16 %v3188
        %v3373 = vunpack.c.h.b16 %v3188
        %v3374 = vunpack.c.l.b16 %v3189
        %v3375 = vunpack.c.h.b16 %v3189
        %v3376 = vunpack.c.l.b16 %v3190
        %v3377 = vunpack.c.h.b16 %v3190
        %v3378 = vunpack.c.l.b16 %v3191
        %v3379 = vunpack.c.h.b16 %v3191
        %v3380 = vunpack.c.l.b16 %v3192
        %v3381 = vunpack.c.h.b16 %v3192
        %v3382 = vunpack.c.l.b16 %v3193
        %v3383 = vunpack.c.h.b16 %v3193
        %v3384 = vunpack.c.l.b16 %v3194
        %v3385 = vunpack.c.h.b16 %v3194
        %v3386 = vunpack.c.l.b16 %v3195
        %v3387 = vunpack.c.h.b16 %v3195
        %v3388 = vunpack.c.l.b16 %v3196
        %v3389 = vunpack.c.h.b16 %v3196
        %v3390 = vunpack.c.l.b16 %v3197
        %v3391 = vunpack.c.h.b16 %v3197
        %v3392 = vunpack.c.l.b16 %v3198
        %v3393 = vunpack.c.h.b16 %v3198
        %v3394 = vunpack.c.l.b16 %v3199
        %v3395 = vunpack.c.h.b16 %v3199
        %v3396 = vunpack.c.l.b16 %v3200
        %v3397 = vunpack.c.h.b16 %v3200
        %v3398 = vunpack.c.l.b16 %v3201
        %v3399 = vunpack.c.h.b16 %v3201
        %v3400 = vunpack.c.l.b16 %v3202
        %v3401 = vunpack.c.h.b16 %v3202
        %v3402 = vunpack.c.l.b16 %v3203
        %v3403 = vunpack.c.h.b16 %v3203
        %v3404 = vunpack.c.l.b16 %v3204
        %v3405 = vunpack.c.h.b16 %v3204
        %v3406 = vunpack.c.l.b16 %v3205
        %v3407 = vunpack.c.h.b16 %v3205
        %v3408 = vunpack.c.l.b16 %v3206
        %v3409 = vunpack.c.h.b16 %v3206
        %v3410 = vunpack.c.l.b16 %v3207
        %v3411 = vunpack.c.h.b16 %v3207
        %v3412 = vpack.c.b16 %v3286, %v3284
        %v3413 = vpack.c.b16 %v3287, %v3285
        %v3414 = vpack.c.b16 %v3290, %v3288
        %v3415 = vpack.c.b16 %v3291, %v3289
        %v3416 = vpack.c.b16 %v3294, %v3292
        %v3417 = vpack.c.b16 %v3295, %v3293
        %v3418 = vpack.c.b16 %v3298, %v3296
        %v3419 = vpack.c.b16 %v3299, %v3297
        %v3420 = vpack.c.b16 %v3302, %v3300
        %v3421 = vpack.c.b16 %v3303, %v3301
        %v3422 = vpack.c.b16 %v3306, %v3304
        %v3423 = vpack.c.b16 %v3307, %v3305
        %v3424 = vpack.c.b16 %v3310, %v3308
        %v3425 = vpack.c.b16 %v3311, %v3309
        %v3426 = vpack.c.b16 %v3314, %v3312
        %v3427 = vpack.c.b16 %v3315, %v3313
        %v3428 = vpack.c.b16 %v3318, %v3316
        %v3429 = vpack.c.b16 %v3319, %v3317
        %v3430 = vpack.c.b16 %v3322, %v3320
        %v3431 = vpack.c.b16 %v3323, %v3321
        %v3432 = vpack.c.b16 %v3326, %v3324
        %v3433 = vpack.c.b16 %v3327, %v3325
        %v3434 = vpack.c.b16 %v3330, %v3328
        %v3435 = vpack.c.b16 %v3331, %v3329
        %v3436 = vpack.c.b16 %v3334, %v3332
        %v3437 = vpack.c.b16 %v3335, %v3333
        %v3438 = vpack.c.b16 %v3338, %v3336
        %v3439 = vpack.c.b16 %v3339, %v3337
        %v3440 = vpack.c.b16 %v3342, %v3340
        %v3441 = vpack.c.b16 %v3343, %v3341
        %v3442 = vpack.c.b16 %v3346, %v3344
        %v3443 = vpack.c.b16 %v3347, %v3345
        %v3444 = vpack.c.b16 %v3350, %v3348
        %v3445 = vpack.c.b16 %v3351, %v3349
        %v3446 = vpack.c.b16 %v3354, %v3352
        %v3447 = vpack.c.b16 %v3355, %v3353
        %v3448 = vpack.c.b16 %v3358, %v3356
        %v3449 = vpack.c.b16 %v3359, %v3357
        %v3450 = vpack.c.b16 %v3362, %v3360
        %v3451 = vpack.c.b16 %v3363, %v3361
        %v3452 = vpack.c.b16 %v3366, %v3364
        %v3453 = vpack.c.b16 %v3367, %v3365
        %v3454 = vpack.c.b16 %v3370, %v3368
        %v3455 = vpack.c.b16 %v3371, %v3369
        %v3456 = vpack.c.b16 %v3374, %v3372
        %v3457 = vpack.c.b16 %v3375, %v3373
        %v3458 = vpack.c.b16 %v3378, %v3376
        %v3459 = vpack.c.b16 %v3379, %v3377
        %v3460 = vpack.c.b16 %v3382, %v3380
        %v3461 = vpack.c.b16 %v3383, %v3381
        %v3462 = vpack.c.b16 %v3386, %v3384
        %v3463 = vpack.c.b16 %v3387, %v3385
        %v3464 = vpack.c.b16 %v3390, %v3388
        %v3465 = vpack.c.b16 %v3391, %v3389
        %v3466 = vpack.c.b16 %v3394, %v3392
        %v3467 = vpack.c.b16 %v3395, %v3393
        %v3468 = vpack.c.b16 %v3398, %v3396
        %v3469 = vpack.c.b16 %v3399, %v3397
        %v3470 = vpack.c.b16 %v3402, %v3400
        %v3471 = vpack.c.b16 %v3403, %v3401
        %v3472 = vpack.c.b16 %v3406, %v3404
        %v3473 = vpack.c.b16 %v3407, %v3405
        %v3474 = vpack.c.b16 %v3410, %v3408
        %v3475 = vpack.c.b16 %v3411, %v3409
        %3540 = vmatprep.subr.bf16.mxu0 %v3427
        %3541 = vmatpush1.bf16.msra.mxu0 %v3426
        %3542 = vmatprep.subr.bf16.mxu0 %v3425
        %3543 = vmatpush1.bf16.msra.mxu0 %v3424
        %3544 = vmatprep.subr.bf16.mxu0 %v3423
        %3545 = vmatpush1.bf16.msra.mxu0 %v3422
        %3546 = vmatprep.subr.bf16.mxu0 %v3421
        %3547 = vmatpush1.bf16.msra.mxu0 %v3420
        %3548 = vmatprep.subr.bf16.mxu0 %v3419
        %3549 = vmatpush1.bf16.msra.mxu0 %v3418
        %3550 = vmatprep.subr.bf16.mxu0 %v3417
        %3551 = vmatpush1.bf16.msra.mxu0 %v3416
        %3552 = vmatprep.subr.bf16.mxu0 %v3415
        %3553 = vmatpush1.bf16.msra.mxu0 %v3414
        %3554 = vmatprep.subr.bf16.mxu0 %v3413
        %3555 = vmatpush1.bf16.msra.mxu0 %v3412
        %3556 = vmatprep.subr.bf16.mxu0 %v3443
        %3557 = vmatpush2.bf16.msra.mxu0 %v3442
        %3558 = vmatprep.subr.bf16.mxu0 %v3441
        %3559 = vmatpush2.bf16.msra.mxu0 %v3440
        %3560 = vmatprep.subr.bf16.mxu0 %v3439
        %3561 = vmatpush2.bf16.msra.mxu0 %v3438
        %3562 = vmatprep.subr.bf16.mxu0 %v3437
        %3563 = vmatpush2.bf16.msra.mxu0 %v3436
        %3564 = vmatprep.subr.bf16.mxu0 %v3435
        %3565 = vmatpush2.bf16.msra.mxu0 %v3434
        %3566 = vmatprep.subr.bf16.mxu0 %v3433
        %3567 = vmatpush2.bf16.msra.mxu0 %v3432
        %3568 = vmatprep.subr.bf16.mxu0 %v3431
        %3569 = vmatpush2.bf16.msra.mxu0 %v3430
        %3570 = vmatprep.subr.bf16.mxu0 %v3429
        %3571 = vmatpush2.bf16.msra.mxu0 %v3428
        %3572 = vmatprep.mubr.bf16.mxu0 %v3113
        %3573 = vmatmul.mubr.bf16.gmra.mxu0 %v3112
        %v3574 = vpop.f32.mrf.mxu0
        %v3575 = vadd.f32 %v3213, %v3574
        %v3576 = vpop.f32.mrf.mxu0
        %v3577 = vadd.f32 %v3217, %v3576
        %v3578 = vpop.f32.mrf.mxu0
        %v3579 = vadd.f32 %v3213, %v3578
        %v3580 = vpop.f32.mrf.mxu0
        %v3581 = vadd.f32 %v3217, %v3580
        %3582 = vmatprep.mubr.bf16.mxu0 %v3117
        %3583 = vmatmul.mubr.bf16.gmra.mxu0 %v3116
        %v3584 = vpop.f32.mrf.mxu0
        %v3585 = vadd.f32 %v3213, %v3584
        %v3586 = vpop.f32.mrf.mxu0
        %v3587 = vadd.f32 %v3217, %v3586
        %v3588 = vpop.f32.mrf.mxu0
        %v3589 = vadd.f32 %v3213, %v3588
        %v3590 = vpop.f32.mrf.mxu0
        %v3591 = vadd.f32 %v3217, %v3590
        %3592 = vmatprep.mubr.bf16.mxu0 %v3121
        %3593 = vmatmul.mubr.bf16.gmra.mxu0 %v3120
        %v3594 = vpop.f32.mrf.mxu0
        %v3595 = vadd.f32 %v3213, %v3594
        %v3596 = vpop.f32.mrf.mxu0
        %v3597 = vadd.f32 %v3217, %v3596
        %v3598 = vpop.f32.mrf.mxu0
        %v3599 = vadd.f32 %v3213, %v3598
        %v3600 = vpop.f32.mrf.mxu0
        %v3601 = vadd.f32 %v3217, %v3600
        %3602 = vmatprep.mubr.bf16.mxu0 %v3125
        %3603 = vmatmul.mubr.bf16.gmra.mxu0 %v3124
        %v3604 = vpop.f32.mrf.mxu0
        %v3605 = vadd.f32 %v3213, %v3604
        %v3606 = vpop.f32.mrf.mxu0
        %v3607 = vadd.f32 %v3217, %v3606
        %v3608 = vpop.f32.mrf.mxu0
        %v3609 = vadd.f32 %v3213, %v3608
        %v3610 = vpop.f32.mrf.mxu0
        %v3611 = vadd.f32 %v3217, %v3610
        %3612 = vmatprep.mubr.bf16.mxu0 %v3129
        %3613 = vmatmul.mubr.bf16.gmra.mxu0 %v3128
        %v3614 = vpop.f32.mrf.mxu0
        %v3615 = vadd.f32 %v3213, %v3614
        %v3616 = vpop.f32.mrf.mxu0
        %v3617 = vadd.f32 %v3217, %v3616
        %v3618 = vpop.f32.mrf.mxu0
        %v3619 = vadd.f32 %v3213, %v3618
        %v3620 = vpop.f32.mrf.mxu0
        %v3621 = vadd.f32 %v3217, %v3620
        %3622 = vmatprep.mubr.bf16.mxu0 %v3133
        %3623 = vmatmul.mubr.bf16.gmra.mxu0 %v3132
        %v3624 = vpop.f32.mrf.mxu0
        %v3625 = vadd.f32 %v3213, %v3624
        %v3626 = vpop.f32.mrf.mxu0
        %v3627 = vadd.f32 %v3217, %v3626
        %v3628 = vpop.f32.mrf.mxu0
        %v3629 = vadd.f32 %v3213, %v3628
        %v3630 = vpop.f32.mrf.mxu0
        %v3631 = vadd.f32 %v3217, %v3630
        %3632 = vmatprep.mubr.bf16.mxu0 %v3137
        %3633 = vmatmul.mubr.bf16.gmra.mxu0 %v3136
        %v3634 = vpop.f32.mrf.mxu0
        %v3635 = vadd.f32 %v3213, %v3634
        %v3636 = vpop.f32.mrf.mxu0
        %v3637 = vadd.f32 %v3217, %v3636
        %v3638 = vpop.f32.mrf.mxu0
        %v3639 = vadd.f32 %v3213, %v3638
        %v3640 = vpop.f32.mrf.mxu0
        %v3641 = vadd.f32 %v3217, %v3640
        %3642 = vmatprep.mubr.bf16.mxu0 %v3141
        %3643 = vmatmul.mubr.bf16.gmra.mxu0 %v3140
        %v3644 = vpop.f32.mrf.mxu0
        %v3645 = vadd.f32 %v3213, %v3644
        %v3646 = vpop.f32.mrf.mxu0
        %v3647 = vadd.f32 %v3217, %v3646
        %v3648 = vpop.f32.mrf.mxu0
        %v3649 = vadd.f32 %v3213, %v3648
        %v3650 = vpop.f32.mrf.mxu0
        %v3651 = vadd.f32 %v3217, %v3650
        %3652 = vdwg.mxu0
        %3653 = vmatprep.subr.bf16.mxu0 %v3459
        %3654 = vmatpush1.bf16.msra.mxu0 %v3458
        %3655 = vmatprep.subr.bf16.mxu0 %v3457
        %3656 = vmatpush1.bf16.msra.mxu0 %v3456
        %3657 = vmatprep.subr.bf16.mxu0 %v3455
        %3658 = vmatpush1.bf16.msra.mxu0 %v3454
        %3659 = vmatprep.subr.bf16.mxu0 %v3453
        %3660 = vmatpush1.bf16.msra.mxu0 %v3452
        %3661 = vmatprep.subr.bf16.mxu0 %v3451
        %3662 = vmatpush1.bf16.msra.mxu0 %v3450
        %3663 = vmatprep.subr.bf16.mxu0 %v3449
        %3664 = vmatpush1.bf16.msra.mxu0 %v3448
        %3665 = vmatprep.subr.bf16.mxu0 %v3447
        %3666 = vmatpush1.bf16.msra.mxu0 %v3446
        %3667 = vmatprep.subr.bf16.mxu0 %v3445
        %3668 = vmatpush1.bf16.msra.mxu0 %v3444
        %3669 = vmatprep.subr.bf16.mxu0 %v3475
        %3670 = vmatpush2.bf16.msra.mxu0 %v3474
        %3671 = vmatprep.subr.bf16.mxu0 %v3473
        %3672 = vmatpush2.bf16.msra.mxu0 %v3472
        %3673 = vmatprep.subr.bf16.mxu0 %v3471
        %3674 = vmatpush2.bf16.msra.mxu0 %v3470
        %3675 = vmatprep.subr.bf16.mxu0 %v3469
        %3676 = vmatpush2.bf16.msra.mxu0 %v3468
        %3677 = vmatprep.subr.bf16.mxu0 %v3467
        %3678 = vmatpush2.bf16.msra.mxu0 %v3466
        %3679 = vmatprep.subr.bf16.mxu0 %v3465
        %3680 = vmatpush2.bf16.msra.mxu0 %v3464
        %3681 = vmatprep.subr.bf16.mxu0 %v3463
        %3682 = vmatpush2.bf16.msra.mxu0 %v3462
        %3683 = vmatprep.subr.bf16.mxu0 %v3461
        %3684 = vmatpush2.bf16.msra.mxu0 %v3460
        %3685 = vmatprep.mubr.bf16.mxu0 %v3115
        %3686 = vmatmul.mubr.bf16.gmra.mxu0 %v3114
        %v3687 = vpop.f32.mrf.mxu0
        %v3688 = vadd.f32 %v3575, %v3687
        %v3689 = vpop.f32.mrf.mxu0
        %v3690 = vadd.f32 %v3577, %v3689
        %v3691 = vpop.f32.mrf.mxu0
        %v3692 = vadd.f32 %v3579, %v3691
        %v3693 = vpop.f32.mrf.mxu0
        %v3694 = vadd.f32 %v3581, %v3693
        %3695 = vmatprep.mubr.bf16.mxu0 %v3119
        %3696 = vmatmul.mubr.bf16.gmra.mxu0 %v3118
        %v3697 = vpop.f32.mrf.mxu0
        %v3698 = vadd.f32 %v3585, %v3697
        %v3699 = vpop.f32.mrf.mxu0
        %v3700 = vadd.f32 %v3587, %v3699
        %v3701 = vpop.f32.mrf.mxu0
        %v3702 = vadd.f32 %v3589, %v3701
        %v3703 = vpop.f32.mrf.mxu0
        %v3704 = vadd.f32 %v3591, %v3703
        %3705 = vmatprep.mubr.bf16.mxu0 %v3123
        %3706 = vmatmul.mubr.bf16.gmra.mxu0 %v3122
        %v3707 = vpop.f32.mrf.mxu0
        %v3708 = vadd.f32 %v3595, %v3707
        %v3709 = vpop.f32.mrf.mxu0
        %v3710 = vadd.f32 %v3597, %v3709
        %v3711 = vpop.f32.mrf.mxu0
        %v3712 = vadd.f32 %v3599, %v3711
        %v3713 = vpop.f32.mrf.mxu0
        %v3714 = vadd.f32 %v3601, %v3713
        %3715 = vmatprep.mubr.bf16.mxu0 %v3127
        %3716 = vmatmul.mubr.bf16.gmra.mxu0 %v3126
        %v3717 = vpop.f32.mrf.mxu0
        %v3718 = vadd.f32 %v3605, %v3717
        %v3719 = vpop.f32.mrf.mxu0
        %v3720 = vadd.f32 %v3607, %v3719
        %v3721 = vpop.f32.mrf.mxu0
        %v3722 = vadd.f32 %v3609, %v3721
        %v3723 = vpop.f32.mrf.mxu0
        %v3724 = vadd.f32 %v3611, %v3723
        %3725 = vmatprep.mubr.bf16.mxu0 %v3131
        %3726 = vmatmul.mubr.bf16.gmra.mxu0 %v3130
        %v3727 = vpop.f32.mrf.mxu0
        %v3728 = vadd.f32 %v3615, %v3727
        %v3729 = vpop.f32.mrf.mxu0
        %v3730 = vadd.f32 %v3617, %v3729
        %v3731 = vpop.f32.mrf.mxu0
        %v3732 = vadd.f32 %v3619, %v3731
        %v3733 = vpop.f32.mrf.mxu0
        %v3734 = vadd.f32 %v3621, %v3733
        %3735 = vmatprep.mubr.bf16.mxu0 %v3135
        %3736 = vmatmul.mubr.bf16.gmra.mxu0 %v3134
        %v3737 = vpop.f32.mrf.mxu0
        %v3738 = vadd.f32 %v3625, %v3737
        %v3739 = vpop.f32.mrf.mxu0
        %v3740 = vadd.f32 %v3627, %v3739
        %v3741 = vpop.f32.mrf.mxu0
        %v3742 = vadd.f32 %v3629, %v3741
        %v3743 = vpop.f32.mrf.mxu0
        %v3744 = vadd.f32 %v3631, %v3743
        %3745 = vmatprep.mubr.bf16.mxu0 %v3139
        %3746 = vmatmul.mubr.bf16.gmra.mxu0 %v3138
        %v3747 = vpop.f32.mrf.mxu0
        %v3748 = vadd.f32 %v3635, %v3747
        %v3749 = vpop.f32.mrf.mxu0
        %v3750 = vadd.f32 %v3637, %v3749
        %v3751 = vpop.f32.mrf.mxu0
        %v3752 = vadd.f32 %v3639, %v3751
        %v3753 = vpop.f32.mrf.mxu0
        %v3754 = vadd.f32 %v3641, %v3753
        %3755 = vmatprep.mubr.bf16.mxu0 %v3143
        %3756 = vmatmul.mubr.bf16.gmra.mxu0 %v3142
        %v3757 = vpop.f32.mrf.mxu0
        %v3758 = vadd.f32 %v3645, %v3757
        %v3759 = vpop.f32.mrf.mxu0
        %v3760 = vadd.f32 %v3647, %v3759
        %v3761 = vpop.f32.mrf.mxu0
        %v3762 = vadd.f32 %v3649, %v3761
        %v3763 = vpop.f32.mrf.mxu0
        %v3764 = vadd.f32 %v3651, %v3763
        %3765 = vdwg.mxu0
        %v3766 = vmax.f32 %v3688, 0.0
        %v3767 = vmax.f32 %v3690, 0.0
        %v3768 = vmax.f32 %v3692, 0.0
        %v3769 = vmax.f32 %v3694, 0.0
        %v3770 = vmax.f32 %v3698, 0.0
        %v3771 = vmax.f32 %v3700, 0.0
        %v3772 = vmax.f32 %v3702, 0.0
        %v3773 = vmax.f32 %v3704, 0.0
        %v3774 = vmax.f32 %v3708, 0.0
        %v3775 = vmax.f32 %v3710, 0.0
        %v3776 = vmax.f32 %v3712, 0.0
        %v3777 = vmax.f32 %v3714, 0.0
        %v3778 = vmax.f32 %v3718, 0.0
        %v3779 = vmax.f32 %v3720, 0.0
        %v3780 = vmax.f32 %v3722, 0.0
        %v3781 = vmax.f32 %v3724, 0.0
        %v3782 = vmax.f32 %v3728, 0.0
        %v3783 = vmax.f32 %v3730, 0.0
        %v3784 = vmax.f32 %v3732, 0.0
        %v3785 = vmax.f32 %v3734, 0.0
        %v3786 = vmax.f32 %v3738, 0.0
        %v3787 = vmax.f32 %v3740, 0.0
        %v3788 = vmax.f32 %v3742, 0.0
        %v3789 = vmax.f32 %v3744, 0.0
        %v3790 = vmax.f32 %v3748, 0.0
        %v3791 = vmax.f32 %v3750, 0.0
        %v3792 = vmax.f32 %v3752, 0.0
        %v3793 = vmax.f32 %v3754, 0.0
        %v3794 = vmax.f32 %v3758, 0.0
        %v3795 = vmax.f32 %v3760, 0.0
        %v3796 = vmax.f32 %v3762, 0.0
        %v3797 = vmax.f32 %v3764, 0.0
        %v3798 = vpack.c.bf16 %v3768, %v3766
        %v3799 = vpack.c.bf16 %v3769, %v3767
        %v3800 = vpack.c.bf16 %v3772, %v3770
        %v3801 = vpack.c.bf16 %v3773, %v3771
        %v3802 = vpack.c.bf16 %v3776, %v3774
        %v3803 = vpack.c.bf16 %v3777, %v3775
        %v3804 = vpack.c.bf16 %v3780, %v3778
        %v3805 = vpack.c.bf16 %v3781, %v3779
        %v3806 = vpack.c.bf16 %v3784, %v3782
        %v3807 = vpack.c.bf16 %v3785, %v3783
        %v3808 = vpack.c.bf16 %v3788, %v3786
        %v3809 = vpack.c.bf16 %v3789, %v3787
        %v3810 = vpack.c.bf16 %v3792, %v3790
        %v3811 = vpack.c.bf16 %v3793, %v3791
        %v3812 = vpack.c.bf16 %v3796, %v3794
        %v3813 = vpack.c.bf16 %v3797, %v3795
        %v3814 = vld [vmem:[#allocation10] sm:$0xf]
        %v3815 = vld [vmem:[#allocation10 + $0x4] sm:$0xf]
        %v3816 = vld [vmem:[#allocation10 + $0x8] sm:$0xf]
        %v3817 = vld [vmem:[#allocation10 + $0xc] sm:$0xf]
        %v3818 = vld [vmem:[#allocation10 + $0x10] sm:$0xf]
        %v3819 = vld [vmem:[#allocation10 + $0x14] sm:$0xf]
        %v3820 = vld [vmem:[#allocation10 + $0x18] sm:$0xf]
        %v3821 = vld [vmem:[#allocation10 + $0x1c] sm:$0xf]
        %v3822 = vld [vmem:[#allocation10 + $0x20] sm:$0xf]
        %v3823 = vld [vmem:[#allocation10 + $0x24] sm:$0xf]
        %v3824 = vld [vmem:[#allocation10 + $0x28] sm:$0xf]
        %v3825 = vld [vmem:[#allocation10 + $0x2c] sm:$0xf]
        %v3826 = vld [vmem:[#allocation10 + $0x30] sm:$0xf]
        %v3827 = vld [vmem:[#allocation10 + $0x34] sm:$0xf]
        %v3828 = vld [vmem:[#allocation10 + $0x38] sm:$0xf]
        %v3829 = vld [vmem:[#allocation10 + $0x3c] sm:$0xf]
        %v3830 = vld [vmem:[#allocation10 + $0x40] sm:$0xf]
        %v3831 = vld [vmem:[#allocation10 + $0x44] sm:$0xf]
        %v3832 = vld [vmem:[#allocation10 + $0x48] sm:$0xf]
        %v3833 = vld [vmem:[#allocation10 + $0x4c] sm:$0xf]
        %v3834 = vld [vmem:[#allocation10 + $0x50] sm:$0xf]
        %v3835 = vld [vmem:[#allocation10 + $0x54] sm:$0xf]
        %v3836 = vld [vmem:[#allocation10 + $0x58] sm:$0xf]
        %v3837 = vld [vmem:[#allocation10 + $0x5c] sm:$0xf]
        %v3838 = vld [vmem:[#allocation10 + $0x60] sm:$0xf]
        %v3839 = vld [vmem:[#allocation10 + $0x64] sm:$0xf]
        %v3840 = vld [vmem:[#allocation10 + $0x68] sm:$0xf]
        %v3841 = vld [vmem:[#allocation10 + $0x6c] sm:$0xf]
        %v3842 = vld [vmem:[#allocation10 + $0x70] sm:$0xf]
        %v3843 = vld [vmem:[#allocation10 + $0x74] sm:$0xf]
        %v3844 = vld [vmem:[#allocation10 + $0x78] sm:$0xf]
        %v3845 = vld [vmem:[#allocation10 + $0x7c] sm:$0xf]
        %v3846 = vld [vmem:[%s6] sm:$0x1]
        %v3848 = vlaneseq
        %v3849 = vshrl.u32 %v3848, 7
        %v3850 = vsub.s32 0, %v3849
        %v3851 = vrot.slane %v3846, %v3850
        %v3885 = vunpack.c.l.b16 %v3814
        %v3886 = vunpack.c.l.b16 %v3815
        %v3887 = vunpack.c.l.b16 %v3816
        %v3888 = vunpack.c.l.b16 %v3817
        %v3889 = vunpack.c.l.b16 %v3818
        %v3890 = vunpack.c.l.b16 %v3819
        %v3891 = vunpack.c.l.b16 %v3820
        %v3892 = vunpack.c.l.b16 %v3821
        %v3893 = vunpack.c.l.b16 %v3822
        %v3894 = vunpack.c.l.b16 %v3823
        %v3895 = vunpack.c.l.b16 %v3824
        %v3896 = vunpack.c.l.b16 %v3825
        %v3897 = vunpack.c.l.b16 %v3826
        %v3898 = vunpack.c.l.b16 %v3827
        %v3899 = vunpack.c.l.b16 %v3828
        %v3900 = vunpack.c.l.b16 %v3829
        %v3901 = vunpack.c.l.b16 %v3830
        %v3902 = vunpack.c.l.b16 %v3831
        %v3903 = vunpack.c.l.b16 %v3832
        %v3904 = vunpack.c.l.b16 %v3833
        %v3905 = vunpack.c.l.b16 %v3834
        %v3906 = vunpack.c.l.b16 %v3835
        %v3907 = vunpack.c.l.b16 %v3836
        %v3908 = vunpack.c.l.b16 %v3837
        %v3909 = vunpack.c.l.b16 %v3838
        %v3910 = vunpack.c.l.b16 %v3839
        %v3911 = vunpack.c.l.b16 %v3840
        %v3912 = vunpack.c.l.b16 %v3841
        %v3913 = vunpack.c.l.b16 %v3842
        %v3914 = vunpack.c.l.b16 %v3843
        %v3915 = vunpack.c.l.b16 %v3844
        %v3916 = vunpack.c.l.b16 %v3845
        %v3917 = vpack.c.b16 %v3886, %v3885
        %v3918 = vpack.c.b16 %v3888, %v3887
        %v3919 = vpack.c.b16 %v3890, %v3889
        %v3920 = vpack.c.b16 %v3892, %v3891
        %v3921 = vpack.c.b16 %v3894, %v3893
        %v3922 = vpack.c.b16 %v3896, %v3895
        %v3923 = vpack.c.b16 %v3898, %v3897
        %v3924 = vpack.c.b16 %v3900, %v3899
        %v3925 = vpack.c.b16 %v3902, %v3901
        %v3926 = vpack.c.b16 %v3904, %v3903
        %v3927 = vpack.c.b16 %v3906, %v3905
        %v3928 = vpack.c.b16 %v3908, %v3907
        %v3929 = vpack.c.b16 %v3910, %v3909
        %v3930 = vpack.c.b16 %v3912, %v3911
        %v3931 = vpack.c.b16 %v3914, %v3913
        %v3932 = vpack.c.b16 %v3916, %v3915
        %3949 = vmatprep.subr.bf16.mxu0 0
        %3950 = vmatpush1.bf16.msra.mxu0 %v3924
        %3951 = vmatprep.subr.bf16.mxu0 0
        %3952 = vmatpush1.bf16.msra.mxu0 %v3923
        %3953 = vmatprep.subr.bf16.mxu0 0
        %3954 = vmatpush1.bf16.msra.mxu0 %v3922
        %3955 = vmatprep.subr.bf16.mxu0 0
        %3956 = vmatpush1.bf16.msra.mxu0 %v3921
        %3957 = vmatprep.subr.bf16.mxu0 0
        %3958 = vmatpush1.bf16.msra.mxu0 %v3920
        %3959 = vmatprep.subr.bf16.mxu0 0
        %3960 = vmatpush1.bf16.msra.mxu0 %v3919
        %3961 = vmatprep.subr.bf16.mxu0 0
        %3962 = vmatpush1.bf16.msra.mxu0 %v3918
        %3963 = vmatprep.subr.bf16.mxu0 0
        %3964 = vmatpush1.bf16.msra.mxu0 %v3917
        %3965 = vmatprep.subr.bf16.mxu0 0
        %3966 = vmatpush2.bf16.msra.mxu0 %v3932
        %3967 = vmatprep.subr.bf16.mxu0 0
        %3968 = vmatpush2.bf16.msra.mxu0 %v3931
        %3969 = vmatprep.subr.bf16.mxu0 0
        %3970 = vmatpush2.bf16.msra.mxu0 %v3930
        %3971 = vmatprep.subr.bf16.mxu0 0
        %3972 = vmatpush2.bf16.msra.mxu0 %v3929
        %3973 = vmatprep.subr.bf16.mxu0 0
        %3974 = vmatpush2.bf16.msra.mxu0 %v3928
        %3975 = vmatprep.subr.bf16.mxu0 0
        %3976 = vmatpush2.bf16.msra.mxu0 %v3927
        %3977 = vmatprep.subr.bf16.mxu0 0
        %3978 = vmatpush2.bf16.msra.mxu0 %v3926
        %3979 = vmatprep.subr.bf16.mxu0 0
        %3980 = vmatpush2.bf16.msra.mxu0 %v3925
        %3981 = vmatprep.mubr.bf16.mxu0 %v3799
        %3982 = vmatmul.mubr.bf16.gmra.mxu0 %v3798
        %v3983 = vpop.f32.mrf.mxu0
        %v3984 = vadd.f32 %v3851, %v3983
        %v3985 = vpop.f32.mrf.mxu0
        %v3986 = vpop.f32.mrf.mxu0
        %v3987 = vadd.f32 %v3851, %v3986
        %v3988 = vpop.f32.mrf.mxu0
        %3989 = vmatprep.mubr.bf16.mxu0 %v3801
        %3990 = vmatmul.mubr.bf16.gmra.mxu0 %v3800
        %v3991 = vpop.f32.mrf.mxu0
        %v3992 = vadd.f32 %v3851, %v3991
        %v3993 = vpop.f32.mrf.mxu0
        %v3994 = vpop.f32.mrf.mxu0
        %v3995 = vadd.f32 %v3851, %v3994
        %v3996 = vpop.f32.mrf.mxu0
        %3997 = vmatprep.mubr.bf16.mxu0 %v3803
        %3998 = vmatmul.mubr.bf16.gmra.mxu0 %v3802
        %v3999 = vpop.f32.mrf.mxu0
        %v4000 = vadd.f32 %v3851, %v3999
        %v4001 = vpop.f32.mrf.mxu0
        %v4002 = vpop.f32.mrf.mxu0
        %v4003 = vadd.f32 %v3851, %v4002
        %v4004 = vpop.f32.mrf.mxu0
        %4005 = vmatprep.mubr.bf16.mxu0 %v3805
        %4006 = vmatmul.mubr.bf16.gmra.mxu0 %v3804
        %v4007 = vpop.f32.mrf.mxu0
        %v4008 = vadd.f32 %v3851, %v4007
        %v4009 = vpop.f32.mrf.mxu0
        %v4010 = vpop.f32.mrf.mxu0
        %v4011 = vadd.f32 %v3851, %v4010
        %v4012 = vpop.f32.mrf.mxu0
        %4013 = vmatprep.mubr.bf16.mxu0 %v3807
        %4014 = vmatmul.mubr.bf16.gmra.mxu0 %v3806
        %v4015 = vpop.f32.mrf.mxu0
        %v4016 = vadd.f32 %v3851, %v4015
        %v4017 = vpop.f32.mrf.mxu0
        %v4018 = vpop.f32.mrf.mxu0
        %v4019 = vadd.f32 %v3851, %v4018
        %v4020 = vpop.f32.mrf.mxu0
        %4021 = vmatprep.mubr.bf16.mxu0 %v3809
        %4022 = vmatmul.mubr.bf16.gmra.mxu0 %v3808
        %v4023 = vpop.f32.mrf.mxu0
        %v4024 = vadd.f32 %v3851, %v4023
        %v4025 = vpop.f32.mrf.mxu0
        %v4026 = vpop.f32.mrf.mxu0
        %v4027 = vadd.f32 %v3851, %v4026
        %v4028 = vpop.f32.mrf.mxu0
        %4029 = vmatprep.mubr.bf16.mxu0 %v3811
        %4030 = vmatmul.mubr.bf16.gmra.mxu0 %v3810
        %v4031 = vpop.f32.mrf.mxu0
        %v4032 = vadd.f32 %v3851, %v4031
        %v4033 = vpop.f32.mrf.mxu0
        %v4034 = vpop.f32.mrf.mxu0
        %v4035 = vadd.f32 %v3851, %v4034
        %v4036 = vpop.f32.mrf.mxu0
        %4037 = vmatprep.mubr.bf16.mxu0 %v3813
        %4038 = vmatmul.mubr.bf16.gmra.mxu0 %v3812
        %v4039 = vpop.f32.mrf.mxu0
        %v4040 = vadd.f32 %v3851, %v4039
        %v4041 = vpop.f32.mrf.mxu0
        %v4042 = vpop.f32.mrf.mxu0
        %v4043 = vadd.f32 %v3851, %v4042
        %v4044 = vpop.f32.mrf.mxu0
        %4045 = vdwg.mxu0
        %v4046 = vmax.f32 %v3984, 0.0
        %v4047 = vmax.f32 %v3987, 0.0
        %v4048 = vmax.f32 %v3992, 0.0
        %v4049 = vmax.f32 %v3995, 0.0
        %v4050 = vmax.f32 %v4000, 0.0
        %v4051 = vmax.f32 %v4003, 0.0
        %v4052 = vmax.f32 %v4008, 0.0
        %v4053 = vmax.f32 %v4011, 0.0
        %v4054 = vmax.f32 %v4016, 0.0
        %v4055 = vmax.f32 %v4019, 0.0
        %v4056 = vmax.f32 %v4024, 0.0
        %v4057 = vmax.f32 %v4027, 0.0
        %v4058 = vmax.f32 %v4032, 0.0
        %v4059 = vmax.f32 %v4035, 0.0
        %v4060 = vmax.f32 %v4040, 0.0
        %v4061 = vmax.f32 %v4043, 0.0
        %v4062 = vpack.c.bf16 %v4047, %v4046
        %v4063 = vpack.c.bf16 %v4049, %v4048
        %v4064 = vpack.c.bf16 %v4051, %v4050
        %v4065 = vpack.c.bf16 %v4053, %v4052
        %v4066 = vpack.c.bf16 %v4055, %v4054
        %v4067 = vpack.c.bf16 %v4057, %v4056
        %v4068 = vpack.c.bf16 %v4059, %v4058
        %v4069 = vpack.c.bf16 %v4061, %v4060
        %v4070 = vld [vmem:[#allocation11] sm:$0xf]
        %v4071 = vld [vmem:[#allocation11 + $0x4] sm:$0xf]
        %v4072 = vld [vmem:[#allocation11 + $0x8] sm:$0xf]
        %v4073 = vld [vmem:[#allocation11 + $0xc] sm:$0xf]
        %v4074 = vld [vmem:[#allocation11 + $0x10] sm:$0xf]
        %v4075 = vld [vmem:[#allocation11 + $0x14] sm:$0xf]
        %v4076 = vld [vmem:[#allocation11 + $0x18] sm:$0xf]
        %v4077 = vld [vmem:[#allocation11 + $0x1c] sm:$0xf]
        %v4078 = vld [vmem:[#allocation11 + $0x20] sm:$0xf]
        %v4079 = vld [vmem:[#allocation11 + $0x24] sm:$0xf]
        %v4080 = vld [vmem:[#allocation11 + $0x28] sm:$0xf]
        %v4081 = vld [vmem:[#allocation11 + $0x2c] sm:$0xf]
        %v4082 = vld [vmem:[#allocation11 + $0x30] sm:$0xf]
        %v4083 = vld [vmem:[#allocation11 + $0x34] sm:$0xf]
        %v4084 = vld [vmem:[#allocation11 + $0x38] sm:$0xf]
        %v4085 = vld [vmem:[#allocation11 + $0x3c] sm:$0xf]
        %v4086 = vld [vmem:[%s8] sm:$0x1]
        %v4088 = vlaneseq
        %v4089 = vshrl.u32 %v4088, 7
        %v4090 = vsub.s32 0, %v4089
        %v4091 = vrot.slane %v4086, %v4090
        %v4109 = vunpack.c.l.b16 %v4070
        %v4110 = vunpack.c.l.b16 %v4071
        %v4111 = vunpack.c.l.b16 %v4072
        %v4112 = vunpack.c.l.b16 %v4073
        %v4113 = vunpack.c.l.b16 %v4074
        %v4114 = vunpack.c.l.b16 %v4075
        %v4115 = vunpack.c.l.b16 %v4076
        %v4116 = vunpack.c.l.b16 %v4077
        %v4117 = vunpack.c.l.b16 %v4078
        %v4118 = vunpack.c.l.b16 %v4079
        %v4119 = vunpack.c.l.b16 %v4080
        %v4120 = vunpack.c.l.b16 %v4081
        %v4121 = vunpack.c.l.b16 %v4082
        %v4122 = vunpack.c.l.b16 %v4083
        %v4123 = vunpack.c.l.b16 %v4084
        %v4124 = vunpack.c.l.b16 %v4085
        %v4125 = vpack.c.b16 %v4110, %v4109
        %v4126 = vpack.c.b16 %v4112, %v4111
        %v4127 = vpack.c.b16 %v4114, %v4113
        %v4128 = vpack.c.b16 %v4116, %v4115
        %v4129 = vpack.c.b16 %v4118, %v4117
        %v4130 = vpack.c.b16 %v4120, %v4119
        %v4131 = vpack.c.b16 %v4122, %v4121
        %v4132 = vpack.c.b16 %v4124, %v4123
        %4141 = vmatprep.subr.bf16.mxu0 0
        %4142 = vmatpush1.bf16.msra.mxu0 %v4132
        %4143 = vmatprep.subr.bf16.mxu0 0
        %4144 = vmatpush1.bf16.msra.mxu0 %v4131
        %4145 = vmatprep.subr.bf16.mxu0 0
        %4146 = vmatpush1.bf16.msra.mxu0 %v4130
        %4147 = vmatprep.subr.bf16.mxu0 0
        %4148 = vmatpush1.bf16.msra.mxu0 %v4129
        %4149 = vmatprep.subr.bf16.mxu0 0
        %4150 = vmatpush1.bf16.msra.mxu0 %v4128
        %4151 = vmatprep.subr.bf16.mxu0 0
        %4152 = vmatpush1.bf16.msra.mxu0 %v4127
        %4153 = vmatprep.subr.bf16.mxu0 0
        %4154 = vmatpush1.bf16.msra.mxu0 %v4126
        %4155 = vmatprep.subr.bf16.mxu0 0
        %4156 = vmatpush1.bf16.msra.mxu0 %v4125
        %4157 = vmatprep.subr.bf16.mxu0 0
        %4158 = vmatpush2.bf16.msra.mxu0 0
        %4159 = vmatprep.subr.bf16.mxu0 0
        %4160 = vmatpush2.bf16.msra.mxu0 0
        %4161 = vmatprep.subr.bf16.mxu0 0
        %4162 = vmatpush2.bf16.msra.mxu0 0
        %4163 = vmatprep.subr.bf16.mxu0 0
        %4164 = vmatpush2.bf16.msra.mxu0 0
        %4165 = vmatprep.subr.bf16.mxu0 0
        %4166 = vmatpush2.bf16.msra.mxu0 0
        %4167 = vmatprep.subr.bf16.mxu0 0
        %4168 = vmatpush2.bf16.msra.mxu0 0
        %4169 = vmatprep.subr.bf16.mxu0 0
        %4170 = vmatpush2.bf16.msra.mxu0 0
        %4171 = vmatprep.subr.bf16.mxu0 0
        %4172 = vmatpush2.bf16.msra.mxu0 0
        %4173 = vmatprep.mubr.bf16.mxu0 0
        %4174 = vmatmul.mubr.bf16.gmra.mxu0 %v4062
        %v4175 = vpop.f32.mrf.mxu0
        %v4176 = vadd.f32 %v4091, %v4175
        %v4177 = vpop.f32.mrf.mxu0
        %v4178 = vpop.f32.mrf.mxu0
        %v4179 = vadd.f32 %v4091, %v4178
        %v4180 = vpop.f32.mrf.mxu0
        %4181 = vmatprep.mubr.bf16.mxu0 0
        %4182 = vmatmul.mubr.bf16.gmra.mxu0 %v4063
        %v4183 = vpop.f32.mrf.mxu0
        %v4184 = vadd.f32 %v4091, %v4183
        %v4185 = vpop.f32.mrf.mxu0
        %v4186 = vpop.f32.mrf.mxu0
        %v4187 = vadd.f32 %v4091, %v4186
        %v4188 = vpop.f32.mrf.mxu0
        %4189 = vmatprep.mubr.bf16.mxu0 0
        %4190 = vmatmul.mubr.bf16.gmra.mxu0 %v4064
        %v4191 = vpop.f32.mrf.mxu0
        %v4192 = vadd.f32 %v4091, %v4191
        %v4193 = vpop.f32.mrf.mxu0
        %v4194 = vpop.f32.mrf.mxu0
        %v4195 = vadd.f32 %v4091, %v4194
        %v4196 = vpop.f32.mrf.mxu0
        %4197 = vmatprep.mubr.bf16.mxu0 0
        %4198 = vmatmul.mubr.bf16.gmra.mxu0 %v4065
        %v4199 = vpop.f32.mrf.mxu0
        %v4200 = vadd.f32 %v4091, %v4199
        %v4201 = vpop.f32.mrf.mxu0
        %v4202 = vpop.f32.mrf.mxu0
        %v4203 = vadd.f32 %v4091, %v4202
        %v4204 = vpop.f32.mrf.mxu0
        %4205 = vmatprep.mubr.bf16.mxu0 0
        %4206 = vmatmul.mubr.bf16.gmra.mxu0 %v4066
        %v4207 = vpop.f32.mrf.mxu0
        %v4208 = vadd.f32 %v4091, %v4207
        %v4209 = vpop.f32.mrf.mxu0
        %v4210 = vpop.f32.mrf.mxu0
        %v4211 = vadd.f32 %v4091, %v4210
        %v4212 = vpop.f32.mrf.mxu0
        %4213 = vmatprep.mubr.bf16.mxu0 0
        %4214 = vmatmul.mubr.bf16.gmra.mxu0 %v4067
        %v4215 = vpop.f32.mrf.mxu0
        %v4216 = vadd.f32 %v4091, %v4215
        %v4217 = vpop.f32.mrf.mxu0
        %v4218 = vpop.f32.mrf.mxu0
        %v4219 = vadd.f32 %v4091, %v4218
        %v4220 = vpop.f32.mrf.mxu0
        %4221 = vmatprep.mubr.bf16.mxu0 0
        %4222 = vmatmul.mubr.bf16.gmra.mxu0 %v4068
        %v4223 = vpop.f32.mrf.mxu0
        %v4224 = vadd.f32 %v4091, %v4223
        %v4225 = vpop.f32.mrf.mxu0
        %v4226 = vpop.f32.mrf.mxu0
        %v4227 = vadd.f32 %v4091, %v4226
        %v4228 = vpop.f32.mrf.mxu0
        %4229 = vmatprep.mubr.bf16.mxu0 0
        %4230 = vmatmul.mubr.bf16.gmra.mxu0 %v4069
        %v4231 = vpop.f32.mrf.mxu0
        %v4232 = vadd.f32 %v4091, %v4231
        %v4233 = vpop.f32.mrf.mxu0
        %v4234 = vpop.f32.mrf.mxu0
        %v4235 = vadd.f32 %v4091, %v4234
        %v4236 = vpop.f32.mrf.mxu0
        %4237 = vdwg.mxu0
        %4238 = vst [vmem:[%s422] sm:$0xff] %v4176
        %4239 = vst [vmem:[%s422 + $0x8] sm:$0xff] %v4179
        %4240 = vst [vmem:[%s422 + $0x10] sm:$0xff] %v4184
        %4241 = vst [vmem:[%s422 + $0x18] sm:$0xff] %v4187
        %4242 = vst [vmem:[%s422 + $0x20] sm:$0xff] %v4192
        %4243 = vst [vmem:[%s422 + $0x28] sm:$0xff] %v4195
        %4244 = vst [vmem:[%s422 + $0x30] sm:$0xff] %v4200
        %4245 = vst [vmem:[%s422 + $0x38] sm:$0xff] %v4203
        %4246 = vst [vmem:[%s422 + $0x40] sm:$0xff] %v4208
        %4247 = vst [vmem:[%s422 + $0x48] sm:$0xff] %v4211
        %4248 = vst [vmem:[%s422 + $0x50] sm:$0xff] %v4216
        %4249 = vst [vmem:[%s422 + $0x58] sm:$0xff] %v4219
        %4250 = vst [vmem:[%s422 + $0x60] sm:$0xff] %v4224
        %4251 = vst [vmem:[%s422 + $0x68] sm:$0xff] %v4227
        %4252 = vst [vmem:[%s422 + $0x70] sm:$0xff] %v4232
        %4253 = vst [vmem:[%s422 + $0x78] sm:$0xff] %v4235
        %s4254 = sand.u32 %s231, 1
        %s4255 = scalar_lea.sflag [#allocation4], %s4254
        %s4256 = sand.u32 %s231, 1
        %s4257 = smul.addr %s4256, 128
        %s4258 = scalar_lea.vmem [#allocation13], %s4257
        // Predicated region
        $region81: #{tpu_custom_call.1} parent=55 // pred_check
          %p4259 = pneg %p241
        $region82: #{tpu_custom_call.1} parent=55 // pred_check_branch
          %4261 = sbr.rel (%p4259) target = $region84
        $region83: #{tpu_custom_call.1} parent=55 // pred_region
          %s4262 = smul.u32 16, %s29
          %s4264 = ssub.s32 2048, 2048
          %4265 = vsyncadd %s4255, %s4264
          %s4266 = smul.addr %s4262, 128
          %s4267 = scalar_lea.hbm %s9, %s4266
          %s4268 = sshll.u32 %s4258, 4
          %s4269 = int_to_ptr.vmem [resolvable:$true] %s4268
          %4274 = dma.vmem_to_hbm [thread:$0]  %s4269, 2048, %s4267, %s4255, 128, 128, 8
        $region84: #{tpu_custom_call.1} parent=55 // pred_fallthru
          _
      $region56: #{tpu_custom_call.1} parent=5 // pred_fallthru
        _
      %p4275 = scmp.le.s32.totalorder 2, %s24
      // Predicated region
      $region85: #{tpu_custom_call.1} parent=5 // pred_check
        %p4276 = pneg %p4275
      $region86: #{tpu_custom_call.1} parent=5 // pred_check_branch
        %4278 = sbr.rel (%p4276) target = $region88
      $region87: #{tpu_custom_call.1} parent=5 // pred_region
        %s4279 = ssub.s32 %s24, 2
        // Predicated region
        $region89: #{tpu_custom_call.1} parent=87 // pred_check
          %p4280 = pneg %p247
        $region90: #{tpu_custom_call.1} parent=87 // pred_check_branch
          %4282 = sbr.rel (%p4280) target = $region92
        $region91: #{tpu_custom_call.1} parent=87 // pred_region
          %s4283 = sand.u32 %s232, 1
          %s4284 = scalar_lea.sflag [#allocation4], %s4283
          %s4285 = sand.u32 %s232, 1
          %s4286 = smul.addr %s4285, 128
          %s4287 = scalar_lea.vmem [#allocation13], %s4286
          %4288 = dma.done %s4284, 2048
        $region92: #{tpu_custom_call.1} parent=87 // pred_fallthru
          _
      $region88: #{tpu_custom_call.1} parent=5 // pred_fallthru
        _
    $region6: #{tpu_custom_call.1} parent=1 // loop_footer
      %s28 = sadd.s32 1, %s24
    $region7: #{tpu_custom_call.1} parent=1 // loop_footer_branch
      %23 = sbr.rel target = $region3
    $region8: #{tpu_custom_call.1} parent=1 // loop_exit
      _
    %4289 = vsyncpa [#allocation3], 1
    %s4290 = scalar_lea.sflag [#allocation3], 1
    %4291 = vsyncpa %s4290, 1
    %4292 = vsyncpa [#allocation6], 1
    %4293 = vsyncpa [#allocation9], 1
    %4294 = vsyncpa [#allocation12], 1
    %4295 = vsyncpa [#allocation4], 1
    %s4296 = scalar_lea.sflag [#allocation4], 1
    %4297 = vsyncpa %s4296, 1

</llo_original>
